<compile_context>
chip_gen: v6e
topology: v6e:2x2x1
jax: 0.10.0
libtpu: 0.0.40
codegen_flags: <defaults>
</compile_context>

<pallas_src>
import functools

import jax
import jax.numpy as jnp
from jax.experimental import pallas as pl
from jax.experimental.pallas import tpu as pltpu


# ----------------------------------------------------------------------------
# Fused kernel: embedding "gather" -> LayerNorm -> mask -> running masked sum
# over the sequence axis -> (last step) mean divide + L2 normalize.
# ----------------------------------------------------------------------------
def _fused_st5_kernel(ids_ref, mask_ref, emb_ref, gb_ref, out_ref,
                      acc_ref, msum_ref, *, eps: float):
  s_step = pl.program_id(1)

  @pl.when(s_step == 0)
  def _init():
    acc_ref[...] = jnp.zeros_like(acc_ref)
    msum_ref[...] = jnp.zeros_like(msum_ref)

  vocab = emb_ref.shape[0]
  batch_tile = out_ref.shape[0]
  seq_tile = ids_ref.shape[1]

  table = emb_ref[...]                    # (V, H), caller dtype (bf16 or f32)
  gamma = gb_ref[0:1, :]                  # (1, H) f32
  beta = gb_ref[1:2, :]                   # (1, H) f32
  # Hoisted once per step; lanes carry the vocabulary index.
  lane_iota = jax.lax.broadcasted_iota(jnp.int32, (seq_tile, vocab), 1)

  row_sums, mask_sums = [], []
  for b in range(batch_tile):             # small static unroll (<= 8 rows)
    ids_col = ids_ref[b]                  # (seq_tile, 1) int32
    mask_col = mask_ref[b]                # (seq_tile, 1) f32
    # "Gather" on the MXU: one-hot rows select embedding rows exactly.
    one_hot = jnp.where(ids_col == lane_iota, 1.0, 0.0).astype(table.dtype)
    x = jnp.dot(one_hot, table, preferred_element_type=jnp.float32)   # (st, H)
    # LayerNorm over hidden (stand-in front-end for the T5 encoder output).
    mean = jnp.mean(x, axis=-1, keepdims=True)
    centered = x - mean
    var = jnp.mean(centered * centered, axis=-1, keepdims=True)
    y = centered * jax.lax.rsqrt(var + eps) * gamma + beta             # (st, H)
    # Dropout(p=0.0) is identity; masked sum over this sequence chunk.
    row_sums.append(jnp.sum(y * mask_col, axis=0, keepdims=True))      # (1, H)
    mask_sums.append(jnp.sum(mask_col, axis=0, keepdims=True))         # (1, 1)

  acc_ref[...] += jnp.concatenate(row_sums, axis=0)                    # (bt, H)
  msum_ref[...] += jnp.concatenate(mask_sums, axis=0)                  # (bt, 1)

  @pl.when(s_step == pl.num_programs(1) - 1)
  def _finalize():
    # sum / clamp(sum_mask, min=1e-9), then F.normalize(p=2, dim=1, eps=1e-12).
    sent = acc_ref[...] / jnp.maximum(msum_ref[...], 1e-9)
    nrm = jnp.sqrt(jnp.sum(sent * sent, axis=-1, keepdims=True))
    out_ref[...] = (sent / jnp.maximum(nrm, 1e-12)).astype(out_ref.dtype)


def st5_sentence_embeddings(input_ids, attention_mask, emb_table, gamma, beta,
                            *, eps: float = 1e-5, seq_tile: int = 512,
                            out_dtype=jnp.float32):
  """Fused LN(Embed(ids)) * mask -> masked mean over seq -> L2 norm. (B, H)."""
  b, s = input_ids.shape
  v, h = emb_table.shape
  assert h % 128 == 0, "hidden size must be lane-aligned (multiple of 128)"
  bt = 8 if b % 8 == 0 else b
  st = min(seq_tile, s)
  assert s % st == 0 and (st % 128 == 0 or st == s), (s, st)
  # One-hot MXU gather is only sensible for small vocabularies.
  # TODO(synk): for a real T5 vocab (32128) keep the table in HBM (pl.ANY) and
  # DMA-gather rows (double-buffered per group) instead of VMEM residency.
  assert v <= 8192, "one-hot gather path is for small vocabularies only"

  # ids/mask carry a trailing singleton so each per-row block loads directly as
  # a (seq_tile, 1) column (token index along sublanes) -- no in-kernel relayout.
  ids3 = input_ids.reshape(b, s, 1).astype(jnp.int32)
  mask3 = attention_mask.reshape(b, s, 1).astype(jnp.float32)
  gb = jnp.concatenate([gamma.reshape(1, h), beta.reshape(1, h)],
                       axis=0).astype(jnp.float32)

  # ---- VMEM budget (v7x: 64 MiB physical; keep the limit below ~56 MiB) ----
  tbl_bytes = 2 * v * h * jnp.dtype(emb_table.dtype).itemsize   # 2x buffered
  col_bytes = bt * st * 512            # (st, 1) blocks pad the lane dim to 128
  ids_mask_bytes = 2 * 2 * col_bytes   # ids + mask, double buffered
  out_bytes = 2 * bt * h * jnp.dtype(out_dtype).itemsize
  scratch_bytes = bt * h * 4 + bt * 512
  gb_bytes = 2 * 2 * h * 4
  vmem_needed = tbl_bytes + ids_mask_bytes + out_bytes + scratch_bytes + gb_bytes
  assert vmem_needed < 48 * 1024 * 1024, "embedding table too large for VMEM"
  vmem_limit = int(min(56 * 1024 * 1024, max(32 * 1024 * 1024, 2 * vmem_needed)))

  grid = (b // bt, s // st)
  out = pl.pallas_call(
      functools.partial(_fused_st5_kernel, eps=eps),
      out_shape=jax.ShapeDtypeStruct((b, h), out_dtype),
      grid_spec=pltpu.PrefetchScalarGridSpec(
          num_scalar_prefetch=0,
          grid=grid,
          in_specs=[
              pl.BlockSpec((bt, st, 1), lambda i, j: (i, j, 0)),   # ids
              pl.BlockSpec((bt, st, 1), lambda i, j: (i, j, 0)),   # mask
              pl.BlockSpec((v, h), lambda i, j: (0, 0)),           # emb table
              pl.BlockSpec((2, h), lambda i, j: (0, 0)),           # gamma/beta
          ],
          out_specs=pl.BlockSpec((bt, h), lambda i, j: (i, 0)),
          scratch_shapes=[pltpu.VMEM((bt, h), jnp.float32),        # sum(emb*mask)
                          pltpu.VMEM((bt, 1), jnp.float32)],       # sum(mask)
      ),
      compiler_params=pltpu.CompilerParams(
          dimension_semantics=("parallel", "arbitrary"),
          vmem_limit_bytes=vmem_limit),
  )(ids3, mask3, emb_table, gb)
  return out


def st5_tokenizer_encoder_forward(input_ids, attention_mask, emb_table, gamma,
                                  beta, *, eps=1e-5, seq_tile=512):
  """_ST5TokenizerEncoder.forward tensor math (post string tokenization)."""
  # TODO(synk): the HuggingFace string tokenizer has no tensor/Pallas
  # equivalent; input_ids / attention_mask are consumed directly.
  # TODO(synk): the pretrained T5 self-attention/FFN blocks are not
  # re-implemented; the embedding+LayerNorm front-end stands in for
  # model_output.last_hidden_state.
  return st5_sentence_embeddings(input_ids, attention_mask, emb_table, gamma,
                                 beta, eps=eps, seq_tile=seq_tile)


# ----------------------------------------------------------------------------
# Pure-JAX reference
# ----------------------------------------------------------------------------
def _reference(input_ids, attention_mask, emb_table, gamma, beta, eps=1e-5):
  x = emb_table.astype(jnp.float32)[input_ids]               # (B, S, H)
  mean = jnp.mean(x, axis=-1, keepdims=True)
  centered = x - mean
  var = jnp.mean(centered * centered, axis=-1, keepdims=True)
  tok = centered * jax.lax.rsqrt(var + eps) * gamma + beta
  mask = attention_mask[..., None].astype(jnp.float32)
  sum_emb = jnp.sum(tok * mask, axis=1)                      # (B, H)
  sum_mask = jnp.clip(jnp.sum(mask, axis=1), 1e-9, None)     # (B, 1)
  sent = sum_emb / sum_mask
  norm = jnp.sqrt(jnp.sum(sent * sent, axis=-1, keepdims=True))
  return sent / jnp.maximum(norm, 1e-12)


if __name__ == "__main__":
  # Small shapes consistent with the module (max_seq_length<=512, toy vocab).
  B, S, V, H = 4, 128, 512, 128
  key = jax.random.PRNGKey(0)
  k_emb, k_ids, k_len = jax.random.split(key, 3)

  emb_table = jax.random.normal(k_emb, (V, H), dtype=jnp.float32)
  emb_table = emb_table.at[0].set(0.0)                       # padding_idx = 0
  emb_table = emb_table.astype(jnp.bfloat16)                 # bf16-resident table
  gamma = jnp.ones((H,), dtype=jnp.float32)
  beta = jnp.zeros((H,), dtype=jnp.float32)

  # Synthetic tokenizer output: padded batch + matching attention mask.
  input_ids = jax.random.randint(k_ids, (B, S), 1, V).astype(jnp.int32)
  lengths = jax.random.randint(k_len, (B,), S // 2, S + 1)
  positions = jnp.arange(S)[None, :]
  attention_mask = (positions < lengths[:, None]).astype(jnp.int32)
  input_ids = jnp.where(attention_mask == 1, input_ids, 0)

  sent_emb = st5_tokenizer_encoder_forward(input_ids, attention_mask,
                                           emb_table, gamma, beta)
  sent_emb = jax.block_until_ready(sent_emb)

  ref_sent = _reference(input_ids, attention_mask, emb_table, gamma, beta)
  assert sent_emb.shape == (B, H), sent_emb.shape
  max_err = float(jnp.max(jnp.abs(sent_emb - ref_sent)))
  assert jnp.allclose(sent_emb, ref_sent, atol=3e-5, rtol=3e-5), max_err

  print("KERNEL_OK")
</pallas_src>

<mosaic_0001>
module attributes {stable_mosaic.version = 11 : i64} {
  func.func @_fused_st5_kernel(%arg0: i32, %arg1: i32, %arg2: memref<4x128x1xi32, #tpu.memory_space<vmem>>, %arg3: memref<4x128x1xf32, #tpu.memory_space<vmem>>, %arg4: memref<512x128xbf16, #tpu.memory_space<vmem>>, %arg5: memref<2x128xf32, #tpu.memory_space<vmem>>, %arg6: memref<4x128xf32, #tpu.memory_space<vmem>>, %arg7: memref<4x128xf32, #tpu.memory_space<vmem>>, %arg8: memref<4x1xf32, #tpu.memory_space<vmem>>) attributes {dimension_semantics = [#tpu.dimension_semantics<parallel>, #tpu.dimension_semantics<arbitrary>], iteration_bounds = array<i64: 1, 1>, scalar_prefetch = 0 : i64, scratch_operands = 2 : i64, tpu.core_type = #tpu.core_type<tc>, window_params = [{transform_indices = @transform_0, window_bounds = array<i64: 4, 128, 1>}, {transform_indices = @transform_1, window_bounds = array<i64: 4, 128, 1>}, {pipeline_mode = #tpu.pipeline_mode<synchronous>, transform_indices = @transform_2, window_bounds = array<i64: 512, 128>}, {pipeline_mode = #tpu.pipeline_mode<synchronous>, transform_indices = @transform_3, window_bounds = array<i64: 2, 128>}, {transform_indices = @transform_4, window_bounds = array<i64: 4, 128>}]} {
    %c0_i32 = arith.constant 0 : i32
    %0 = arith.cmpi eq, %arg1, %c0_i32 : i32
    %1 = arith.extui %0 : i1 to i32
    %c0_i32_0 = arith.constant 0 : i32
    %2 = arith.cmpi ne, %1, %c0_i32_0 : i32
    scf.if %2 {
      %cst_76 = arith.constant 0.000000e+00 : f32
      %166 = vector.broadcast %cst_76 : f32 to vector<4x128xf32>
      %c0_77 = arith.constant 0 : index
      %c0_78 = arith.constant 0 : index
      %167 = vector.load %arg7[%c0_77, %c0_78] : memref<4x128xf32, #tpu.memory_space<vmem>>, vector<4x128xf32>
      tpu.vector_store %arg7[%c0_77, %c0_78], %166 {strides = array<i32>} : memref<4x128xf32, #tpu.memory_space<vmem>>, vector<4x128xf32>,
      %cst_79 = arith.constant 0.000000e+00 : f32
      %168 = vector.broadcast %cst_79 : f32 to vector<4x1xf32>
      %c0_80 = arith.constant 0 : index
      %c0_81 = arith.constant 0 : index
      %169 = vector.load %arg8[%c0_80, %c0_81] : memref<4x1xf32, #tpu.memory_space<vmem>>, vector<4x1xf32>
      tpu.vector_store %arg8[%c0_80, %c0_81], %168 {strides = array<i32>} : memref<4x1xf32, #tpu.memory_space<vmem>>, vector<4x1xf32>,
    } else {
    }
    %c0 = arith.constant 0 : index
    %c0_1 = arith.constant 0 : index
    %3 = vector.load %arg4[%c0, %c0_1] : memref<512x128xbf16, #tpu.memory_space<vmem>>, vector<512x128xbf16>
    %c0_2 = arith.constant 0 : index
    %c0_3 = arith.constant 0 : index
    %4 = vector.load %arg5[%c0_2, %c0_3] : memref<2x128xf32, #tpu.memory_space<vmem>>, vector<1x128xf32>
    %c1 = arith.constant 1 : index
    %c0_4 = arith.constant 0 : index
    %5 = vector.load %arg5[%c1, %c0_4] : memref<2x128xf32, #tpu.memory_space<vmem>>, vector<1x128xf32>
    %6 = tpu.iota {dimensions = array<i32: 1>} : vector<128x512xi32>
    %c0_5 = arith.constant 0 : index
    %c0_6 = arith.constant 0 : index
    %c0_7 = arith.constant 0 : index
    %7 = vector.load %arg2[%c0_5, %c0_6, %c0_7] : memref<4x128x1xi32, #tpu.memory_space<vmem>>, vector<1x128x1xi32>
    %8 = vector.shape_cast %7 : vector<1x128x1xi32> to vector<128x1xi32>
    %c0_8 = arith.constant 0 : index
    %c0_9 = arith.constant 0 : index
    %c0_10 = arith.constant 0 : index
    %9 = vector.load %arg3[%c0_8, %c0_9, %c0_10] : memref<4x128x1xf32, #tpu.memory_space<vmem>>, vector<1x128x1xf32>
    %10 = vector.shape_cast %9 : vector<1x128x1xf32> to vector<128x1xf32>
    %11 = vector.broadcast %8 : vector<128x1xi32> to vector<128x512xi32>
    %12 = arith.cmpi eq, %11, %6 : vector<128x512xi32>
    %cst = arith.constant 1.000000e+00 : f32
    %cst_11 = arith.constant 0.000000e+00 : f32
    %13 = vector.broadcast %cst : f32 to vector<128x512xf32>
    %14 = vector.broadcast %cst_11 : f32 to vector<128x512xf32>
    %15 = arith.select %12, %13, %14 : vector<128x512xi1>, vector<128x512xf32>
    %16 = arith.truncf %15 : vector<128x512xf32> to vector<128x512xbf16>
    %cst_12 = arith.constant dense<0.000000e+00> : vector<128x128xf32>
    %17 = tpu.matmul %16, %3, %cst_12 {dimension_numbers = #tpu.dot_dimension_numbers<[1], [0], [0], [1], [0, 0, 1, 1], [], []>} : vector<128x512xbf16>, vector<512x128xbf16>, vector<128x128xf32> -> vector<128x128xf32>
    %cst_13 = arith.constant dense<0.000000e+00> : vector<128xf32>
    %18 = vector.multi_reduction <add>, %17, %cst_13 [1] : vector<128x128xf32> to vector<128xf32>
    %19 = vector.shape_cast %18 : vector<128xf32> to vector<128x1xf32>
    %cst_14 = arith.constant 1.280000e+02 : f32
    %20 = vector.broadcast %cst_14 : f32 to vector<128x1xf32>
    %21 = arith.divf %19, %20 : vector<128x1xf32>
    %22 = vector.broadcast %21 : vector<128x1xf32> to vector<128x128xf32>
    %23 = arith.subf %17, %22 : vector<128x128xf32>
    %24 = arith.mulf %23, %23 : vector<128x128xf32>
    %cst_15 = arith.constant dense<0.000000e+00> : vector<128xf32>
    %25 = vector.multi_reduction <add>, %24, %cst_15 [1] : vector<128x128xf32> to vector<128xf32>
    %26 = vector.shape_cast %25 : vector<128xf32> to vector<128x1xf32>
    %cst_16 = arith.constant 1.280000e+02 : f32
    %27 = vector.broadcast %cst_16 : f32 to vector<128x1xf32>
    %28 = arith.divf %26, %27 : vector<128x1xf32>
    %cst_17 = arith.constant 9.99999974E-6 : f32
    %29 = vector.broadcast %cst_17 : f32 to vector<128x1xf32>
    %30 = arith.addf %28, %29 : vector<128x1xf32>
    %31 = math.rsqrt %30 : vector<128x1xf32>
    %32 = vector.broadcast %31 : vector<128x1xf32> to vector<128x128xf32>
    %33 = arith.mulf %23, %32 : vector<128x128xf32>
    %34 = vector.broadcast %4 : vector<1x128xf32> to vector<128x128xf32>
    %35 = arith.mulf %33, %34 : vector<128x128xf32>
    %36 = vector.broadcast %5 : vector<1x128xf32> to vector<128x128xf32>
    %37 = arith.addf %35, %36 : vector<128x128xf32>
    %38 = vector.broadcast %10 : vector<128x1xf32> to vector<128x128xf32>
    %39 = arith.mulf %37, %38 : vector<128x128xf32>
    %cst_18 = arith.constant dense<0.000000e+00> : vector<128xf32>
    %40 = vector.multi_reduction <add>, %39, %cst_18 [0] : vector<128x128xf32> to vector<128xf32>
    %41 = vector.shape_cast %40 : vector<128xf32> to vector<1x128xf32>
    %cst_19 = arith.constant dense<0.000000e+00> : vector<1xf32>
    %42 = vector.multi_reduction <add>, %10, %cst_19 [0] : vector<128x1xf32> to vector<1xf32>
    %43 = vector.shape_cast %42 : vector<1xf32> to vector<1x1xf32>
    %c1_20 = arith.constant 1 : index
    %c0_21 = arith.constant 0 : index
    %c0_22 = arith.constant 0 : index
    %44 = vector.load %arg2[%c1_20, %c0_21, %c0_22] : memref<4x128x1xi32, #tpu.memory_space<vmem>>, vector<1x128x1xi32>
    %45 = vector.shape_cast %44 : vector<1x128x1xi32> to vector<128x1xi32>
    %c1_23 = arith.constant 1 : index
    %c0_24 = arith.constant 0 : index
    %c0_25 = arith.constant 0 : index
    %46 = vector.load %arg3[%c1_23, %c0_24, %c0_25] : memref<4x128x1xf32, #tpu.memory_space<vmem>>, vector<1x128x1xf32>
    %47 = vector.shape_cast %46 : vector<1x128x1xf32> to vector<128x1xf32>
    %48 = vector.broadcast %45 : vector<128x1xi32> to vector<128x512xi32>
    %49 = arith.cmpi eq, %48, %6 : vector<128x512xi32>
    %cst_26 = arith.constant 1.000000e+00 : f32
    %cst_27 = arith.constant 0.000000e+00 : f32
    %50 = vector.broadcast %cst_26 : f32 to vector<128x512xf32>
    %51 = vector.broadcast %cst_27 : f32 to vector<128x512xf32>
    %52 = arith.select %49, %50, %51 : vector<128x512xi1>, vector<128x512xf32>
    %53 = arith.truncf %52 : vector<128x512xf32> to vector<128x512xbf16>
    %cst_28 = arith.constant dense<0.000000e+00> : vector<128x128xf32>
    %54 = tpu.matmul %53, %3, %cst_28 {dimension_numbers = #tpu.dot_dimension_numbers<[1], [0], [0], [1], [0, 0, 1, 1], [], []>} : vector<128x512xbf16>, vector<512x128xbf16>, vector<128x128xf32> -> vector<128x128xf32>
    %cst_29 = arith.constant dense<0.000000e+00> : vector<128xf32>
    %55 = vector.multi_reduction <add>, %54, %cst_29 [1] : vector<128x128xf32> to vector<128xf32>
    %56 = vector.shape_cast %55 : vector<128xf32> to vector<128x1xf32>
    %cst_30 = arith.constant 1.280000e+02 : f32
    %57 = vector.broadcast %cst_30 : f32 to vector<128x1xf32>
    %58 = arith.divf %56, %57 : vector<128x1xf32>
    %59 = vector.broadcast %58 : vector<128x1xf32> to vector<128x128xf32>
    %60 = arith.subf %54, %59 : vector<128x128xf32>
    %61 = arith.mulf %60, %60 : vector<128x128xf32>
    %cst_31 = arith.constant dense<0.000000e+00> : vector<128xf32>
    %62 = vector.multi_reduction <add>, %61, %cst_31 [1] : vector<128x128xf32> to vector<128xf32>
    %63 = vector.shape_cast %62 : vector<128xf32> to vector<128x1xf32>
    %cst_32 = arith.constant 1.280000e+02 : f32
    %64 = vector.broadcast %cst_32 : f32 to vector<128x1xf32>
    %65 = arith.divf %63, %64 : vector<128x1xf32>
    %cst_33 = arith.constant 9.99999974E-6 : f32
    %66 = vector.broadcast %cst_33 : f32 to vector<128x1xf32>
    %67 = arith.addf %65, %66 : vector<128x1xf32>
    %68 = math.rsqrt %67 : vector<128x1xf32>
    %69 = vector.broadcast %68 : vector<128x1xf32> to vector<128x128xf32>
    %70 = arith.mulf %60, %69 : vector<128x128xf32>
    %71 = vector.broadcast %4 : vector<1x128xf32> to vector<128x128xf32>
    %72 = arith.mulf %70, %71 : vector<128x128xf32>
    %73 = vector.broadcast %5 : vector<1x128xf32> to vector<128x128xf32>
    %74 = arith.addf %72, %73 : vector<128x128xf32>
    %75 = vector.broadcast %47 : vector<128x1xf32> to vector<128x128xf32>
    %76 = arith.mulf %74, %75 : vector<128x128xf32>
    %cst_34 = arith.constant dense<0.000000e+00> : vector<128xf32>
    %77 = vector.multi_reduction <add>, %76, %cst_34 [0] : vector<128x128xf32> to vector<128xf32>
    %78 = vector.shape_cast %77 : vector<128xf32> to vector<1x128xf32>
    %cst_35 = arith.constant dense<0.000000e+00> : vector<1xf32>
    %79 = vector.multi_reduction <add>, %47, %cst_35 [0] : vector<128x1xf32> to vector<1xf32>
    %80 = vector.shape_cast %79 : vector<1xf32> to vector<1x1xf32>
    %c2 = arith.constant 2 : index
    %c0_36 = arith.constant 0 : index
    %c0_37 = arith.constant 0 : index
    %81 = vector.load %arg2[%c2, %c0_36, %c0_37] : memref<4x128x1xi32, #tpu.memory_space<vmem>>, vector<1x128x1xi32>
    %82 = vector.shape_cast %81 : vector<1x128x1xi32> to vector<128x1xi32>
    %c2_38 = arith.constant 2 : index
    %c0_39 = arith.constant 0 : index
    %c0_40 = arith.constant 0 : index
    %83 = vector.load %arg3[%c2_38, %c0_39, %c0_40] : memref<4x128x1xf32, #tpu.memory_space<vmem>>, vector<1x128x1xf32>
    %84 = vector.shape_cast %83 : vector<1x128x1xf32> to vector<128x1xf32>
    %85 = vector.broadcast %82 : vector<128x1xi32> to vector<128x512xi32>
    %86 = arith.cmpi eq, %85, %6 : vector<128x512xi32>
    %cst_41 = arith.constant 1.000000e+00 : f32
    %cst_42 = arith.constant 0.000000e+00 : f32
    %87 = vector.broadcast %cst_41 : f32 to vector<128x512xf32>
    %88 = vector.broadcast %cst_42 : f32 to vector<128x512xf32>
    %89 = arith.select %86, %87, %88 : vector<128x512xi1>, vector<128x512xf32>
    %90 = arith.truncf %89 : vector<128x512xf32> to vector<128x512xbf16>
    %cst_43 = arith.constant dense<0.000000e+00> : vector<128x128xf32>
    %91 = tpu.matmul %90, %3, %cst_43 {dimension_numbers = #tpu.dot_dimension_numbers<[1], [0], [0], [1], [0, 0, 1, 1], [], []>} : vector<128x512xbf16>, vector<512x128xbf16>, vector<128x128xf32> -> vector<128x128xf32>
    %cst_44 = arith.constant dense<0.000000e+00> : vector<128xf32>
    %92 = vector.multi_reduction <add>, %91, %cst_44 [1] : vector<128x128xf32> to vector<128xf32>
    %93 = vector.shape_cast %92 : vector<128xf32> to vector<128x1xf32>
    %cst_45 = arith.constant 1.280000e+02 : f32
    %94 = vector.broadcast %cst_45 : f32 to vector<128x1xf32>
    %95 = arith.divf %93, %94 : vector<128x1xf32>
    %96 = vector.broadcast %95 : vector<128x1xf32> to vector<128x128xf32>
    %97 = arith.subf %91, %96 : vector<128x128xf32>
    %98 = arith.mulf %97, %97 : vector<128x128xf32>
    %cst_46 = arith.constant dense<0.000000e+00> : vector<128xf32>
    %99 = vector.multi_reduction <add>, %98, %cst_46 [1] : vector<128x128xf32> to vector<128xf32>
    %100 = vector.shape_cast %99 : vector<128xf32> to vector<128x1xf32>
    %cst_47 = arith.constant 1.280000e+02 : f32
    %101 = vector.broadcast %cst_47 : f32 to vector<128x1xf32>
    %102 = arith.divf %100, %101 : vector<128x1xf32>
    %cst_48 = arith.constant 9.99999974E-6 : f32
    %103 = vector.broadcast %cst_48 : f32 to vector<128x1xf32>
    %104 = arith.addf %102, %103 : vector<128x1xf32>
    %105 = math.rsqrt %104 : vector<128x1xf32>
    %106 = vector.broadcast %105 : vector<128x1xf32> to vector<128x128xf32>
    %107 = arith.mulf %97, %106 : vector<128x128xf32>
    %108 = vector.broadcast %4 : vector<1x128xf32> to vector<128x128xf32>
    %109 = arith.mulf %107, %108 : vector<128x128xf32>
    %110 = vector.broadcast %5 : vector<1x128xf32> to vector<128x128xf32>
    %111 = arith.addf %109, %110 : vector<128x128xf32>
    %112 = vector.broadcast %84 : vector<128x1xf32> to vector<128x128xf32>
    %113 = arith.mulf %111, %112 : vector<128x128xf32>
    %cst_49 = arith.constant dense<0.000000e+00> : vector<128xf32>
    %114 = vector.multi_reduction <add>, %113, %cst_49 [0] : vector<128x128xf32> to vector<128xf32>
    %115 = vector.shape_cast %114 : vector<128xf32> to vector<1x128xf32>
    %cst_50 = arith.constant dense<0.000000e+00> : vector<1xf32>
    %116 = vector.multi_reduction <add>, %84, %cst_50 [0] : vector<128x1xf32> to vector<1xf32>
    %117 = vector.shape_cast %116 : vector<1xf32> to vector<1x1xf32>
    %c3 = arith.constant 3 : index
    %c0_51 = arith.constant 0 : index
    %c0_52 = arith.constant 0 : index
    %118 = vector.load %arg2[%c3, %c0_51, %c0_52] : memref<4x128x1xi32, #tpu.memory_space<vmem>>, vector<1x128x1xi32>
    %119 = vector.shape_cast %118 : vector<1x128x1xi32> to vector<128x1xi32>
    %c3_53 = arith.constant 3 : index
    %c0_54 = arith.constant 0 : index
    %c0_55 = arith.constant 0 : index
    %120 = vector.load %arg3[%c3_53, %c0_54, %c0_55] : memref<4x128x1xf32, #tpu.memory_space<vmem>>, vector<1x128x1xf32>
    %121 = vector.shape_cast %120 : vector<1x128x1xf32> to vector<128x1xf32>
    %122 = vector.broadcast %119 : vector<128x1xi32> to vector<128x512xi32>
    %123 = arith.cmpi eq, %122, %6 : vector<128x512xi32>
    %cst_56 = arith.constant 1.000000e+00 : f32
    %cst_57 = arith.constant 0.000000e+00 : f32
    %124 = vector.broadcast %cst_56 : f32 to vector<128x512xf32>
    %125 = vector.broadcast %cst_57 : f32 to vector<128x512xf32>
    %126 = arith.select %123, %124, %125 : vector<128x512xi1>, vector<128x512xf32>
    %127 = arith.truncf %126 : vector<128x512xf32> to vector<128x512xbf16>
    %cst_58 = arith.constant dense<0.000000e+00> : vector<128x128xf32>
    %128 = tpu.matmul %127, %3, %cst_58 {dimension_numbers = #tpu.dot_dimension_numbers<[1], [0], [0], [1], [0, 0, 1, 1], [], []>} : vector<128x512xbf16>, vector<512x128xbf16>, vector<128x128xf32> -> vector<128x128xf32>
    %cst_59 = arith.constant dense<0.000000e+00> : vector<128xf32>
    %129 = vector.multi_reduction <add>, %128, %cst_59 [1] : vector<128x128xf32> to vector<128xf32>
    %130 = vector.shape_cast %129 : vector<128xf32> to vector<128x1xf32>
    %cst_60 = arith.constant 1.280000e+02 : f32
    %131 = vector.broadcast %cst_60 : f32 to vector<128x1xf32>
    %132 = arith.divf %130, %131 : vector<128x1xf32>
    %133 = vector.broadcast %132 : vector<128x1xf32> to vector<128x128xf32>
    %134 = arith.subf %128, %133 : vector<128x128xf32>
    %135 = arith.mulf %134, %134 : vector<128x128xf32>
    %cst_61 = arith.constant dense<0.000000e+00> : vector<128xf32>
    %136 = vector.multi_reduction <add>, %135, %cst_61 [1] : vector<128x128xf32> to vector<128xf32>
    %137 = vector.shape_cast %136 : vector<128xf32> to vector<128x1xf32>
    %cst_62 = arith.constant 1.280000e+02 : f32
    %138 = vector.broadcast %cst_62 : f32 to vector<128x1xf32>
    %139 = arith.divf %137, %138 : vector<128x1xf32>
    %cst_63 = arith.constant 9.99999974E-6 : f32
    %140 = vector.broadcast %cst_63 : f32 to vector<128x1xf32>
    %141 = arith.addf %139, %140 : vector<128x1xf32>
    %142 = math.rsqrt %141 : vector<128x1xf32>
    %143 = vector.broadcast %142 : vector<128x1xf32> to vector<128x128xf32>
    %144 = arith.mulf %134, %143 : vector<128x128xf32>
    %145 = vector.broadcast %4 : vector<1x128xf32> to vector<128x128xf32>
    %146 = arith.mulf %144, %145 : vector<128x128xf32>
    %147 = vector.broadcast %5 : vector<1x128xf32> to vector<128x128xf32>
    %148 = arith.addf %146, %147 : vector<128x128xf32>
    %149 = vector.broadcast %121 : vector<128x1xf32> to vector<128x128xf32>
    %150 = arith.mulf %148, %149 : vector<128x128xf32>
    %cst_64 = arith.constant dense<0.000000e+00> : vector<128xf32>
    %151 = vector.multi_reduction <add>, %150, %cst_64 [0] : vector<128x128xf32> to vector<128xf32>
    %152 = vector.shape_cast %151 : vector<128xf32> to vector<1x128xf32>
    %cst_65 = arith.constant dense<0.000000e+00> : vector<1xf32>
    %153 = vector.multi_reduction <add>, %121, %cst_65 [0] : vector<128x1xf32> to vector<1xf32>
    %154 = vector.shape_cast %153 : vector<1xf32> to vector<1x1xf32>
    %c0_66 = arith.constant 0 : index
    %c0_67 = arith.constant 0 : index
    %155 = vector.load %arg7[%c0_66, %c0_67] : memref<4x128xf32, #tpu.memory_space<vmem>>, vector<4x128xf32>
    %156 = tpu.concatenate %41, %78, %115, %152 in 0 : vector<1x128xf32>, vector<1x128xf32>, vector<1x128xf32>, vector<1x128xf32> -> vector<4x128xf32>
    %157 = arith.addf %155, %156 : vector<4x128xf32>
    %c0_68 = arith.constant 0 : index
    %c0_69 = arith.constant 0 : index
    %158 = vector.load %arg7[%c0_68, %c0_69] : memref<4x128xf32, #tpu.memory_space<vmem>>, vector<4x128xf32>
    tpu.vector_store %arg7[%c0_68, %c0_69], %157 {strides = array<i32>} : memref<4x128xf32, #tpu.memory_space<vmem>>, vector<4x128xf32>,
    %c0_70 = arith.constant 0 : index
    %c0_71 = arith.constant 0 : index
    %159 = vector.load %arg8[%c0_70, %c0_71] : memref<4x1xf32, #tpu.memory_space<vmem>>, vector<4x1xf32>
    %160 = tpu.concatenate %43, %80, %117, %154 in 0 : vector<1x1xf32>, vector<1x1xf32>, vector<1x1xf32>, vector<1x1xf32> -> vector<4x1xf32>
    %161 = arith.addf %159, %160 : vector<4x1xf32>
    %c0_72 = arith.constant 0 : index
    %c0_73 = arith.constant 0 : index
    %162 = vector.load %arg8[%c0_72, %c0_73] : memref<4x1xf32, #tpu.memory_space<vmem>>, vector<4x1xf32>
    tpu.vector_store %arg8[%c0_72, %c0_73], %161 {strides = array<i32>} : memref<4x1xf32, #tpu.memory_space<vmem>>, vector<4x1xf32>,
    %c0_i32_74 = arith.constant 0 : i32
    %163 = arith.cmpi eq, %arg1, %c0_i32_74 : i32
    %164 = arith.extui %163 : i1 to i32
    %c0_i32_75 = arith.constant 0 : i32
    %165 = arith.cmpi ne, %164, %c0_i32_75 : i32
    scf.if %165 {
      %c0_76 = arith.constant 0 : index
      %c0_77 = arith.constant 0 : index
      %166 = vector.load %arg7[%c0_76, %c0_77] : memref<4x128xf32, #tpu.memory_space<vmem>>, vector<4x128xf32>
      %c0_78 = arith.constant 0 : index
      %c0_79 = arith.constant 0 : index
      %167 = vector.load %arg8[%c0_78, %c0_79] : memref<4x1xf32, #tpu.memory_space<vmem>>, vector<4x1xf32>
      %cst_80 = arith.constant 9.99999971E-10 : f32
      %168 = vector.broadcast %cst_80 : f32 to vector<4x1xf32>
      %169 = arith.maximumf %167, %168 : vector<4x1xf32>
      %170 = vector.broadcast %169 : vector<4x1xf32> to vector<4x128xf32>
      %171 = arith.divf %166, %170 : vector<4x128xf32>
      %172 = arith.mulf %171, %171 : vector<4x128xf32>
      %cst_81 = arith.constant dense<0.000000e+00> : vector<4xf32>
      %173 = vector.multi_reduction <add>, %172, %cst_81 [1] : vector<4x128xf32> to vector<4xf32>
      %174 = vector.shape_cast %173 : vector<4xf32> to vector<4x1xf32>
      %175 = math.sqrt %174 : vector<4x1xf32>
      %cst_82 = arith.constant 9.99999996E-13 : f32
      %176 = vector.broadcast %cst_82 : f32 to vector<4x1xf32>
      %177 = arith.maximumf %175, %176 : vector<4x1xf32>
      %178 = vector.broadcast %177 : vector<4x1xf32> to vector<4x128xf32>
      %179 = arith.divf %171, %178 : vector<4x128xf32>
      %c0_83 = arith.constant 0 : index
      %c0_84 = arith.constant 0 : index
      %180 = vector.load %arg6[%c0_83, %c0_84] : memref<4x128xf32, #tpu.memory_space<vmem>>, vector<4x128xf32>
      tpu.vector_store %arg6[%c0_83, %c0_84], %179 {strides = array<i32>} : memref<4x128xf32, #tpu.memory_space<vmem>>, vector<4x128xf32>,
    } else {
    }
    return
  }
  func.func @transform_0(%arg0: i32, %arg1: i32) -> (i32, i32, i32) {
    %c0_i32 = arith.constant 0 : i32
    %c0_i32_0 = arith.constant 0 : i32
    return %arg0, %arg1, %c0_i32 : i32, i32, i32
  }
  func.func @transform_1(%arg0: i32, %arg1: i32) -> (i32, i32, i32) {
    %c0_i32 = arith.constant 0 : i32
    %c0_i32_0 = arith.constant 0 : i32
    return %arg0, %arg1, %c0_i32 : i32, i32, i32
  }
  func.func @transform_2(%arg0: i32, %arg1: i32) -> (i32, i32) {
    %c0_i32 = arith.constant 0 : i32
    %c0_i32_0 = arith.constant 0 : i32
    %c0_i32_1 = arith.constant 0 : i32
    return %c0_i32, %c0_i32_0 : i32, i32
  }
  func.func @transform_3(%arg0: i32, %arg1: i32) -> (i32, i32) {
    %c0_i32 = arith.constant 0 : i32
    %c0_i32_0 = arith.constant 0 : i32
    %c0_i32_1 = arith.constant 0 : i32
    return %c0_i32, %c0_i32_0 : i32, i32
  }
  func.func @transform_4(%arg0: i32, %arg1: i32) -> (i32, i32) {
    %c0_i32 = arith.constant 0 : i32
    %c0_i32_0 = arith.constant 0 : i32
    return %arg0, %c0_i32 : i32, i32
  }
}

</mosaic_0001>

<llo_original>
// kernel: tpu_custom_call.1
$region0: #{tpu_custom_call.1}
  #allocation0 [shape = 'u32[]', space=smem, size = 0x4, offset = 0x4, fixed_abs, tag = 'smem constant byte address 0x4 - core index']
  #allocation1 [shape = 'u32[144,128]{1,0:T(1,128)}', space=vmem, size = 0x12000, scoped, tag = 'internal scratch']
  #allocation2 [shape = 'f32[4,128]{1,0:T(4,128)}', space=vmem, size = 0x800, scoped, tag = 'scratch operand']
  #allocation3 [shape = 'f32[4,1]{1,0:T(4,128)}', space=vmem, size = 0x800, scoped, tag = 'scratch operand']
  %s0 = inlined_call_operand.vmem [shape: s32[4,128,1], index: 0, kind: input, shape index: {}]
  %s1 = inlined_call_operand.vmem [shape: f32[4,128,1], index: 1, kind: input, shape index: {}]
  %s2 = inlined_call_operand.vmem [shape: bf16[512,128], index: 2, kind: input, shape index: {}]
  %s3 = inlined_call_operand.vmem [shape: f32[2,128], index: 3, kind: input, shape index: {}]
  %s4 = inlined_call_operand.hbm [shape: f32[4,128], index: 4, kind: output, shape index: {}]
  %s5 = sld [smem:[#allocation0]]
  $region34: #{tpu_custom_call.1} parent=0
    _
  %s7 = ssub.s32 1, %s5
  %s8 = scalar_select 0, %s7, %s5
  $region1: #{tpu_custom_call.1} parent=0
    #allocation4 [shape = 'u8[2048]{0}', space=vmem, size = 0x800, scoped, tag = 'output window, operand 0, single buffered']
    #allocation5 [shape = 's32[1]{0}', space=sflag, size = 0x4, scoped, tag = 'scoped memory for tpu_custom_call.1']
    %9 = vsyncpa [#allocation5], 0
    // Predicated region
    $region2: #{tpu_custom_call.1} parent=1 // pred_check
      _
    $region3: #{tpu_custom_call.1} parent=1 // pred_check_branch
      %11 = sbr.rel (0) target = $region5
    $region4: #{tpu_custom_call.1} parent=1 // pred_region
      _
    $region5: #{tpu_custom_call.1} parent=1 // pred_fallthru
      _
    // Predicated region
    $region6: #{tpu_custom_call.1} parent=1 // pred_check
      _
    $region7: #{tpu_custom_call.1} parent=1 // pred_check_branch
      %13 = sbr.rel (0) target = $region9
    $region8: #{tpu_custom_call.1} parent=1 // pred_region
      _
    $region9: #{tpu_custom_call.1} parent=1 // pred_fallthru
      _
    // Predicated region
    $region10: #{tpu_custom_call.1} parent=1 // pred_check
      _
    $region11: #{tpu_custom_call.1} parent=1 // pred_check_branch
      %15 = sbr.rel (0) target = $region13
    $region12: #{tpu_custom_call.1} parent=1 // pred_region
      _
    $region13: #{tpu_custom_call.1} parent=1 // pred_fallthru
      _
    // Predicated region
    $region14: #{tpu_custom_call.1} parent=1 // pred_check
      _
    $region15: #{tpu_custom_call.1} parent=1 // pred_check_branch
      %17 = sbr.rel (0) target = $region17
    $region16: #{tpu_custom_call.1} parent=1 // pred_region
      _
    $region17: #{tpu_custom_call.1} parent=1 // pred_fallthru
      _
    %p19 = scmp.eq.s32.totalorder 0, 0
    // Predicated region
    $region18: #{tpu_custom_call.1} parent=1 // pred_check
      %p20 = pneg %p19
    $region19: #{tpu_custom_call.1} parent=1 // pred_check_branch
      %22 = sbr.rel (%p20) target = $region21
    $region20: #{tpu_custom_call.1} parent=1 // pred_region
      %23 = vst [vmem:[#allocation2] sm:$0xf] 0.0
      %vm24 = vcmask 3072
      %25 = vst.msk [vmem:[#allocation3] sm:$0xf] %vm24, 0.0
    $region21: #{tpu_custom_call.1} parent=1 // pred_fallthru
      _
    %v26 = vld [vmem:[%s2] sm:$0xf]
    %v27 = vld [vmem:[%s2 + $0x4] sm:$0xf]
    %v28 = vld [vmem:[%s2 + $0x8] sm:$0xf]
    %v29 = vld [vmem:[%s2 + $0xc] sm:$0xf]
    %v30 = vld [vmem:[%s2 + $0x10] sm:$0xf]
    %v31 = vld [vmem:[%s2 + $0x14] sm:$0xf]
    %v32 = vld [vmem:[%s2 + $0x18] sm:$0xf]
    %v33 = vld [vmem:[%s2 + $0x1c] sm:$0xf]
    %v34 = vld [vmem:[%s2 + $0x20] sm:$0xf]
    %v35 = vld [vmem:[%s2 + $0x24] sm:$0xf]
    %v36 = vld [vmem:[%s2 + $0x28] sm:$0xf]
    %v37 = vld [vmem:[%s2 + $0x2c] sm:$0xf]
    %v38 = vld [vmem:[%s2 + $0x30] sm:$0xf]
    %v39 = vld [vmem:[%s2 + $0x34] sm:$0xf]
    %v40 = vld [vmem:[%s2 + $0x38] sm:$0xf]
    %v41 = vld [vmem:[%s2 + $0x3c] sm:$0xf]
    %v42 = vld [vmem:[%s2 + $0x40] sm:$0xf]
    %v43 = vld [vmem:[%s2 + $0x44] sm:$0xf]
    %v44 = vld [vmem:[%s2 + $0x48] sm:$0xf]
    %v45 = vld [vmem:[%s2 + $0x4c] sm:$0xf]
    %v46 = vld [vmem:[%s2 + $0x50] sm:$0xf]
    %v47 = vld [vmem:[%s2 + $0x54] sm:$0xf]
    %v48 = vld [vmem:[%s2 + $0x58] sm:$0xf]
    %v49 = vld [vmem:[%s2 + $0x5c] sm:$0xf]
    %v50 = vld [vmem:[%s2 + $0x60] sm:$0xf]
    %v51 = vld [vmem:[%s2 + $0x64] sm:$0xf]
    %v52 = vld [vmem:[%s2 + $0x68] sm:$0xf]
    %v53 = vld [vmem:[%s2 + $0x6c] sm:$0xf]
    %v54 = vld [vmem:[%s2 + $0x70] sm:$0xf]
    %v55 = vld [vmem:[%s2 + $0x74] sm:$0xf]
    %v56 = vld [vmem:[%s2 + $0x78] sm:$0xf]
    %v57 = vld [vmem:[%s2 + $0x7c] sm:$0xf]
    %v58 = vld [vmem:[%s2 + $0x80] sm:$0xf]
    %v59 = vld [vmem:[%s2 + $0x84] sm:$0xf]
    %v60 = vld [vmem:[%s2 + $0x88] sm:$0xf]
    %v61 = vld [vmem:[%s2 + $0x8c] sm:$0xf]
    %v62 = vld [vmem:[%s2 + $0x90] sm:$0xf]
    %v63 = vld [vmem:[%s2 + $0x94] sm:$0xf]
    %v64 = vld [vmem:[%s2 + $0x98] sm:$0xf]
    %v65 = vld [vmem:[%s2 + $0x9c] sm:$0xf]
    %v66 = vld [vmem:[%s2 + $0xa0] sm:$0xf]
    %v67 = vld [vmem:[%s2 + $0xa4] sm:$0xf]
    %v68 = vld [vmem:[%s2 + $0xa8] sm:$0xf]
    %v69 = vld [vmem:[%s2 + $0xac] sm:$0xf]
    %v70 = vld [vmem:[%s2 + $0xb0] sm:$0xf]
    %v71 = vld [vmem:[%s2 + $0xb4] sm:$0xf]
    %v72 = vld [vmem:[%s2 + $0xb8] sm:$0xf]
    %v73 = vld [vmem:[%s2 + $0xbc] sm:$0xf]
    %v74 = vld [vmem:[%s2 + $0xc0] sm:$0xf]
    %v75 = vld [vmem:[%s2 + $0xc4] sm:$0xf]
    %v76 = vld [vmem:[%s2 + $0xc8] sm:$0xf]
    %v77 = vld [vmem:[%s2 + $0xcc] sm:$0xf]
    %v78 = vld [vmem:[%s2 + $0xd0] sm:$0xf]
    %v79 = vld [vmem:[%s2 + $0xd4] sm:$0xf]
    %v80 = vld [vmem:[%s2 + $0xd8] sm:$0xf]
    %v81 = vld [vmem:[%s2 + $0xdc] sm:$0xf]
    %v82 = vld [vmem:[%s2 + $0xe0] sm:$0xf]
    %v83 = vld [vmem:[%s2 + $0xe4] sm:$0xf]
    %v84 = vld [vmem:[%s2 + $0xe8] sm:$0xf]
    %v85 = vld [vmem:[%s2 + $0xec] sm:$0xf]
    %v86 = vld [vmem:[%s2 + $0xf0] sm:$0xf]
    %v87 = vld [vmem:[%s2 + $0xf4] sm:$0xf]
    %v88 = vld [vmem:[%s2 + $0xf8] sm:$0xf]
    %v89 = vld [vmem:[%s2 + $0xfc] sm:$0xf]
    %v90 = vld [vmem:[%s3] sm:$0x1]
    %v91 = vld [vmem:[%s3 + $0x1] sm:$0x1]
    %v92 = vlaneseq
    %v93 = vand.u32 %v92, 127
    %v94 = vadd.s32 %v93, 128
    %v95 = vadd.s32 %v93, 256
    %v96 = vadd.s32 %v93, 384
    %v97 = vld [vmem:[%s0] sm:$0xff]
    %v98 = vld [vmem:[%s0 + $0x8] sm:$0xff]
    %v99 = vld [vmem:[%s0 + $0x10] sm:$0xff]
    %v100 = vld [vmem:[%s0 + $0x18] sm:$0xff]
    %v101 = vld [vmem:[%s0 + $0x20] sm:$0xff]
    %v102 = vld [vmem:[%s0 + $0x28] sm:$0xff]
    %v103 = vld [vmem:[%s0 + $0x30] sm:$0xff]
    %v104 = vld [vmem:[%s0 + $0x38] sm:$0xff]
    %v105 = vld [vmem:[%s0 + $0x40] sm:$0xff]
    %v106 = vld [vmem:[%s0 + $0x48] sm:$0xff]
    %v107 = vld [vmem:[%s0 + $0x50] sm:$0xff]
    %v108 = vld [vmem:[%s0 + $0x58] sm:$0xff]
    %v109 = vld [vmem:[%s0 + $0x60] sm:$0xff]
    %v110 = vld [vmem:[%s0 + $0x68] sm:$0xff]
    %v111 = vld [vmem:[%s0 + $0x70] sm:$0xff]
    %v112 = vld [vmem:[%s0 + $0x78] sm:$0xff]
    %v113 = vld [vmem:[%s1] sm:$0xff]
    %v114 = vld [vmem:[%s1 + $0x8] sm:$0xff]
    %v115 = vld [vmem:[%s1 + $0x10] sm:$0xff]
    %v116 = vld [vmem:[%s1 + $0x18] sm:$0xff]
    %v117 = vld [vmem:[%s1 + $0x20] sm:$0xff]
    %v118 = vld [vmem:[%s1 + $0x28] sm:$0xff]
    %v119 = vld [vmem:[%s1 + $0x30] sm:$0xff]
    %v120 = vld [vmem:[%s1 + $0x38] sm:$0xff]
    %v121 = vld [vmem:[%s1 + $0x40] sm:$0xff]
    %v122 = vld [vmem:[%s1 + $0x48] sm:$0xff]
    %v123 = vld [vmem:[%s1 + $0x50] sm:$0xff]
    %v124 = vld [vmem:[%s1 + $0x58] sm:$0xff]
    %v125 = vld [vmem:[%s1 + $0x60] sm:$0xff]
    %v126 = vld [vmem:[%s1 + $0x68] sm:$0xff]
    %v127 = vld [vmem:[%s1 + $0x70] sm:$0xff]
    %v128 = vld [vmem:[%s1 + $0x78] sm:$0xff]
    %129 = vset.pattern.permute.xlu0 0
    %130 = vperm.xlu0 %129, %v97
    %v131 = vpop.permute.xlu0 %130
    %132 = vset.pattern.permute.xlu0 0
    %133 = vperm.xlu0 %132, %v98
    %v134 = vpop.permute.xlu0 %133
    %135 = vset.pattern.permute.xlu0 0
    %136 = vperm.xlu0 %135, %v99
    %v137 = vpop.permute.xlu0 %136
    %138 = vset.pattern.permute.xlu0 0
    %139 = vperm.xlu0 %138, %v100
    %v140 = vpop.permute.xlu0 %139
    %141 = vset.pattern.permute.xlu0 0
    %142 = vperm.xlu0 %141, %v101
    %v143 = vpop.permute.xlu0 %142
    %144 = vset.pattern.permute.xlu0 0
    %145 = vperm.xlu0 %144, %v102
    %v146 = vpop.permute.xlu0 %145
    %147 = vset.pattern.permute.xlu0 0
    %148 = vperm.xlu0 %147, %v103
    %v149 = vpop.permute.xlu0 %148
    %150 = vset.pattern.permute.xlu0 0
    %151 = vperm.xlu0 %150, %v104
    %v152 = vpop.permute.xlu0 %151
    %153 = vset.pattern.permute.xlu0 0
    %154 = vperm.xlu0 %153, %v105
    %v155 = vpop.permute.xlu0 %154
    %156 = vset.pattern.permute.xlu0 0
    %157 = vperm.xlu0 %156, %v106
    %v158 = vpop.permute.xlu0 %157
    %159 = vset.pattern.permute.xlu0 0
    %160 = vperm.xlu0 %159, %v107
    %v161 = vpop.permute.xlu0 %160
    %162 = vset.pattern.permute.xlu0 0
    %163 = vperm.xlu0 %162, %v108
    %v164 = vpop.permute.xlu0 %163
    %165 = vset.pattern.permute.xlu0 0
    %166 = vperm.xlu0 %165, %v109
    %v167 = vpop.permute.xlu0 %166
    %168 = vset.pattern.permute.xlu0 0
    %169 = vperm.xlu0 %168, %v110
    %v170 = vpop.permute.xlu0 %169
    %171 = vset.pattern.permute.xlu0 0
    %172 = vperm.xlu0 %171, %v111
    %v173 = vpop.permute.xlu0 %172
    %174 = vset.pattern.permute.xlu0 0
    %175 = vperm.xlu0 %174, %v112
    %v176 = vpop.permute.xlu0 %175
    %vm177 = vcmp.eq.s32.totalorder %v131, %v93
    %vm178 = vcmp.eq.s32.totalorder %v131, %v94
    %vm179 = vcmp.eq.s32.totalorder %v131, %v95
    %vm180 = vcmp.eq.s32.totalorder %v131, %v96
    %vm181 = vcmp.eq.s32.totalorder %v134, %v93
    %vm182 = vcmp.eq.s32.totalorder %v134, %v94
    %vm183 = vcmp.eq.s32.totalorder %v134, %v95
    %vm184 = vcmp.eq.s32.totalorder %v134, %v96
    %vm185 = vcmp.eq.s32.totalorder %v137, %v93
    %vm186 = vcmp.eq.s32.totalorder %v137, %v94
    %vm187 = vcmp.eq.s32.totalorder %v137, %v95
    %vm188 = vcmp.eq.s32.totalorder %v137, %v96
    %vm189 = vcmp.eq.s32.totalorder %v140, %v93
    %vm190 = vcmp.eq.s32.totalorder %v140, %v94
    %vm191 = vcmp.eq.s32.totalorder %v140, %v95
    %vm192 = vcmp.eq.s32.totalorder %v140, %v96
    %vm193 = vcmp.eq.s32.totalorder %v143, %v93
    %vm194 = vcmp.eq.s32.totalorder %v143, %v94
    %vm195 = vcmp.eq.s32.totalorder %v143, %v95
    %vm196 = vcmp.eq.s32.totalorder %v143, %v96
    %vm197 = vcmp.eq.s32.totalorder %v146, %v93
    %vm198 = vcmp.eq.s32.totalorder %v146, %v94
    %vm199 = vcmp.eq.s32.totalorder %v146, %v95
    %vm200 = vcmp.eq.s32.totalorder %v146, %v96
    %vm201 = vcmp.eq.s32.totalorder %v149, %v93
    %vm202 = vcmp.eq.s32.totalorder %v149, %v94
    %vm203 = vcmp.eq.s32.totalorder %v149, %v95
    %vm204 = vcmp.eq.s32.totalorder %v149, %v96
    %vm205 = vcmp.eq.s32.totalorder %v152, %v93
    %vm206 = vcmp.eq.s32.totalorder %v152, %v94
    %vm207 = vcmp.eq.s32.totalorder %v152, %v95
    %vm208 = vcmp.eq.s32.totalorder %v152, %v96
    %vm209 = vcmp.eq.s32.totalorder %v155, %v93
    %vm210 = vcmp.eq.s32.totalorder %v155, %v94
    %vm211 = vcmp.eq.s32.totalorder %v155, %v95
    %vm212 = vcmp.eq.s32.totalorder %v155, %v96
    %vm213 = vcmp.eq.s32.totalorder %v158, %v93
    %vm214 = vcmp.eq.s32.totalorder %v158, %v94
    %vm215 = vcmp.eq.s32.totalorder %v158, %v95
    %vm216 = vcmp.eq.s32.totalorder %v158, %v96
    %vm217 = vcmp.eq.s32.totalorder %v161, %v93
    %vm218 = vcmp.eq.s32.totalorder %v161, %v94
    %vm219 = vcmp.eq.s32.totalorder %v161, %v95
    %vm220 = vcmp.eq.s32.totalorder %v161, %v96
    %vm221 = vcmp.eq.s32.totalorder %v164, %v93
    %vm222 = vcmp.eq.s32.totalorder %v164, %v94
    %vm223 = vcmp.eq.s32.totalorder %v164, %v95
    %vm224 = vcmp.eq.s32.totalorder %v164, %v96
    %vm225 = vcmp.eq.s32.totalorder %v167, %v93
    %vm226 = vcmp.eq.s32.totalorder %v167, %v94
    %vm227 = vcmp.eq.s32.totalorder %v167, %v95
    %vm228 = vcmp.eq.s32.totalorder %v167, %v96
    %vm229 = vcmp.eq.s32.totalorder %v170, %v93
    %vm230 = vcmp.eq.s32.totalorder %v170, %v94
    %vm231 = vcmp.eq.s32.totalorder %v170, %v95
    %vm232 = vcmp.eq.s32.totalorder %v170, %v96
    %vm233 = vcmp.eq.s32.totalorder %v173, %v93
    %vm234 = vcmp.eq.s32.totalorder %v173, %v94
    %vm235 = vcmp.eq.s32.totalorder %v173, %v95
    %vm236 = vcmp.eq.s32.totalorder %v173, %v96
    %vm237 = vcmp.eq.s32.totalorder %v176, %v93
    %vm238 = vcmp.eq.s32.totalorder %v176, %v94
    %vm239 = vcmp.eq.s32.totalorder %v176, %v95
    %vm240 = vcmp.eq.s32.totalorder %v176, %v96
    %v241 = vsel %vm177, 1.0, 0.0
    %v242 = vsel %vm178, 1.0, 0.0
    %v243 = vsel %vm179, 1.0, 0.0
    %v244 = vsel %vm180, 1.0, 0.0
    %v245 = vsel %vm181, 1.0, 0.0
    %v246 = vsel %vm182, 1.0, 0.0
    %v247 = vsel %vm183, 1.0, 0.0
    %v248 = vsel %vm184, 1.0, 0.0
    %v249 = vsel %vm185, 1.0, 0.0
    %v250 = vsel %vm186, 1.0, 0.0
    %v251 = vsel %vm187, 1.0, 0.0
    %v252 = vsel %vm188, 1.0, 0.0
    %v253 = vsel %vm189, 1.0, 0.0
    %v254 = vsel %vm190, 1.0, 0.0
    %v255 = vsel %vm191, 1.0, 0.0
    %v256 = vsel %vm192, 1.0, 0.0
    %v257 = vsel %vm193, 1.0, 0.0
    %v258 = vsel %vm194, 1.0, 0.0
    %v259 = vsel %vm195, 1.0, 0.0
    %v260 = vsel %vm196, 1.0, 0.0
    %v261 = vsel %vm197, 1.0, 0.0
    %v262 = vsel %vm198, 1.0, 0.0
    %v263 = vsel %vm199, 1.0, 0.0
    %v264 = vsel %vm200, 1.0, 0.0
    %v265 = vsel %vm201, 1.0, 0.0
    %v266 = vsel %vm202, 1.0, 0.0
    %v267 = vsel %vm203, 1.0, 0.0
    %v268 = vsel %vm204, 1.0, 0.0
    %v269 = vsel %vm205, 1.0, 0.0
    %v270 = vsel %vm206, 1.0, 0.0
    %v271 = vsel %vm207, 1.0, 0.0
    %v272 = vsel %vm208, 1.0, 0.0
    %v273 = vsel %vm209, 1.0, 0.0
    %v274 = vsel %vm210, 1.0, 0.0
    %v275 = vsel %vm211, 1.0, 0.0
    %v276 = vsel %vm212, 1.0, 0.0
    %v277 = vsel %vm213, 1.0, 0.0
    %v278 = vsel %vm214, 1.0, 0.0
    %v279 = vsel %vm215, 1.0, 0.0
    %v280 = vsel %vm216, 1.0, 0.0
    %v281 = vsel %vm217, 1.0, 0.0
    %v282 = vsel %vm218, 1.0, 0.0
    %v283 = vsel %vm219, 1.0, 0.0
    %v284 = vsel %vm220, 1.0, 0.0
    %v285 = vsel %vm221, 1.0, 0.0
    %v286 = vsel %vm222, 1.0, 0.0
    %v287 = vsel %vm223, 1.0, 0.0
    %v288 = vsel %vm224, 1.0, 0.0
    %v289 = vsel %vm225, 1.0, 0.0
    %v290 = vsel %vm226, 1.0, 0.0
    %v291 = vsel %vm227, 1.0, 0.0
    %v292 = vsel %vm228, 1.0, 0.0
    %v293 = vsel %vm229, 1.0, 0.0
    %v294 = vsel %vm230, 1.0, 0.0
    %v295 = vsel %vm231, 1.0, 0.0
    %v296 = vsel %vm232, 1.0, 0.0
    %v297 = vsel %vm233, 1.0, 0.0
    %v298 = vsel %vm234, 1.0, 0.0
    %v299 = vsel %vm235, 1.0, 0.0
    %v300 = vsel %vm236, 1.0, 0.0
    %v301 = vsel %vm237, 1.0, 0.0
    %v302 = vsel %vm238, 1.0, 0.0
    %v303 = vsel %vm239, 1.0, 0.0
    %v304 = vsel %vm240, 1.0, 0.0
    %v305 = vpack.c.bf16 %v245, %v241
    %v306 = vpack.c.bf16 %v246, %v242
    %v307 = vpack.c.bf16 %v247, %v243
    %v308 = vpack.c.bf16 %v248, %v244
    %v309 = vpack.c.bf16 %v253, %v249
    %v310 = vpack.c.bf16 %v254, %v250
    %v311 = vpack.c.bf16 %v255, %v251
    %v312 = vpack.c.bf16 %v256, %v252
    %v313 = vpack.c.bf16 %v261, %v257
    %v314 = vpack.c.bf16 %v262, %v258
    %v315 = vpack.c.bf16 %v263, %v259
    %v316 = vpack.c.bf16 %v264, %v260
    %v317 = vpack.c.bf16 %v269, %v265
    %v318 = vpack.c.bf16 %v270, %v266
    %v319 = vpack.c.bf16 %v271, %v267
    %v320 = vpack.c.bf16 %v272, %v268
    %v321 = vpack.c.bf16 %v277, %v273
    %v322 = vpack.c.bf16 %v278, %v274
    %v323 = vpack.c.bf16 %v279, %v275
    %v324 = vpack.c.bf16 %v280, %v276
    %v325 = vpack.c.bf16 %v285, %v281
    %v326 = vpack.c.bf16 %v286, %v282
    %v327 = vpack.c.bf16 %v287, %v283
    %v328 = vpack.c.bf16 %v288, %v284
    %v329 = vpack.c.bf16 %v293, %v289
    %v330 = vpack.c.bf16 %v294, %v290
    %v331 = vpack.c.bf16 %v295, %v291
    %v332 = vpack.c.bf16 %v296, %v292
    %v333 = vpack.c.bf16 %v301, %v297
    %v334 = vpack.c.bf16 %v302, %v298
    %v335 = vpack.c.bf16 %v303, %v299
    %v336 = vpack.c.bf16 %v304, %v300
    %v401 = vunpack.c.l.b16 %v26
    %v402 = vunpack.c.l.b16 %v27
    %v403 = vunpack.c.l.b16 %v28
    %v404 = vunpack.c.l.b16 %v29
    %v405 = vunpack.c.l.b16 %v30
    %v406 = vunpack.c.l.b16 %v31
    %v407 = vunpack.c.l.b16 %v32
    %v408 = vunpack.c.l.b16 %v33
    %v409 = vunpack.c.l.b16 %v34
    %v410 = vunpack.c.l.b16 %v35
    %v411 = vunpack.c.l.b16 %v36
    %v412 = vunpack.c.l.b16 %v37
    %v413 = vunpack.c.l.b16 %v38
    %v414 = vunpack.c.l.b16 %v39
    %v415 = vunpack.c.l.b16 %v40
    %v416 = vunpack.c.l.b16 %v41
    %v417 = vunpack.c.l.b16 %v42
    %v418 = vunpack.c.l.b16 %v43
    %v419 = vunpack.c.l.b16 %v44
    %v420 = vunpack.c.l.b16 %v45
    %v421 = vunpack.c.l.b16 %v46
    %v422 = vunpack.c.l.b16 %v47
    %v423 = vunpack.c.l.b16 %v48
    %v424 = vunpack.c.l.b16 %v49
    %v425 = vunpack.c.l.b16 %v50
    %v426 = vunpack.c.l.b16 %v51
    %v427 = vunpack.c.l.b16 %v52
    %v428 = vunpack.c.l.b16 %v53
    %v429 = vunpack.c.l.b16 %v54
    %v430 = vunpack.c.l.b16 %v55
    %v431 = vunpack.c.l.b16 %v56
    %v432 = vunpack.c.l.b16 %v57
    %v433 = vunpack.c.l.b16 %v58
    %v434 = vunpack.c.l.b16 %v59
    %v435 = vunpack.c.l.b16 %v60
    %v436 = vunpack.c.l.b16 %v61
    %v437 = vunpack.c.l.b16 %v62
    %v438 = vunpack.c.l.b16 %v63
    %v439 = vunpack.c.l.b16 %v64
    %v440 = vunpack.c.l.b16 %v65
    %v441 = vunpack.c.l.b16 %v66
    %v442 = vunpack.c.l.b16 %v67
    %v443 = vunpack.c.l.b16 %v68
    %v444 = vunpack.c.l.b16 %v69
    %v445 = vunpack.c.l.b16 %v70
    %v446 = vunpack.c.l.b16 %v71
    %v447 = vunpack.c.l.b16 %v72
    %v448 = vunpack.c.l.b16 %v73
    %v449 = vunpack.c.l.b16 %v74
    %v450 = vunpack.c.l.b16 %v75
    %v451 = vunpack.c.l.b16 %v76
    %v452 = vunpack.c.l.b16 %v77
    %v453 = vunpack.c.l.b16 %v78
    %v454 = vunpack.c.l.b16 %v79
    %v455 = vunpack.c.l.b16 %v80
    %v456 = vunpack.c.l.b16 %v81
    %v457 = vunpack.c.l.b16 %v82
    %v458 = vunpack.c.l.b16 %v83
    %v459 = vunpack.c.l.b16 %v84
    %v460 = vunpack.c.l.b16 %v85
    %v461 = vunpack.c.l.b16 %v86
    %v462 = vunpack.c.l.b16 %v87
    %v463 = vunpack.c.l.b16 %v88
    %v464 = vunpack.c.l.b16 %v89
    %v465 = vpack.c.b16 %v402, %v401
    %v466 = vpack.c.b16 %v404, %v403
    %v467 = vpack.c.b16 %v406, %v405
    %v468 = vpack.c.b16 %v408, %v407
    %v469 = vpack.c.b16 %v410, %v409
    %v470 = vpack.c.b16 %v412, %v411
    %v471 = vpack.c.b16 %v414, %v413
    %v472 = vpack.c.b16 %v416, %v415
    %v473 = vpack.c.b16 %v418, %v417
    %v474 = vpack.c.b16 %v420, %v419
    %v475 = vpack.c.b16 %v422, %v421
    %v476 = vpack.c.b16 %v424, %v423
    %v477 = vpack.c.b16 %v426, %v425
    %v478 = vpack.c.b16 %v428, %v427
    %v479 = vpack.c.b16 %v430, %v429
    %v480 = vpack.c.b16 %v432, %v431
    %v481 = vpack.c.b16 %v434, %v433
    %v482 = vpack.c.b16 %v436, %v435
    %v483 = vpack.c.b16 %v438, %v437
    %v484 = vpack.c.b16 %v440, %v439
    %v485 = vpack.c.b16 %v442, %v441
    %v486 = vpack.c.b16 %v444, %v443
    %v487 = vpack.c.b16 %v446, %v445
    %v488 = vpack.c.b16 %v448, %v447
    %v489 = vpack.c.b16 %v450, %v449
    %v490 = vpack.c.b16 %v452, %v451
    %v491 = vpack.c.b16 %v454, %v453
    %v492 = vpack.c.b16 %v456, %v455
    %v493 = vpack.c.b16 %v458, %v457
    %v494 = vpack.c.b16 %v460, %v459
    %v495 = vpack.c.b16 %v462, %v461
    %v496 = vpack.c.b16 %v464, %v463
    %529 = vmatprep.subr.bf16.mxu0 0
    %530 = vmatpush1.bf16.msra.mxu0 %v472
    %531 = vmatprep.subr.bf16.mxu0 0
    %532 = vmatpush1.bf16.msra.mxu0 %v471
    %533 = vmatprep.subr.bf16.mxu0 0
    %534 = vmatpush1.bf16.msra.mxu0 %v470
    %535 = vmatprep.subr.bf16.mxu0 0
    %536 = vmatpush1.bf16.msra.mxu0 %v469
    %537 = vmatprep.subr.bf16.mxu0 0
    %538 = vmatpush1.bf16.msra.mxu0 %v468
    %539 = vmatprep.subr.bf16.mxu0 0
    %540 = vmatpush1.bf16.msra.mxu0 %v467
    %541 = vmatprep.subr.bf16.mxu0 0
    %542 = vmatpush1.bf16.msra.mxu0 %v466
    %543 = vmatprep.subr.bf16.mxu0 0
    %544 = vmatpush1.bf16.msra.mxu0 %v465
    %545 = vmatprep.subr.bf16.mxu0 0
    %546 = vmatpush2.bf16.msra.mxu0 %v480
    %547 = vmatprep.subr.bf16.mxu0 0
    %548 = vmatpush2.bf16.msra.mxu0 %v479
    %549 = vmatprep.subr.bf16.mxu0 0
    %550 = vmatpush2.bf16.msra.mxu0 %v478
    %551 = vmatprep.subr.bf16.mxu0 0
    %552 = vmatpush2.bf16.msra.mxu0 %v477
    %553 = vmatprep.subr.bf16.mxu0 0
    %554 = vmatpush2.bf16.msra.mxu0 %v476
    %555 = vmatprep.subr.bf16.mxu0 0
    %556 = vmatpush2.bf16.msra.mxu0 %v475
    %557 = vmatprep.subr.bf16.mxu0 0
    %558 = vmatpush2.bf16.msra.mxu0 %v474
    %559 = vmatprep.subr.bf16.mxu0 0
    %560 = vmatpush2.bf16.msra.mxu0 %v473
    %561 = vmatprep.mubr.bf16.mxu0 %v306
    %562 = vmatmul.mubr.bf16.gmra.mxu0 %v305
    %v563 = vpop.f32.mrf.mxu0
    %v564 = vadd.f32 0.0, %v563
    %v565 = vpop.f32.mrf.mxu0
    %v566 = vpop.f32.mrf.mxu0
    %v567 = vadd.f32 0.0, %v566
    %v568 = vpop.f32.mrf.mxu0
    %569 = vmatprep.mubr.bf16.mxu0 %v310
    %570 = vmatmul.mubr.bf16.gmra.mxu0 %v309
    %v571 = vpop.f32.mrf.mxu0
    %v572 = vadd.f32 0.0, %v571
    %v573 = vpop.f32.mrf.mxu0
    %v574 = vpop.f32.mrf.mxu0
    %v575 = vadd.f32 0.0, %v574
    %v576 = vpop.f32.mrf.mxu0
    %577 = vmatprep.mubr.bf16.mxu0 %v314
    %578 = vmatmul.mubr.bf16.gmra.mxu0 %v313
    %v579 = vpop.f32.mrf.mxu0
    %v580 = vadd.f32 0.0, %v579
    %v581 = vpop.f32.mrf.mxu0
    %v582 = vpop.f32.mrf.mxu0
    %v583 = vadd.f32 0.0, %v582
    %v584 = vpop.f32.mrf.mxu0
    %585 = vmatprep.mubr.bf16.mxu0 %v318
    %586 = vmatmul.mubr.bf16.gmra.mxu0 %v317
    %v587 = vpop.f32.mrf.mxu0
    %v588 = vadd.f32 0.0, %v587
    %v589 = vpop.f32.mrf.mxu0
    %v590 = vpop.f32.mrf.mxu0
    %v591 = vadd.f32 0.0, %v590
    %v592 = vpop.f32.mrf.mxu0
    %593 = vmatprep.mubr.bf16.mxu0 %v322
    %594 = vmatmul.mubr.bf16.gmra.mxu0 %v321
    %v595 = vpop.f32.mrf.mxu0
    %v596 = vadd.f32 0.0, %v595
    %v597 = vpop.f32.mrf.mxu0
    %v598 = vpop.f32.mrf.mxu0
    %v599 = vadd.f32 0.0, %v598
    %v600 = vpop.f32.mrf.mxu0
    %601 = vmatprep.mubr.bf16.mxu0 %v326
    %602 = vmatmul.mubr.bf16.gmra.mxu0 %v325
    %v603 = vpop.f32.mrf.mxu0
    %v604 = vadd.f32 0.0, %v603
    %v605 = vpop.f32.mrf.mxu0
    %v606 = vpop.f32.mrf.mxu0
    %v607 = vadd.f32 0.0, %v606
    %v608 = vpop.f32.mrf.mxu0
    %609 = vmatprep.mubr.bf16.mxu0 %v330
    %610 = vmatmul.mubr.bf16.gmra.mxu0 %v329
    %v611 = vpop.f32.mrf.mxu0
    %v612 = vadd.f32 0.0, %v611
    %v613 = vpop.f32.mrf.mxu0
    %v614 = vpop.f32.mrf.mxu0
    %v615 = vadd.f32 0.0, %v614
    %v616 = vpop.f32.mrf.mxu0
    %617 = vmatprep.mubr.bf16.mxu0 %v334
    %618 = vmatmul.mubr.bf16.gmra.mxu0 %v333
    %v619 = vpop.f32.mrf.mxu0
    %v620 = vadd.f32 0.0, %v619
    %v621 = vpop.f32.mrf.mxu0
    %v622 = vpop.f32.mrf.mxu0
    %v623 = vadd.f32 0.0, %v622
    %v624 = vpop.f32.mrf.mxu0
    %625 = vdwg.mxu0
    %626 = vmatprep.subr.bf16.mxu0 0
    %627 = vmatpush1.bf16.msra.mxu0 %v488
    %628 = vmatprep.subr.bf16.mxu0 0
    %629 = vmatpush1.bf16.msra.mxu0 %v487
    %630 = vmatprep.subr.bf16.mxu0 0
    %631 = vmatpush1.bf16.msra.mxu0 %v486
    %632 = vmatprep.subr.bf16.mxu0 0
    %633 = vmatpush1.bf16.msra.mxu0 %v485
    %634 = vmatprep.subr.bf16.mxu0 0
    %635 = vmatpush1.bf16.msra.mxu0 %v484
    %636 = vmatprep.subr.bf16.mxu0 0
    %637 = vmatpush1.bf16.msra.mxu0 %v483
    %638 = vmatprep.subr.bf16.mxu0 0
    %639 = vmatpush1.bf16.msra.mxu0 %v482
    %640 = vmatprep.subr.bf16.mxu0 0
    %641 = vmatpush1.bf16.msra.mxu0 %v481
    %642 = vmatprep.subr.bf16.mxu0 0
    %643 = vmatpush2.bf16.msra.mxu0 %v496
    %644 = vmatprep.subr.bf16.mxu0 0
    %645 = vmatpush2.bf16.msra.mxu0 %v495
    %646 = vmatprep.subr.bf16.mxu0 0
    %647 = vmatpush2.bf16.msra.mxu0 %v494
    %648 = vmatprep.subr.bf16.mxu0 0
    %649 = vmatpush2.bf16.msra.mxu0 %v493
    %650 = vmatprep.subr.bf16.mxu0 0
    %651 = vmatpush2.bf16.msra.mxu0 %v492
    %652 = vmatprep.subr.bf16.mxu0 0
    %653 = vmatpush2.bf16.msra.mxu0 %v491
    %654 = vmatprep.subr.bf16.mxu0 0
    %655 = vmatpush2.bf16.msra.mxu0 %v490
    %656 = vmatprep.subr.bf16.mxu0 0
    %657 = vmatpush2.bf16.msra.mxu0 %v489
    %658 = vmatprep.mubr.bf16.mxu0 %v308
    %659 = vmatmul.mubr.bf16.gmra.mxu0 %v307
    %v660 = vpop.f32.mrf.mxu0
    %v661 = vadd.f32 %v564, %v660
    %v662 = vpop.f32.mrf.mxu0
    %v663 = vpop.f32.mrf.mxu0
    %v664 = vadd.f32 %v567, %v663
    %v665 = vpop.f32.mrf.mxu0
    %666 = vmatprep.mubr.bf16.mxu0 %v312
    %667 = vmatmul.mubr.bf16.gmra.mxu0 %v311
    %v668 = vpop.f32.mrf.mxu0
    %v669 = vadd.f32 %v572, %v668
    %v670 = vpop.f32.mrf.mxu0
    %v671 = vpop.f32.mrf.mxu0
    %v672 = vadd.f32 %v575, %v671
    %v673 = vpop.f32.mrf.mxu0
    %674 = vmatprep.mubr.bf16.mxu0 %v316
    %675 = vmatmul.mubr.bf16.gmra.mxu0 %v315
    %v676 = vpop.f32.mrf.mxu0
    %v677 = vadd.f32 %v580, %v676
    %v678 = vpop.f32.mrf.mxu0
    %v679 = vpop.f32.mrf.mxu0
    %v680 = vadd.f32 %v583, %v679
    %v681 = vpop.f32.mrf.mxu0
    %682 = vmatprep.mubr.bf16.mxu0 %v320
    %683 = vmatmul.mubr.bf16.gmra.mxu0 %v319
    %v684 = vpop.f32.mrf.mxu0
    %v685 = vadd.f32 %v588, %v684
    %v686 = vpop.f32.mrf.mxu0
    %v687 = vpop.f32.mrf.mxu0
    %v688 = vadd.f32 %v591, %v687
    %v689 = vpop.f32.mrf.mxu0
    %690 = vmatprep.mubr.bf16.mxu0 %v324
    %691 = vmatmul.mubr.bf16.gmra.mxu0 %v323
    %v692 = vpop.f32.mrf.mxu0
    %v693 = vadd.f32 %v596, %v692
    %v694 = vpop.f32.mrf.mxu0
    %v695 = vpop.f32.mrf.mxu0
    %v696 = vadd.f32 %v599, %v695
    %v697 = vpop.f32.mrf.mxu0
    %698 = vmatprep.mubr.bf16.mxu0 %v328
    %699 = vmatmul.mubr.bf16.gmra.mxu0 %v327
    %v700 = vpop.f32.mrf.mxu0
    %v701 = vadd.f32 %v604, %v700
    %v702 = vpop.f32.mrf.mxu0
    %v703 = vpop.f32.mrf.mxu0
    %v704 = vadd.f32 %v607, %v703
    %v705 = vpop.f32.mrf.mxu0
    %706 = vmatprep.mubr.bf16.mxu0 %v332
    %707 = vmatmul.mubr.bf16.gmra.mxu0 %v331
    %v708 = vpop.f32.mrf.mxu0
    %v709 = vadd.f32 %v612, %v708
    %v710 = vpop.f32.mrf.mxu0
    %v711 = vpop.f32.mrf.mxu0
    %v712 = vadd.f32 %v615, %v711
    %v713 = vpop.f32.mrf.mxu0
    %714 = vmatprep.mubr.bf16.mxu0 %v336
    %715 = vmatmul.mubr.bf16.gmra.mxu0 %v335
    %v716 = vpop.f32.mrf.mxu0
    %v717 = vadd.f32 %v620, %v716
    %v718 = vpop.f32.mrf.mxu0
    %v719 = vpop.f32.mrf.mxu0
    %v720 = vadd.f32 %v623, %v719
    %v721 = vpop.f32.mrf.mxu0
    %722 = vdwg.mxu0
    %723 = vadd.xlane.f32.xlu0 %v661
    %v724 = vpop.xlane.xlu0 %723
    %725 = vadd.xlane.f32.xlu0 %v664
    %v726 = vpop.xlane.xlu0 %725
    %727 = vadd.xlane.f32.xlu0 %v669
    %v728 = vpop.xlane.xlu0 %727
    %729 = vadd.xlane.f32.xlu0 %v672
    %v730 = vpop.xlane.xlu0 %729
    %731 = vadd.xlane.f32.xlu0 %v677
    %v732 = vpop.xlane.xlu0 %731
    %733 = vadd.xlane.f32.xlu0 %v680
    %v734 = vpop.xlane.xlu0 %733
    %735 = vadd.xlane.f32.xlu0 %v685
    %v736 = vpop.xlane.xlu0 %735
    %737 = vadd.xlane.f32.xlu0 %v688
    %v738 = vpop.xlane.xlu0 %737
    %739 = vadd.xlane.f32.xlu0 %v693
    %v740 = vpop.xlane.xlu0 %739
    %741 = vadd.xlane.f32.xlu0 %v696
    %v742 = vpop.xlane.xlu0 %741
    %743 = vadd.xlane.f32.xlu0 %v701
    %v744 = vpop.xlane.xlu0 %743
    %745 = vadd.xlane.f32.xlu0 %v704
    %v746 = vpop.xlane.xlu0 %745
    %747 = vadd.xlane.f32.xlu0 %v709
    %v748 = vpop.xlane.xlu0 %747
    %749 = vadd.xlane.f32.xlu0 %v712
    %v750 = vpop.xlane.xlu0 %749
    %751 = vadd.xlane.f32.xlu0 %v717
    %v752 = vpop.xlane.xlu0 %751
    %753 = vadd.xlane.f32.xlu0 %v720
    %v754 = vpop.xlane.xlu0 %753
    %v755 = vrcp.pop 128.0
    %v756 = vmul.f32 %v724, %v755
    %v757 = vmul.f32 %v726, %v755
    %v758 = vmul.f32 %v728, %v755
    %v759 = vmul.f32 %v730, %v755
    %v760 = vmul.f32 %v732, %v755
    %v761 = vmul.f32 %v734, %v755
    %v762 = vmul.f32 %v736, %v755
    %v763 = vmul.f32 %v738, %v755
    %v764 = vmul.f32 %v740, %v755
    %v765 = vmul.f32 %v742, %v755
    %v766 = vmul.f32 %v744, %v755
    %v767 = vmul.f32 %v746, %v755
    %v768 = vmul.f32 %v748, %v755
    %v769 = vmul.f32 %v750, %v755
    %v770 = vmul.f32 %v752, %v755
    %v771 = vmul.f32 %v754, %v755
    %v772 = vsub.f32 %v661, %v756
    %v773 = vsub.f32 %v664, %v757
    %v774 = vsub.f32 %v669, %v758
    %v775 = vsub.f32 %v672, %v759
    %v776 = vsub.f32 %v677, %v760
    %v777 = vsub.f32 %v680, %v761
    %v778 = vsub.f32 %v685, %v762
    %v779 = vsub.f32 %v688, %v763
    %v780 = vsub.f32 %v693, %v764
    %v781 = vsub.f32 %v696, %v765
    %v782 = vsub.f32 %v701, %v766
    %v783 = vsub.f32 %v704, %v767
    %v784 = vsub.f32 %v709, %v768
    %v785 = vsub.f32 %v712, %v769
    %v786 = vsub.f32 %v717, %v770
    %v787 = vsub.f32 %v720, %v771
    %v788 = vmul.f32 %v772, %v772
    %v789 = vmul.f32 %v773, %v773
    %v790 = vmul.f32 %v774, %v774
    %v791 = vmul.f32 %v775, %v775
    %v792 = vmul.f32 %v776, %v776
    %v793 = vmul.f32 %v777, %v777
    %v794 = vmul.f32 %v778, %v778
    %v795 = vmul.f32 %v779, %v779
    %v796 = vmul.f32 %v780, %v780
    %v797 = vmul.f32 %v781, %v781
    %v798 = vmul.f32 %v782, %v782
    %v799 = vmul.f32 %v783, %v783
    %v800 = vmul.f32 %v784, %v784
    %v801 = vmul.f32 %v785, %v785
    %v802 = vmul.f32 %v786, %v786
    %v803 = vmul.f32 %v787, %v787
    %804 = vadd.xlane.f32.xlu0 %v788
    %v805 = vpop.xlane.xlu0 %804
    %806 = vadd.xlane.f32.xlu0 %v789
    %v807 = vpop.xlane.xlu0 %806
    %808 = vadd.xlane.f32.xlu0 %v790
    %v809 = vpop.xlane.xlu0 %808
    %810 = vadd.xlane.f32.xlu0 %v791
    %v811 = vpop.xlane.xlu0 %810
    %812 = vadd.xlane.f32.xlu0 %v792
    %v813 = vpop.xlane.xlu0 %812
    %814 = vadd.xlane.f32.xlu0 %v793
    %v815 = vpop.xlane.xlu0 %814
    %816 = vadd.xlane.f32.xlu0 %v794
    %v817 = vpop.xlane.xlu0 %816
    %818 = vadd.xlane.f32.xlu0 %v795
    %v819 = vpop.xlane.xlu0 %818
    %820 = vadd.xlane.f32.xlu0 %v796
    %v821 = vpop.xlane.xlu0 %820
    %822 = vadd.xlane.f32.xlu0 %v797
    %v823 = vpop.xlane.xlu0 %822
    %824 = vadd.xlane.f32.xlu0 %v798
    %v825 = vpop.xlane.xlu0 %824
    %826 = vadd.xlane.f32.xlu0 %v799
    %v827 = vpop.xlane.xlu0 %826
    %828 = vadd.xlane.f32.xlu0 %v800
    %v829 = vpop.xlane.xlu0 %828
    %830 = vadd.xlane.f32.xlu0 %v801
    %v831 = vpop.xlane.xlu0 %830
    %832 = vadd.xlane.f32.xlu0 %v802
    %v833 = vpop.xlane.xlu0 %832
    %834 = vadd.xlane.f32.xlu0 %v803
    %v835 = vpop.xlane.xlu0 %834
    %v836 = vmul.f32 %v805, %v755
    %v837 = vmul.f32 %v807, %v755
    %v838 = vmul.f32 %v809, %v755
    %v839 = vmul.f32 %v811, %v755
    %v840 = vmul.f32 %v813, %v755
    %v841 = vmul.f32 %v815, %v755
    %v842 = vmul.f32 %v817, %v755
    %v843 = vmul.f32 %v819, %v755
    %v844 = vmul.f32 %v821, %v755
    %v845 = vmul.f32 %v823, %v755
    %v846 = vmul.f32 %v825, %v755
    %v847 = vmul.f32 %v827, %v755
    %v848 = vmul.f32 %v829, %v755
    %v849 = vmul.f32 %v831, %v755
    %v850 = vmul.f32 %v833, %v755
    %v851 = vmul.f32 %v835, %v755
    %v852 = vadd.f32 %v836, 1e-05
    %v853 = vadd.f32 %v837, 1e-05
    %v854 = vadd.f32 %v838, 1e-05
    %v855 = vadd.f32 %v839, 1e-05
    %v856 = vadd.f32 %v840, 1e-05
    %v857 = vadd.f32 %v841, 1e-05
    %v858 = vadd.f32 %v842, 1e-05
    %v859 = vadd.f32 %v843, 1e-05
    %v860 = vadd.f32 %v844, 1e-05
    %v861 = vadd.f32 %v845, 1e-05
    %v862 = vadd.f32 %v846, 1e-05
    %v863 = vadd.f32 %v847, 1e-05
    %v864 = vadd.f32 %v848, 1e-05
    %v865 = vadd.f32 %v849, 1e-05
    %v866 = vadd.f32 %v850, 1e-05
    %v867 = vadd.f32 %v851, 1e-05
    %v868 = vrsqrt.pop %v852
    %v869 = vrsqrt.pop %v853
    %v870 = vrsqrt.pop %v854
    %v871 = vrsqrt.pop %v855
    %v872 = vrsqrt.pop %v856
    %v873 = vrsqrt.pop %v857
    %v874 = vrsqrt.pop %v858
    %v875 = vrsqrt.pop %v859
    %v876 = vrsqrt.pop %v860
    %v877 = vrsqrt.pop %v861
    %v878 = vrsqrt.pop %v862
    %v879 = vrsqrt.pop %v863
    %v880 = vrsqrt.pop %v864
    %v881 = vrsqrt.pop %v865
    %v882 = vrsqrt.pop %v866
    %v883 = vrsqrt.pop %v867
    %v884 = vmul.f32 %v772, %v868
    %v885 = vmul.f32 %v773, %v869
    %v886 = vmul.f32 %v774, %v870
    %v887 = vmul.f32 %v775, %v871
    %v888 = vmul.f32 %v776, %v872
    %v889 = vmul.f32 %v777, %v873
    %v890 = vmul.f32 %v778, %v874
    %v891 = vmul.f32 %v779, %v875
    %v892 = vmul.f32 %v780, %v876
    %v893 = vmul.f32 %v781, %v877
    %v894 = vmul.f32 %v782, %v878
    %v895 = vmul.f32 %v783, %v879
    %v896 = vmul.f32 %v784, %v880
    %v897 = vmul.f32 %v785, %v881
    %v898 = vmul.f32 %v786, %v882
    %v899 = vmul.f32 %v787, %v883
    %v900 = vlaneseq
    %v901 = vshrl.u32 %v900, 7
    %v902 = vsub.s32 0, %v901
    %v903 = vrot.slane %v90, %v902
    %v904 = vmul.f32 %v884, %v903
    %v905 = vmul.f32 %v885, %v903
    %v906 = vmul.f32 %v886, %v903
    %v907 = vmul.f32 %v887, %v903
    %v908 = vmul.f32 %v888, %v903
    %v909 = vmul.f32 %v889, %v903
    %v910 = vmul.f32 %v890, %v903
    %v911 = vmul.f32 %v891, %v903
    %v912 = vmul.f32 %v892, %v903
    %v913 = vmul.f32 %v893, %v903
    %v914 = vmul.f32 %v894, %v903
    %v915 = vmul.f32 %v895, %v903
    %v916 = vmul.f32 %v896, %v903
    %v917 = vmul.f32 %v897, %v903
    %v918 = vmul.f32 %v898, %v903
    %v919 = vmul.f32 %v899, %v903
    %v920 = vlaneseq
    %v921 = vshrl.u32 %v920, 7
    %v922 = vsub.s32 0, %v921
    %v923 = vrot.slane %v91, %v922
    %v924 = vadd.f32 %v904, %v923
    %v925 = vadd.f32 %v905, %v923
    %v926 = vadd.f32 %v906, %v923
    %v927 = vadd.f32 %v907, %v923
    %v928 = vadd.f32 %v908, %v923
    %v929 = vadd.f32 %v909, %v923
    %v930 = vadd.f32 %v910, %v923
    %v931 = vadd.f32 %v911, %v923
    %v932 = vadd.f32 %v912, %v923
    %v933 = vadd.f32 %v913, %v923
    %v934 = vadd.f32 %v914, %v923
    %v935 = vadd.f32 %v915, %v923
    %v936 = vadd.f32 %v916, %v923
    %v937 = vadd.f32 %v917, %v923
    %v938 = vadd.f32 %v918, %v923
    %v939 = vadd.f32 %v919, %v923
    %941 = vset.pattern.permute.xlu0 0
    %942 = vperm.xlu0 %941, %v113
    %v943 = vpop.permute.xlu0 %942
    %946 = vset.pattern.permute.xlu0 0
    %947 = vperm.xlu0 %946, %v114
    %v948 = vpop.permute.xlu0 %947
    %951 = vset.pattern.permute.xlu0 0
    %952 = vperm.xlu0 %951, %v115
    %v953 = vpop.permute.xlu0 %952
    %956 = vset.pattern.permute.xlu0 0
    %957 = vperm.xlu0 %956, %v116
    %v958 = vpop.permute.xlu0 %957
    %961 = vset.pattern.permute.xlu0 0
    %962 = vperm.xlu0 %961, %v117
    %v963 = vpop.permute.xlu0 %962
    %966 = vset.pattern.permute.xlu0 0
    %967 = vperm.xlu0 %966, %v118
    %v968 = vpop.permute.xlu0 %967
    %971 = vset.pattern.permute.xlu0 0
    %972 = vperm.xlu0 %971, %v119
    %v973 = vpop.permute.xlu0 %972
    %976 = vset.pattern.permute.xlu0 0
    %977 = vperm.xlu0 %976, %v120
    %v978 = vpop.permute.xlu0 %977
    %981 = vset.pattern.permute.xlu0 0
    %982 = vperm.xlu0 %981, %v121
    %v983 = vpop.permute.xlu0 %982
    %986 = vset.pattern.permute.xlu0 0
    %987 = vperm.xlu0 %986, %v122
    %v988 = vpop.permute.xlu0 %987
    %991 = vset.pattern.permute.xlu0 0
    %992 = vperm.xlu0 %991, %v123
    %v993 = vpop.permute.xlu0 %992
    %996 = vset.pattern.permute.xlu0 0
    %997 = vperm.xlu0 %996, %v124
    %v998 = vpop.permute.xlu0 %997
    %1001 = vset.pattern.permute.xlu0 0
    %1002 = vperm.xlu0 %1001, %v125
    %v1003 = vpop.permute.xlu0 %1002
    %1006 = vset.pattern.permute.xlu0 0
    %1007 = vperm.xlu0 %1006, %v126
    %v1008 = vpop.permute.xlu0 %1007
    %1011 = vset.pattern.permute.xlu0 0
    %1012 = vperm.xlu0 %1011, %v127
    %v1013 = vpop.permute.xlu0 %1012
    %1016 = vset.pattern.permute.xlu0 0
    %1017 = vperm.xlu0 %1016, %v128
    %v1018 = vpop.permute.xlu0 %1017
    %v1020 = vmul.f32 %v924, %v943
    %v1021 = vmul.f32 %v925, %v948
    %v1022 = vmul.f32 %v926, %v953
    %v1023 = vmul.f32 %v927, %v958
    %v1024 = vmul.f32 %v928, %v963
    %v1025 = vmul.f32 %v929, %v968
    %v1026 = vmul.f32 %v930, %v973
    %v1027 = vmul.f32 %v931, %v978
    %v1028 = vmul.f32 %v932, %v983
    %v1029 = vmul.f32 %v933, %v988
    %v1030 = vmul.f32 %v934, %v993
    %v1031 = vmul.f32 %v935, %v998
    %v1032 = vmul.f32 %v936, %v1003
    %v1033 = vmul.f32 %v937, %v1008
    %v1034 = vmul.f32 %v938, %v1013
    %v1035 = vmul.f32 %v939, %v1018
    %v1036 = vadd.f32 %v1020, %v1021
    %v1037 = vadd.f32 %v1036, %v1022
    %v1038 = vadd.f32 %v1037, %v1023
    %v1039 = vadd.f32 %v1038, %v1024
    %v1040 = vadd.f32 %v1039, %v1025
    %v1041 = vadd.f32 %v1040, %v1026
    %v1042 = vadd.f32 %v1041, %v1027
    %v1043 = vadd.f32 %v1042, %v1028
    %v1044 = vadd.f32 %v1043, %v1029
    %v1045 = vadd.f32 %v1044, %v1030
    %v1046 = vadd.f32 %v1045, %v1031
    %v1047 = vadd.f32 %v1046, %v1032
    %v1048 = vadd.f32 %v1047, %v1033
    %v1049 = vadd.f32 %v1048, %v1034
    %v1050 = vadd.f32 %v1049, %v1035
    %v1051 = vrot.slane %v1050, 4
    %v1052 = vadd.f32 %v1050, %v1051
    %v1053 = vrot.slane %v1052, 2
    %v1054 = vadd.f32 %v1052, %v1053
    %v1055 = vrot.slane %v1054, 1
    %v1056 = vadd.f32 %v1054, %v1055
    %vm1057 = vcmask 7168
    %v1058 = vsel %vm1057, %v113, 0.0
    %v1059 = vsel %vm1057, %v114, 0.0
    %v1060 = vadd.f32 %v1058, %v1059
    %v1061 = vsel %vm1057, %v115, 0.0
    %v1062 = vadd.f32 %v1060, %v1061
    %v1063 = vsel %vm1057, %v116, 0.0
    %v1064 = vadd.f32 %v1062, %v1063
    %v1065 = vsel %vm1057, %v117, 0.0
    %v1066 = vadd.f32 %v1064, %v1065
    %v1067 = vsel %vm1057, %v118, 0.0
    %v1068 = vadd.f32 %v1066, %v1067
    %v1069 = vsel %vm1057, %v119, 0.0
    %v1070 = vadd.f32 %v1068, %v1069
    %v1071 = vsel %vm1057, %v120, 0.0
    %v1072 = vadd.f32 %v1070, %v1071
    %v1073 = vsel %vm1057, %v121, 0.0
    %v1074 = vadd.f32 %v1072, %v1073
    %v1075 = vsel %vm1057, %v122, 0.0
    %v1076 = vadd.f32 %v1074, %v1075
    %v1077 = vsel %vm1057, %v123, 0.0
    %v1078 = vadd.f32 %v1076, %v1077
    %v1079 = vsel %vm1057, %v124, 0.0
    %v1080 = vadd.f32 %v1078, %v1079
    %v1081 = vsel %vm1057, %v125, 0.0
    %v1082 = vadd.f32 %v1080, %v1081
    %v1083 = vsel %vm1057, %v126, 0.0
    %v1084 = vadd.f32 %v1082, %v1083
    %v1085 = vsel %vm1057, %v127, 0.0
    %v1086 = vadd.f32 %v1084, %v1085
    %v1087 = vsel %vm1057, %v128, 0.0
    %v1088 = vadd.f32 %v1086, %v1087
    %v1089 = vrot.slane %v1088, 4
    %v1090 = vadd.f32 %v1088, %v1089
    %v1091 = vrot.slane %v1090, 2
    %v1092 = vadd.f32 %v1090, %v1091
    %v1093 = vrot.slane %v1092, 1
    %v1094 = vadd.f32 %v1092, %v1093
    %s1095 = scalar_lea.vmem %s0, 128
    %v1096 = vld [vmem:[%s1095] sm:$0xff]
    %v1097 = vld [vmem:[%s1095 + $0x8] sm:$0xff]
    %v1098 = vld [vmem:[%s1095 + $0x10] sm:$0xff]
    %v1099 = vld [vmem:[%s1095 + $0x18] sm:$0xff]
    %v1100 = vld [vmem:[%s1095 + $0x20] sm:$0xff]
    %v1101 = vld [vmem:[%s1095 + $0x28] sm:$0xff]
    %v1102 = vld [vmem:[%s1095 + $0x30] sm:$0xff]
    %v1103 = vld [vmem:[%s1095 + $0x38] sm:$0xff]
    %v1104 = vld [vmem:[%s1095 + $0x40] sm:$0xff]
    %v1105 = vld [vmem:[%s1095 + $0x48] sm:$0xff]
    %v1106 = vld [vmem:[%s1095 + $0x50] sm:$0xff]
    %v1107 = vld [vmem:[%s1095 + $0x58] sm:$0xff]
    %v1108 = vld [vmem:[%s1095 + $0x60] sm:$0xff]
    %v1109 = vld [vmem:[%s1095 + $0x68] sm:$0xff]
    %v1110 = vld [vmem:[%s1095 + $0x70] sm:$0xff]
    %v1111 = vld [vmem:[%s1095 + $0x78] sm:$0xff]
    %s1112 = scalar_lea.vmem %s1, 128
    %v1113 = vld [vmem:[%s1112] sm:$0xff]
    %v1114 = vld [vmem:[%s1112 + $0x8] sm:$0xff]
    %v1115 = vld [vmem:[%s1112 + $0x10] sm:$0xff]
    %v1116 = vld [vmem:[%s1112 + $0x18] sm:$0xff]
    %v1117 = vld [vmem:[%s1112 + $0x20] sm:$0xff]
    %v1118 = vld [vmem:[%s1112 + $0x28] sm:$0xff]
    %v1119 = vld [vmem:[%s1112 + $0x30] sm:$0xff]
    %v1120 = vld [vmem:[%s1112 + $0x38] sm:$0xff]
    %v1121 = vld [vmem:[%s1112 + $0x40] sm:$0xff]
    %v1122 = vld [vmem:[%s1112 + $0x48] sm:$0xff]
    %v1123 = vld [vmem:[%s1112 + $0x50] sm:$0xff]
    %v1124 = vld [vmem:[%s1112 + $0x58] sm:$0xff]
    %v1125 = vld [vmem:[%s1112 + $0x60] sm:$0xff]
    %v1126 = vld [vmem:[%s1112 + $0x68] sm:$0xff]
    %v1127 = vld [vmem:[%s1112 + $0x70] sm:$0xff]
    %v1128 = vld [vmem:[%s1112 + $0x78] sm:$0xff]
    %1129 = vset.pattern.permute.xlu0 0
    %1130 = vperm.xlu0 %1129, %v1096
    %v1131 = vpop.permute.xlu0 %1130
    %1132 = vset.pattern.permute.xlu0 0
    %1133 = vperm.xlu0 %1132, %v1097
    %v1134 = vpop.permute.xlu0 %1133
    %1135 = vset.pattern.permute.xlu0 0
    %1136 = vperm.xlu0 %1135, %v1098
    %v1137 = vpop.permute.xlu0 %1136
    %1138 = vset.pattern.permute.xlu0 0
    %1139 = vperm.xlu0 %1138, %v1099
    %v1140 = vpop.permute.xlu0 %1139
    %1141 = vset.pattern.permute.xlu0 0
    %1142 = vperm.xlu0 %1141, %v1100
    %v1143 = vpop.permute.xlu0 %1142
    %1144 = vset.pattern.permute.xlu0 0
    %1145 = vperm.xlu0 %1144, %v1101
    %v1146 = vpop.permute.xlu0 %1145
    %1147 = vset.pattern.permute.xlu0 0
    %1148 = vperm.xlu0 %1147, %v1102
    %v1149 = vpop.permute.xlu0 %1148
    %1150 = vset.pattern.permute.xlu0 0
    %1151 = vperm.xlu0 %1150, %v1103
    %v1152 = vpop.permute.xlu0 %1151
    %1153 = vset.pattern.permute.xlu0 0
    %1154 = vperm.xlu0 %1153, %v1104
    %v1155 = vpop.permute.xlu0 %1154
    %1156 = vset.pattern.permute.xlu0 0
    %1157 = vperm.xlu0 %1156, %v1105
    %v1158 = vpop.permute.xlu0 %1157
    %1159 = vset.pattern.permute.xlu0 0
    %1160 = vperm.xlu0 %1159, %v1106
    %v1161 = vpop.permute.xlu0 %1160
    %1162 = vset.pattern.permute.xlu0 0
    %1163 = vperm.xlu0 %1162, %v1107
    %v1164 = vpop.permute.xlu0 %1163
    %1165 = vset.pattern.permute.xlu0 0
    %1166 = vperm.xlu0 %1165, %v1108
    %v1167 = vpop.permute.xlu0 %1166
    %1168 = vset.pattern.permute.xlu0 0
    %1169 = vperm.xlu0 %1168, %v1109
    %v1170 = vpop.permute.xlu0 %1169
    %1171 = vset.pattern.permute.xlu0 0
    %1172 = vperm.xlu0 %1171, %v1110
    %v1173 = vpop.permute.xlu0 %1172
    %1174 = vset.pattern.permute.xlu0 0
    %1175 = vperm.xlu0 %1174, %v1111
    %v1176 = vpop.permute.xlu0 %1175
    %vm1177 = vcmp.eq.s32.totalorder %v1131, %v93
    %vm1178 = vcmp.eq.s32.totalorder %v1131, %v94
    %vm1179 = vcmp.eq.s32.totalorder %v1131, %v95
    %vm1180 = vcmp.eq.s32.totalorder %v1131, %v96
    %vm1181 = vcmp.eq.s32.totalorder %v1134, %v93
    %vm1182 = vcmp.eq.s32.totalorder %v1134, %v94
    %vm1183 = vcmp.eq.s32.totalorder %v1134, %v95
    %vm1184 = vcmp.eq.s32.totalorder %v1134, %v96
    %vm1185 = vcmp.eq.s32.totalorder %v1137, %v93
    %vm1186 = vcmp.eq.s32.totalorder %v1137, %v94
    %vm1187 = vcmp.eq.s32.totalorder %v1137, %v95
    %vm1188 = vcmp.eq.s32.totalorder %v1137, %v96
    %vm1189 = vcmp.eq.s32.totalorder %v1140, %v93
    %vm1190 = vcmp.eq.s32.totalorder %v1140, %v94
    %vm1191 = vcmp.eq.s32.totalorder %v1140, %v95
    %vm1192 = vcmp.eq.s32.totalorder %v1140, %v96
    %vm1193 = vcmp.eq.s32.totalorder %v1143, %v93
    %vm1194 = vcmp.eq.s32.totalorder %v1143, %v94
    %vm1195 = vcmp.eq.s32.totalorder %v1143, %v95
    %vm1196 = vcmp.eq.s32.totalorder %v1143, %v96
    %vm1197 = vcmp.eq.s32.totalorder %v1146, %v93
    %vm1198 = vcmp.eq.s32.totalorder %v1146, %v94
    %vm1199 = vcmp.eq.s32.totalorder %v1146, %v95
    %vm1200 = vcmp.eq.s32.totalorder %v1146, %v96
    %vm1201 = vcmp.eq.s32.totalorder %v1149, %v93
    %vm1202 = vcmp.eq.s32.totalorder %v1149, %v94
    %vm1203 = vcmp.eq.s32.totalorder %v1149, %v95
    %vm1204 = vcmp.eq.s32.totalorder %v1149, %v96
    %vm1205 = vcmp.eq.s32.totalorder %v1152, %v93
    %vm1206 = vcmp.eq.s32.totalorder %v1152, %v94
    %vm1207 = vcmp.eq.s32.totalorder %v1152, %v95
    %vm1208 = vcmp.eq.s32.totalorder %v1152, %v96
    %vm1209 = vcmp.eq.s32.totalorder %v1155, %v93
    %vm1210 = vcmp.eq.s32.totalorder %v1155, %v94
    %vm1211 = vcmp.eq.s32.totalorder %v1155, %v95
    %vm1212 = vcmp.eq.s32.totalorder %v1155, %v96
    %vm1213 = vcmp.eq.s32.totalorder %v1158, %v93
    %vm1214 = vcmp.eq.s32.totalorder %v1158, %v94
    %vm1215 = vcmp.eq.s32.totalorder %v1158, %v95
    %vm1216 = vcmp.eq.s32.totalorder %v1158, %v96
    %vm1217 = vcmp.eq.s32.totalorder %v1161, %v93
    %vm1218 = vcmp.eq.s32.totalorder %v1161, %v94
    %vm1219 = vcmp.eq.s32.totalorder %v1161, %v95
    %vm1220 = vcmp.eq.s32.totalorder %v1161, %v96
    %vm1221 = vcmp.eq.s32.totalorder %v1164, %v93
    %vm1222 = vcmp.eq.s32.totalorder %v1164, %v94
    %vm1223 = vcmp.eq.s32.totalorder %v1164, %v95
    %vm1224 = vcmp.eq.s32.totalorder %v1164, %v96
    %vm1225 = vcmp.eq.s32.totalorder %v1167, %v93
    %vm1226 = vcmp.eq.s32.totalorder %v1167, %v94
    %vm1227 = vcmp.eq.s32.totalorder %v1167, %v95
    %vm1228 = vcmp.eq.s32.totalorder %v1167, %v96
    %vm1229 = vcmp.eq.s32.totalorder %v1170, %v93
    %vm1230 = vcmp.eq.s32.totalorder %v1170, %v94
    %vm1231 = vcmp.eq.s32.totalorder %v1170, %v95
    %vm1232 = vcmp.eq.s32.totalorder %v1170, %v96
    %vm1233 = vcmp.eq.s32.totalorder %v1173, %v93
    %vm1234 = vcmp.eq.s32.totalorder %v1173, %v94
    %vm1235 = vcmp.eq.s32.totalorder %v1173, %v95
    %vm1236 = vcmp.eq.s32.totalorder %v1173, %v96
    %vm1237 = vcmp.eq.s32.totalorder %v1176, %v93
    %vm1238 = vcmp.eq.s32.totalorder %v1176, %v94
    %vm1239 = vcmp.eq.s32.totalorder %v1176, %v95
    %vm1240 = vcmp.eq.s32.totalorder %v1176, %v96
    %v1241 = vsel %vm1177, 1.0, 0.0
    %v1242 = vsel %vm1178, 1.0, 0.0
    %v1243 = vsel %vm1179, 1.0, 0.0
    %v1244 = vsel %vm1180, 1.0, 0.0
    %v1245 = vsel %vm1181, 1.0, 0.0
    %v1246 = vsel %vm1182, 1.0, 0.0
    %v1247 = vsel %vm1183, 1.0, 0.0
    %v1248 = vsel %vm1184, 1.0, 0.0
    %v1249 = vsel %vm1185, 1.0, 0.0
    %v1250 = vsel %vm1186, 1.0, 0.0
    %v1251 = vsel %vm1187, 1.0, 0.0
    %v1252 = vsel %vm1188, 1.0, 0.0
    %v1253 = vsel %vm1189, 1.0, 0.0
    %v1254 = vsel %vm1190, 1.0, 0.0
    %v1255 = vsel %vm1191, 1.0, 0.0
    %v1256 = vsel %vm1192, 1.0, 0.0
    %v1257 = vsel %vm1193, 1.0, 0.0
    %v1258 = vsel %vm1194, 1.0, 0.0
    %v1259 = vsel %vm1195, 1.0, 0.0
    %v1260 = vsel %vm1196, 1.0, 0.0
    %v1261 = vsel %vm1197, 1.0, 0.0
    %v1262 = vsel %vm1198, 1.0, 0.0
    %v1263 = vsel %vm1199, 1.0, 0.0
    %v1264 = vsel %vm1200, 1.0, 0.0
    %v1265 = vsel %vm1201, 1.0, 0.0
    %v1266 = vsel %vm1202, 1.0, 0.0
    %v1267 = vsel %vm1203, 1.0, 0.0
    %v1268 = vsel %vm1204, 1.0, 0.0
    %v1269 = vsel %vm1205, 1.0, 0.0
    %v1270 = vsel %vm1206, 1.0, 0.0
    %v1271 = vsel %vm1207, 1.0, 0.0
    %v1272 = vsel %vm1208, 1.0, 0.0
    %v1273 = vsel %vm1209, 1.0, 0.0
    %v1274 = vsel %vm1210, 1.0, 0.0
    %v1275 = vsel %vm1211, 1.0, 0.0
    %v1276 = vsel %vm1212, 1.0, 0.0
    %v1277 = vsel %vm1213, 1.0, 0.0
    %v1278 = vsel %vm1214, 1.0, 0.0
    %v1279 = vsel %vm1215, 1.0, 0.0
    %v1280 = vsel %vm1216, 1.0, 0.0
    %v1281 = vsel %vm1217, 1.0, 0.0
    %v1282 = vsel %vm1218, 1.0, 0.0
    %v1283 = vsel %vm1219, 1.0, 0.0
    %v1284 = vsel %vm1220, 1.0, 0.0
    %v1285 = vsel %vm1221, 1.0, 0.0
    %v1286 = vsel %vm1222, 1.0, 0.0
    %v1287 = vsel %vm1223, 1.0, 0.0
    %v1288 = vsel %vm1224, 1.0, 0.0
    %v1289 = vsel %vm1225, 1.0, 0.0
    %v1290 = vsel %vm1226, 1.0, 0.0
    %v1291 = vsel %vm1227, 1.0, 0.0
    %v1292 = vsel %vm1228, 1.0, 0.0
    %v1293 = vsel %vm1229, 1.0, 0.0
    %v1294 = vsel %vm1230, 1.0, 0.0
    %v1295 = vsel %vm1231, 1.0, 0.0
    %v1296 = vsel %vm1232, 1.0, 0.0
    %v1297 = vsel %vm1233, 1.0, 0.0
    %v1298 = vsel %vm1234, 1.0, 0.0
    %v1299 = vsel %vm1235, 1.0, 0.0
    %v1300 = vsel %vm1236, 1.0, 0.0
    %v1301 = vsel %vm1237, 1.0, 0.0
    %v1302 = vsel %vm1238, 1.0, 0.0
    %v1303 = vsel %vm1239, 1.0, 0.0
    %v1304 = vsel %vm1240, 1.0, 0.0
    %v1305 = vpack.c.bf16 %v1245, %v1241
    %v1306 = vpack.c.bf16 %v1246, %v1242
    %v1307 = vpack.c.bf16 %v1247, %v1243
    %v1308 = vpack.c.bf16 %v1248, %v1244
    %v1309 = vpack.c.bf16 %v1253, %v1249
    %v1310 = vpack.c.bf16 %v1254, %v1250
    %v1311 = vpack.c.bf16 %v1255, %v1251
    %v1312 = vpack.c.bf16 %v1256, %v1252
    %v1313 = vpack.c.bf16 %v1261, %v1257
    %v1314 = vpack.c.bf16 %v1262, %v1258
    %v1315 = vpack.c.bf16 %v1263, %v1259
    %v1316 = vpack.c.bf16 %v1264, %v1260
    %v1317 = vpack.c.bf16 %v1269, %v1265
    %v1318 = vpack.c.bf16 %v1270, %v1266
    %v1319 = vpack.c.bf16 %v1271, %v1267
    %v1320 = vpack.c.bf16 %v1272, %v1268
    %v1321 = vpack.c.bf16 %v1277, %v1273
    %v1322 = vpack.c.bf16 %v1278, %v1274
    %v1323 = vpack.c.bf16 %v1279, %v1275
    %v1324 = vpack.c.bf16 %v1280, %v1276
    %v1325 = vpack.c.bf16 %v1285, %v1281
    %v1326 = vpack.c.bf16 %v1286, %v1282
    %v1327 = vpack.c.bf16 %v1287, %v1283
    %v1328 = vpack.c.bf16 %v1288, %v1284
    %v1329 = vpack.c.bf16 %v1293, %v1289
    %v1330 = vpack.c.bf16 %v1294, %v1290
    %v1331 = vpack.c.bf16 %v1295, %v1291
    %v1332 = vpack.c.bf16 %v1296, %v1292
    %v1333 = vpack.c.bf16 %v1301, %v1297
    %v1334 = vpack.c.bf16 %v1302, %v1298
    %v1335 = vpack.c.bf16 %v1303, %v1299
    %v1336 = vpack.c.bf16 %v1304, %v1300
    %1337 = vmatprep.subr.bf16.mxu0 0
    %1338 = vmatpush1.bf16.msra.mxu0 %v472
    %1339 = vmatprep.subr.bf16.mxu0 0
    %1340 = vmatpush1.bf16.msra.mxu0 %v471
    %1341 = vmatprep.subr.bf16.mxu0 0
    %1342 = vmatpush1.bf16.msra.mxu0 %v470
    %1343 = vmatprep.subr.bf16.mxu0 0
    %1344 = vmatpush1.bf16.msra.mxu0 %v469
    %1345 = vmatprep.subr.bf16.mxu0 0
    %1346 = vmatpush1.bf16.msra.mxu0 %v468
    %1347 = vmatprep.subr.bf16.mxu0 0
    %1348 = vmatpush1.bf16.msra.mxu0 %v467
    %1349 = vmatprep.subr.bf16.mxu0 0
    %1350 = vmatpush1.bf16.msra.mxu0 %v466
    %1351 = vmatprep.subr.bf16.mxu0 0
    %1352 = vmatpush1.bf16.msra.mxu0 %v465
    %1353 = vmatprep.subr.bf16.mxu0 0
    %1354 = vmatpush2.bf16.msra.mxu0 %v480
    %1355 = vmatprep.subr.bf16.mxu0 0
    %1356 = vmatpush2.bf16.msra.mxu0 %v479
    %1357 = vmatprep.subr.bf16.mxu0 0
    %1358 = vmatpush2.bf16.msra.mxu0 %v478
    %1359 = vmatprep.subr.bf16.mxu0 0
    %1360 = vmatpush2.bf16.msra.mxu0 %v477
    %1361 = vmatprep.subr.bf16.mxu0 0
    %1362 = vmatpush2.bf16.msra.mxu0 %v476
    %1363 = vmatprep.subr.bf16.mxu0 0
    %1364 = vmatpush2.bf16.msra.mxu0 %v475
    %1365 = vmatprep.subr.bf16.mxu0 0
    %1366 = vmatpush2.bf16.msra.mxu0 %v474
    %1367 = vmatprep.subr.bf16.mxu0 0
    %1368 = vmatpush2.bf16.msra.mxu0 %v473
    %1369 = vmatprep.mubr.bf16.mxu0 %v1306
    %1370 = vmatmul.mubr.bf16.gmra.mxu0 %v1305
    %v1371 = vpop.f32.mrf.mxu0
    %v1372 = vadd.f32 0.0, %v1371
    %v1373 = vpop.f32.mrf.mxu0
    %v1374 = vpop.f32.mrf.mxu0
    %v1375 = vadd.f32 0.0, %v1374
    %v1376 = vpop.f32.mrf.mxu0
    %1377 = vmatprep.mubr.bf16.mxu0 %v1310
    %1378 = vmatmul.mubr.bf16.gmra.mxu0 %v1309
    %v1379 = vpop.f32.mrf.mxu0
    %v1380 = vadd.f32 0.0, %v1379
    %v1381 = vpop.f32.mrf.mxu0
    %v1382 = vpop.f32.mrf.mxu0
    %v1383 = vadd.f32 0.0, %v1382
    %v1384 = vpop.f32.mrf.mxu0
    %1385 = vmatprep.mubr.bf16.mxu0 %v1314
    %1386 = vmatmul.mubr.bf16.gmra.mxu0 %v1313
    %v1387 = vpop.f32.mrf.mxu0
    %v1388 = vadd.f32 0.0, %v1387
    %v1389 = vpop.f32.mrf.mxu0
    %v1390 = vpop.f32.mrf.mxu0
    %v1391 = vadd.f32 0.0, %v1390
    %v1392 = vpop.f32.mrf.mxu0
    %1393 = vmatprep.mubr.bf16.mxu0 %v1318
    %1394 = vmatmul.mubr.bf16.gmra.mxu0 %v1317
    %v1395 = vpop.f32.mrf.mxu0
    %v1396 = vadd.f32 0.0, %v1395
    %v1397 = vpop.f32.mrf.mxu0
    %v1398 = vpop.f32.mrf.mxu0
    %v1399 = vadd.f32 0.0, %v1398
    %v1400 = vpop.f32.mrf.mxu0
    %1401 = vmatprep.mubr.bf16.mxu0 %v1322
    %1402 = vmatmul.mubr.bf16.gmra.mxu0 %v1321
    %v1403 = vpop.f32.mrf.mxu0
    %v1404 = vadd.f32 0.0, %v1403
    %v1405 = vpop.f32.mrf.mxu0
    %v1406 = vpop.f32.mrf.mxu0
    %v1407 = vadd.f32 0.0, %v1406
    %v1408 = vpop.f32.mrf.mxu0
    %1409 = vmatprep.mubr.bf16.mxu0 %v1326
    %1410 = vmatmul.mubr.bf16.gmra.mxu0 %v1325
    %v1411 = vpop.f32.mrf.mxu0
    %v1412 = vadd.f32 0.0, %v1411
    %v1413 = vpop.f32.mrf.mxu0
    %v1414 = vpop.f32.mrf.mxu0
    %v1415 = vadd.f32 0.0, %v1414
    %v1416 = vpop.f32.mrf.mxu0
    %1417 = vmatprep.mubr.bf16.mxu0 %v1330
    %1418 = vmatmul.mubr.bf16.gmra.mxu0 %v1329
    %v1419 = vpop.f32.mrf.mxu0
    %v1420 = vadd.f32 0.0, %v1419
    %v1421 = vpop.f32.mrf.mxu0
    %v1422 = vpop.f32.mrf.mxu0
    %v1423 = vadd.f32 0.0, %v1422
    %v1424 = vpop.f32.mrf.mxu0
    %1425 = vmatprep.mubr.bf16.mxu0 %v1334
    %1426 = vmatmul.mubr.bf16.gmra.mxu0 %v1333
    %v1427 = vpop.f32.mrf.mxu0
    %v1428 = vadd.f32 0.0, %v1427
    %v1429 = vpop.f32.mrf.mxu0
    %v1430 = vpop.f32.mrf.mxu0
    %v1431 = vadd.f32 0.0, %v1430
    %v1432 = vpop.f32.mrf.mxu0
    %1433 = vdwg.mxu0
    %1434 = vmatprep.subr.bf16.mxu0 0
    %1435 = vmatpush1.bf16.msra.mxu0 %v488
    %1436 = vmatprep.subr.bf16.mxu0 0
    %1437 = vmatpush1.bf16.msra.mxu0 %v487
    %1438 = vmatprep.subr.bf16.mxu0 0
    %1439 = vmatpush1.bf16.msra.mxu0 %v486
    %1440 = vmatprep.subr.bf16.mxu0 0
    %1441 = vmatpush1.bf16.msra.mxu0 %v485
    %1442 = vmatprep.subr.bf16.mxu0 0
    %1443 = vmatpush1.bf16.msra.mxu0 %v484
    %1444 = vmatprep.subr.bf16.mxu0 0
    %1445 = vmatpush1.bf16.msra.mxu0 %v483
    %1446 = vmatprep.subr.bf16.mxu0 0
    %1447 = vmatpush1.bf16.msra.mxu0 %v482
    %1448 = vmatprep.subr.bf16.mxu0 0
    %1449 = vmatpush1.bf16.msra.mxu0 %v481
    %1450 = vmatprep.subr.bf16.mxu0 0
    %1451 = vmatpush2.bf16.msra.mxu0 %v496
    %1452 = vmatprep.subr.bf16.mxu0 0
    %1453 = vmatpush2.bf16.msra.mxu0 %v495
    %1454 = vmatprep.subr.bf16.mxu0 0
    %1455 = vmatpush2.bf16.msra.mxu0 %v494
    %1456 = vmatprep.subr.bf16.mxu0 0
    %1457 = vmatpush2.bf16.msra.mxu0 %v493
    %1458 = vmatprep.subr.bf16.mxu0 0
    %1459 = vmatpush2.bf16.msra.mxu0 %v492
    %1460 = vmatprep.subr.bf16.mxu0 0
    %1461 = vmatpush2.bf16.msra.mxu0 %v491
    %1462 = vmatprep.subr.bf16.mxu0 0
    %1463 = vmatpush2.bf16.msra.mxu0 %v490
    %1464 = vmatprep.subr.bf16.mxu0 0
    %1465 = vmatpush2.bf16.msra.mxu0 %v489
    %1466 = vmatprep.mubr.bf16.mxu0 %v1308
    %1467 = vmatmul.mubr.bf16.gmra.mxu0 %v1307
    %v1468 = vpop.f32.mrf.mxu0
    %v1469 = vadd.f32 %v1372, %v1468
    %v1470 = vpop.f32.mrf.mxu0
    %v1471 = vpop.f32.mrf.mxu0
    %v1472 = vadd.f32 %v1375, %v1471
    %v1473 = vpop.f32.mrf.mxu0
    %1474 = vmatprep.mubr.bf16.mxu0 %v1312
    %1475 = vmatmul.mubr.bf16.gmra.mxu0 %v1311
    %v1476 = vpop.f32.mrf.mxu0
    %v1477 = vadd.f32 %v1380, %v1476
    %v1478 = vpop.f32.mrf.mxu0
    %v1479 = vpop.f32.mrf.mxu0
    %v1480 = vadd.f32 %v1383, %v1479
    %v1481 = vpop.f32.mrf.mxu0
    %1482 = vmatprep.mubr.bf16.mxu0 %v1316
    %1483 = vmatmul.mubr.bf16.gmra.mxu0 %v1315
    %v1484 = vpop.f32.mrf.mxu0
    %v1485 = vadd.f32 %v1388, %v1484
    %v1486 = vpop.f32.mrf.mxu0
    %v1487 = vpop.f32.mrf.mxu0
    %v1488 = vadd.f32 %v1391, %v1487
    %v1489 = vpop.f32.mrf.mxu0
    %1490 = vmatprep.mubr.bf16.mxu0 %v1320
    %1491 = vmatmul.mubr.bf16.gmra.mxu0 %v1319
    %v1492 = vpop.f32.mrf.mxu0
    %v1493 = vadd.f32 %v1396, %v1492
    %v1494 = vpop.f32.mrf.mxu0
    %v1495 = vpop.f32.mrf.mxu0
    %v1496 = vadd.f32 %v1399, %v1495
    %v1497 = vpop.f32.mrf.mxu0
    %1498 = vmatprep.mubr.bf16.mxu0 %v1324
    %1499 = vmatmul.mubr.bf16.gmra.mxu0 %v1323
    %v1500 = vpop.f32.mrf.mxu0
    %v1501 = vadd.f32 %v1404, %v1500
    %v1502 = vpop.f32.mrf.mxu0
    %v1503 = vpop.f32.mrf.mxu0
    %v1504 = vadd.f32 %v1407, %v1503
    %v1505 = vpop.f32.mrf.mxu0
    %1506 = vmatprep.mubr.bf16.mxu0 %v1328
    %1507 = vmatmul.mubr.bf16.gmra.mxu0 %v1327
    %v1508 = vpop.f32.mrf.mxu0
    %v1509 = vadd.f32 %v1412, %v1508
    %v1510 = vpop.f32.mrf.mxu0
    %v1511 = vpop.f32.mrf.mxu0
    %v1512 = vadd.f32 %v1415, %v1511
    %v1513 = vpop.f32.mrf.mxu0
    %1514 = vmatprep.mubr.bf16.mxu0 %v1332
    %1515 = vmatmul.mubr.bf16.gmra.mxu0 %v1331
    %v1516 = vpop.f32.mrf.mxu0
    %v1517 = vadd.f32 %v1420, %v1516
    %v1518 = vpop.f32.mrf.mxu0
    %v1519 = vpop.f32.mrf.mxu0
    %v1520 = vadd.f32 %v1423, %v1519
    %v1521 = vpop.f32.mrf.mxu0
    %1522 = vmatprep.mubr.bf16.mxu0 %v1336
    %1523 = vmatmul.mubr.bf16.gmra.mxu0 %v1335
    %v1524 = vpop.f32.mrf.mxu0
    %v1525 = vadd.f32 %v1428, %v1524
    %v1526 = vpop.f32.mrf.mxu0
    %v1527 = vpop.f32.mrf.mxu0
    %v1528 = vadd.f32 %v1431, %v1527
    %v1529 = vpop.f32.mrf.mxu0
    %1530 = vdwg.mxu0
    %1531 = vadd.xlane.f32.xlu0 %v1469
    %v1532 = vpop.xlane.xlu0 %1531
    %1533 = vadd.xlane.f32.xlu0 %v1472
    %v1534 = vpop.xlane.xlu0 %1533
    %1535 = vadd.xlane.f32.xlu0 %v1477
    %v1536 = vpop.xlane.xlu0 %1535
    %1537 = vadd.xlane.f32.xlu0 %v1480
    %v1538 = vpop.xlane.xlu0 %1537
    %1539 = vadd.xlane.f32.xlu0 %v1485
    %v1540 = vpop.xlane.xlu0 %1539
    %1541 = vadd.xlane.f32.xlu0 %v1488
    %v1542 = vpop.xlane.xlu0 %1541
    %1543 = vadd.xlane.f32.xlu0 %v1493
    %v1544 = vpop.xlane.xlu0 %1543
    %1545 = vadd.xlane.f32.xlu0 %v1496
    %v1546 = vpop.xlane.xlu0 %1545
    %1547 = vadd.xlane.f32.xlu0 %v1501
    %v1548 = vpop.xlane.xlu0 %1547
    %1549 = vadd.xlane.f32.xlu0 %v1504
    %v1550 = vpop.xlane.xlu0 %1549
    %1551 = vadd.xlane.f32.xlu0 %v1509
    %v1552 = vpop.xlane.xlu0 %1551
    %1553 = vadd.xlane.f32.xlu0 %v1512
    %v1554 = vpop.xlane.xlu0 %1553
    %1555 = vadd.xlane.f32.xlu0 %v1517
    %v1556 = vpop.xlane.xlu0 %1555
    %1557 = vadd.xlane.f32.xlu0 %v1520
    %v1558 = vpop.xlane.xlu0 %1557
    %1559 = vadd.xlane.f32.xlu0 %v1525
    %v1560 = vpop.xlane.xlu0 %1559
    %1561 = vadd.xlane.f32.xlu0 %v1528
    %v1562 = vpop.xlane.xlu0 %1561
    %v1563 = vmul.f32 %v1532, %v755
    %v1564 = vmul.f32 %v1534, %v755
    %v1565 = vmul.f32 %v1536, %v755
    %v1566 = vmul.f32 %v1538, %v755
    %v1567 = vmul.f32 %v1540, %v755
    %v1568 = vmul.f32 %v1542, %v755
    %v1569 = vmul.f32 %v1544, %v755
    %v1570 = vmul.f32 %v1546, %v755
    %v1571 = vmul.f32 %v1548, %v755
    %v1572 = vmul.f32 %v1550, %v755
    %v1573 = vmul.f32 %v1552, %v755
    %v1574 = vmul.f32 %v1554, %v755
    %v1575 = vmul.f32 %v1556, %v755
    %v1576 = vmul.f32 %v1558, %v755
    %v1577 = vmul.f32 %v1560, %v755
    %v1578 = vmul.f32 %v1562, %v755
    %v1579 = vsub.f32 %v1469, %v1563
    %v1580 = vsub.f32 %v1472, %v1564
    %v1581 = vsub.f32 %v1477, %v1565
    %v1582 = vsub.f32 %v1480, %v1566
    %v1583 = vsub.f32 %v1485, %v1567
    %v1584 = vsub.f32 %v1488, %v1568
    %v1585 = vsub.f32 %v1493, %v1569
    %v1586 = vsub.f32 %v1496, %v1570
    %v1587 = vsub.f32 %v1501, %v1571
    %v1588 = vsub.f32 %v1504, %v1572
    %v1589 = vsub.f32 %v1509, %v1573
    %v1590 = vsub.f32 %v1512, %v1574
    %v1591 = vsub.f32 %v1517, %v1575
    %v1592 = vsub.f32 %v1520, %v1576
    %v1593 = vsub.f32 %v1525, %v1577
    %v1594 = vsub.f32 %v1528, %v1578
    %v1595 = vmul.f32 %v1579, %v1579
    %v1596 = vmul.f32 %v1580, %v1580
    %v1597 = vmul.f32 %v1581, %v1581
    %v1598 = vmul.f32 %v1582, %v1582
    %v1599 = vmul.f32 %v1583, %v1583
    %v1600 = vmul.f32 %v1584, %v1584
    %v1601 = vmul.f32 %v1585, %v1585
    %v1602 = vmul.f32 %v1586, %v1586
    %v1603 = vmul.f32 %v1587, %v1587
    %v1604 = vmul.f32 %v1588, %v1588
    %v1605 = vmul.f32 %v1589, %v1589
    %v1606 = vmul.f32 %v1590, %v1590
    %v1607 = vmul.f32 %v1591, %v1591
    %v1608 = vmul.f32 %v1592, %v1592
    %v1609 = vmul.f32 %v1593, %v1593
    %v1610 = vmul.f32 %v1594, %v1594
    %1611 = vadd.xlane.f32.xlu0 %v1595
    %v1612 = vpop.xlane.xlu0 %1611
    %1613 = vadd.xlane.f32.xlu0 %v1596
    %v1614 = vpop.xlane.xlu0 %1613
    %1615 = vadd.xlane.f32.xlu0 %v1597
    %v1616 = vpop.xlane.xlu0 %1615
    %1617 = vadd.xlane.f32.xlu0 %v1598
    %v1618 = vpop.xlane.xlu0 %1617
    %1619 = vadd.xlane.f32.xlu0 %v1599
    %v1620 = vpop.xlane.xlu0 %1619
    %1621 = vadd.xlane.f32.xlu0 %v1600
    %v1622 = vpop.xlane.xlu0 %1621
    %1623 = vadd.xlane.f32.xlu0 %v1601
    %v1624 = vpop.xlane.xlu0 %1623
    %1625 = vadd.xlane.f32.xlu0 %v1602
    %v1626 = vpop.xlane.xlu0 %1625
    %1627 = vadd.xlane.f32.xlu0 %v1603
    %v1628 = vpop.xlane.xlu0 %1627
    %1629 = vadd.xlane.f32.xlu0 %v1604
    %v1630 = vpop.xlane.xlu0 %1629
    %1631 = vadd.xlane.f32.xlu0 %v1605
    %v1632 = vpop.xlane.xlu0 %1631
    %1633 = vadd.xlane.f32.xlu0 %v1606
    %v1634 = vpop.xlane.xlu0 %1633
    %1635 = vadd.xlane.f32.xlu0 %v1607
    %v1636 = vpop.xlane.xlu0 %1635
    %1637 = vadd.xlane.f32.xlu0 %v1608
    %v1638 = vpop.xlane.xlu0 %1637
    %1639 = vadd.xlane.f32.xlu0 %v1609
    %v1640 = vpop.xlane.xlu0 %1639
    %1641 = vadd.xlane.f32.xlu0 %v1610
    %v1642 = vpop.xlane.xlu0 %1641
    %v1643 = vmul.f32 %v1612, %v755
    %v1644 = vmul.f32 %v1614, %v755
    %v1645 = vmul.f32 %v1616, %v755
    %v1646 = vmul.f32 %v1618, %v755
    %v1647 = vmul.f32 %v1620, %v755
    %v1648 = vmul.f32 %v1622, %v755
    %v1649 = vmul.f32 %v1624, %v755
    %v1650 = vmul.f32 %v1626, %v755
    %v1651 = vmul.f32 %v1628, %v755
    %v1652 = vmul.f32 %v1630, %v755
    %v1653 = vmul.f32 %v1632, %v755
    %v1654 = vmul.f32 %v1634, %v755
    %v1655 = vmul.f32 %v1636, %v755
    %v1656 = vmul.f32 %v1638, %v755
    %v1657 = vmul.f32 %v1640, %v755
    %v1658 = vmul.f32 %v1642, %v755
    %v1659 = vadd.f32 %v1643, 1e-05
    %v1660 = vadd.f32 %v1644, 1e-05
    %v1661 = vadd.f32 %v1645, 1e-05
    %v1662 = vadd.f32 %v1646, 1e-05
    %v1663 = vadd.f32 %v1647, 1e-05
    %v1664 = vadd.f32 %v1648, 1e-05
    %v1665 = vadd.f32 %v1649, 1e-05
    %v1666 = vadd.f32 %v1650, 1e-05
    %v1667 = vadd.f32 %v1651, 1e-05
    %v1668 = vadd.f32 %v1652, 1e-05
    %v1669 = vadd.f32 %v1653, 1e-05
    %v1670 = vadd.f32 %v1654, 1e-05
    %v1671 = vadd.f32 %v1655, 1e-05
    %v1672 = vadd.f32 %v1656, 1e-05
    %v1673 = vadd.f32 %v1657, 1e-05
    %v1674 = vadd.f32 %v1658, 1e-05
    %v1675 = vrsqrt.pop %v1659
    %v1676 = vrsqrt.pop %v1660
    %v1677 = vrsqrt.pop %v1661
    %v1678 = vrsqrt.pop %v1662
    %v1679 = vrsqrt.pop %v1663
    %v1680 = vrsqrt.pop %v1664
    %v1681 = vrsqrt.pop %v1665
    %v1682 = vrsqrt.pop %v1666
    %v1683 = vrsqrt.pop %v1667
    %v1684 = vrsqrt.pop %v1668
    %v1685 = vrsqrt.pop %v1669
    %v1686 = vrsqrt.pop %v1670
    %v1687 = vrsqrt.pop %v1671
    %v1688 = vrsqrt.pop %v1672
    %v1689 = vrsqrt.pop %v1673
    %v1690 = vrsqrt.pop %v1674
    %v1691 = vmul.f32 %v1579, %v1675
    %v1692 = vmul.f32 %v1580, %v1676
    %v1693 = vmul.f32 %v1581, %v1677
    %v1694 = vmul.f32 %v1582, %v1678
    %v1695 = vmul.f32 %v1583, %v1679
    %v1696 = vmul.f32 %v1584, %v1680
    %v1697 = vmul.f32 %v1585, %v1681
    %v1698 = vmul.f32 %v1586, %v1682
    %v1699 = vmul.f32 %v1587, %v1683
    %v1700 = vmul.f32 %v1588, %v1684
    %v1701 = vmul.f32 %v1589, %v1685
    %v1702 = vmul.f32 %v1590, %v1686
    %v1703 = vmul.f32 %v1591, %v1687
    %v1704 = vmul.f32 %v1592, %v1688
    %v1705 = vmul.f32 %v1593, %v1689
    %v1706 = vmul.f32 %v1594, %v1690
    %v1707 = vmul.f32 %v1691, %v903
    %v1708 = vmul.f32 %v1692, %v903
    %v1709 = vmul.f32 %v1693, %v903
    %v1710 = vmul.f32 %v1694, %v903
    %v1711 = vmul.f32 %v1695, %v903
    %v1712 = vmul.f32 %v1696, %v903
    %v1713 = vmul.f32 %v1697, %v903
    %v1714 = vmul.f32 %v1698, %v903
    %v1715 = vmul.f32 %v1699, %v903
    %v1716 = vmul.f32 %v1700, %v903
    %v1717 = vmul.f32 %v1701, %v903
    %v1718 = vmul.f32 %v1702, %v903
    %v1719 = vmul.f32 %v1703, %v903
    %v1720 = vmul.f32 %v1704, %v903
    %v1721 = vmul.f32 %v1705, %v903
    %v1722 = vmul.f32 %v1706, %v903
    %v1723 = vadd.f32 %v1707, %v923
    %v1724 = vadd.f32 %v1708, %v923
    %v1725 = vadd.f32 %v1709, %v923
    %v1726 = vadd.f32 %v1710, %v923
    %v1727 = vadd.f32 %v1711, %v923
    %v1728 = vadd.f32 %v1712, %v923
    %v1729 = vadd.f32 %v1713, %v923
    %v1730 = vadd.f32 %v1714, %v923
    %v1731 = vadd.f32 %v1715, %v923
    %v1732 = vadd.f32 %v1716, %v923
    %v1733 = vadd.f32 %v1717, %v923
    %v1734 = vadd.f32 %v1718, %v923
    %v1735 = vadd.f32 %v1719, %v923
    %v1736 = vadd.f32 %v1720, %v923
    %v1737 = vadd.f32 %v1721, %v923
    %v1738 = vadd.f32 %v1722, %v923
    %1740 = vset.pattern.permute.xlu0 0
    %1741 = vperm.xlu0 %1740, %v1113
    %v1742 = vpop.permute.xlu0 %1741
    %1745 = vset.pattern.permute.xlu0 0
    %1746 = vperm.xlu0 %1745, %v1114
    %v1747 = vpop.permute.xlu0 %1746
    %1750 = vset.pattern.permute.xlu0 0
    %1751 = vperm.xlu0 %1750, %v1115
    %v1752 = vpop.permute.xlu0 %1751
    %1755 = vset.pattern.permute.xlu0 0
    %1756 = vperm.xlu0 %1755, %v1116
    %v1757 = vpop.permute.xlu0 %1756
    %1760 = vset.pattern.permute.xlu0 0
    %1761 = vperm.xlu0 %1760, %v1117
    %v1762 = vpop.permute.xlu0 %1761
    %1765 = vset.pattern.permute.xlu0 0
    %1766 = vperm.xlu0 %1765, %v1118
    %v1767 = vpop.permute.xlu0 %1766
    %1770 = vset.pattern.permute.xlu0 0
    %1771 = vperm.xlu0 %1770, %v1119
    %v1772 = vpop.permute.xlu0 %1771
    %1775 = vset.pattern.permute.xlu0 0
    %1776 = vperm.xlu0 %1775, %v1120
    %v1777 = vpop.permute.xlu0 %1776
    %1780 = vset.pattern.permute.xlu0 0
    %1781 = vperm.xlu0 %1780, %v1121
    %v1782 = vpop.permute.xlu0 %1781
    %1785 = vset.pattern.permute.xlu0 0
    %1786 = vperm.xlu0 %1785, %v1122
    %v1787 = vpop.permute.xlu0 %1786
    %1790 = vset.pattern.permute.xlu0 0
    %1791 = vperm.xlu0 %1790, %v1123
    %v1792 = vpop.permute.xlu0 %1791
    %1795 = vset.pattern.permute.xlu0 0
    %1796 = vperm.xlu0 %1795, %v1124
    %v1797 = vpop.permute.xlu0 %1796
    %1800 = vset.pattern.permute.xlu0 0
    %1801 = vperm.xlu0 %1800, %v1125
    %v1802 = vpop.permute.xlu0 %1801
    %1805 = vset.pattern.permute.xlu0 0
    %1806 = vperm.xlu0 %1805, %v1126
    %v1807 = vpop.permute.xlu0 %1806
    %1810 = vset.pattern.permute.xlu0 0
    %1811 = vperm.xlu0 %1810, %v1127
    %v1812 = vpop.permute.xlu0 %1811
    %1815 = vset.pattern.permute.xlu0 0
    %1816 = vperm.xlu0 %1815, %v1128
    %v1817 = vpop.permute.xlu0 %1816
    %v1819 = vmul.f32 %v1723, %v1742
    %v1820 = vmul.f32 %v1724, %v1747
    %v1821 = vmul.f32 %v1725, %v1752
    %v1822 = vmul.f32 %v1726, %v1757
    %v1823 = vmul.f32 %v1727, %v1762
    %v1824 = vmul.f32 %v1728, %v1767
    %v1825 = vmul.f32 %v1729, %v1772
    %v1826 = vmul.f32 %v1730, %v1777
    %v1827 = vmul.f32 %v1731, %v1782
    %v1828 = vmul.f32 %v1732, %v1787
    %v1829 = vmul.f32 %v1733, %v1792
    %v1830 = vmul.f32 %v1734, %v1797
    %v1831 = vmul.f32 %v1735, %v1802
    %v1832 = vmul.f32 %v1736, %v1807
    %v1833 = vmul.f32 %v1737, %v1812
    %v1834 = vmul.f32 %v1738, %v1817
    %v1835 = vadd.f32 %v1819, %v1820
    %v1836 = vadd.f32 %v1835, %v1821
    %v1837 = vadd.f32 %v1836, %v1822
    %v1838 = vadd.f32 %v1837, %v1823
    %v1839 = vadd.f32 %v1838, %v1824
    %v1840 = vadd.f32 %v1839, %v1825
    %v1841 = vadd.f32 %v1840, %v1826
    %v1842 = vadd.f32 %v1841, %v1827
    %v1843 = vadd.f32 %v1842, %v1828
    %v1844 = vadd.f32 %v1843, %v1829
    %v1845 = vadd.f32 %v1844, %v1830
    %v1846 = vadd.f32 %v1845, %v1831
    %v1847 = vadd.f32 %v1846, %v1832
    %v1848 = vadd.f32 %v1847, %v1833
    %v1849 = vadd.f32 %v1848, %v1834
    %v1850 = vrot.slane %v1849, 4
    %v1851 = vadd.f32 %v1849, %v1850
    %v1852 = vrot.slane %v1851, 2
    %v1853 = vadd.f32 %v1851, %v1852
    %v1854 = vrot.slane %v1853, 1
    %v1855 = vadd.f32 %v1853, %v1854
    %v1856 = vsel %vm1057, %v1113, 0.0
    %v1857 = vsel %vm1057, %v1114, 0.0
    %v1858 = vadd.f32 %v1856, %v1857
    %v1859 = vsel %vm1057, %v1115, 0.0
    %v1860 = vadd.f32 %v1858, %v1859
    %v1861 = vsel %vm1057, %v1116, 0.0
    %v1862 = vadd.f32 %v1860, %v1861
    %v1863 = vsel %vm1057, %v1117, 0.0
    %v1864 = vadd.f32 %v1862, %v1863
    %v1865 = vsel %vm1057, %v1118, 0.0
    %v1866 = vadd.f32 %v1864, %v1865
    %v1867 = vsel %vm1057, %v1119, 0.0
    %v1868 = vadd.f32 %v1866, %v1867
    %v1869 = vsel %vm1057, %v1120, 0.0
    %v1870 = vadd.f32 %v1868, %v1869
    %v1871 = vsel %vm1057, %v1121, 0.0
    %v1872 = vadd.f32 %v1870, %v1871
    %v1873 = vsel %vm1057, %v1122, 0.0
    %v1874 = vadd.f32 %v1872, %v1873
    %v1875 = vsel %vm1057, %v1123, 0.0
    %v1876 = vadd.f32 %v1874, %v1875
    %v1877 = vsel %vm1057, %v1124, 0.0
    %v1878 = vadd.f32 %v1876, %v1877
    %v1879 = vsel %vm1057, %v1125, 0.0
    %v1880 = vadd.f32 %v1878, %v1879
    %v1881 = vsel %vm1057, %v1126, 0.0
    %v1882 = vadd.f32 %v1880, %v1881
    %v1883 = vsel %vm1057, %v1127, 0.0
    %v1884 = vadd.f32 %v1882, %v1883
    %v1885 = vsel %vm1057, %v1128, 0.0
    %v1886 = vadd.f32 %v1884, %v1885
    %v1887 = vrot.slane %v1886, 4
    %v1888 = vadd.f32 %v1886, %v1887
    %v1889 = vrot.slane %v1888, 2
    %v1890 = vadd.f32 %v1888, %v1889
    %v1891 = vrot.slane %v1890, 1
    %v1892 = vadd.f32 %v1890, %v1891
    %s1893 = scalar_lea.vmem %s0, 256
    %v1894 = vld [vmem:[%s1893] sm:$0xff]
    %v1895 = vld [vmem:[%s1893 + $0x8] sm:$0xff]
    %v1896 = vld [vmem:[%s1893 + $0x10] sm:$0xff]
    %v1897 = vld [vmem:[%s1893 + $0x18] sm:$0xff]
    %v1898 = vld [vmem:[%s1893 + $0x20] sm:$0xff]
    %v1899 = vld [vmem:[%s1893 + $0x28] sm:$0xff]
    %v1900 = vld [vmem:[%s1893 + $0x30] sm:$0xff]
    %v1901 = vld [vmem:[%s1893 + $0x38] sm:$0xff]
    %v1902 = vld [vmem:[%s1893 + $0x40] sm:$0xff]
    %v1903 = vld [vmem:[%s1893 + $0x48] sm:$0xff]
    %v1904 = vld [vmem:[%s1893 + $0x50] sm:$0xff]
    %v1905 = vld [vmem:[%s1893 + $0x58] sm:$0xff]
    %v1906 = vld [vmem:[%s1893 + $0x60] sm:$0xff]
    %v1907 = vld [vmem:[%s1893 + $0x68] sm:$0xff]
    %v1908 = vld [vmem:[%s1893 + $0x70] sm:$0xff]
    %v1909 = vld [vmem:[%s1893 + $0x78] sm:$0xff]
    %s1910 = scalar_lea.vmem %s1, 256
    %v1911 = vld [vmem:[%s1910] sm:$0xff]
    %v1912 = vld [vmem:[%s1910 + $0x8] sm:$0xff]
    %v1913 = vld [vmem:[%s1910 + $0x10] sm:$0xff]
    %v1914 = vld [vmem:[%s1910 + $0x18] sm:$0xff]
    %v1915 = vld [vmem:[%s1910 + $0x20] sm:$0xff]
    %v1916 = vld [vmem:[%s1910 + $0x28] sm:$0xff]
    %v1917 = vld [vmem:[%s1910 + $0x30] sm:$0xff]
    %v1918 = vld [vmem:[%s1910 + $0x38] sm:$0xff]
    %v1919 = vld [vmem:[%s1910 + $0x40] sm:$0xff]
    %v1920 = vld [vmem:[%s1910 + $0x48] sm:$0xff]
    %v1921 = vld [vmem:[%s1910 + $0x50] sm:$0xff]
    %v1922 = vld [vmem:[%s1910 + $0x58] sm:$0xff]
    %v1923 = vld [vmem:[%s1910 + $0x60] sm:$0xff]
    %v1924 = vld [vmem:[%s1910 + $0x68] sm:$0xff]
    %v1925 = vld [vmem:[%s1910 + $0x70] sm:$0xff]
    %v1926 = vld [vmem:[%s1910 + $0x78] sm:$0xff]
    %1927 = vset.pattern.permute.xlu0 0
    %1928 = vperm.xlu0 %1927, %v1894
    %v1929 = vpop.permute.xlu0 %1928
    %1930 = vset.pattern.permute.xlu0 0
    %1931 = vperm.xlu0 %1930, %v1895
    %v1932 = vpop.permute.xlu0 %1931
    %1933 = vset.pattern.permute.xlu0 0
    %1934 = vperm.xlu0 %1933, %v1896
    %v1935 = vpop.permute.xlu0 %1934
    %1936 = vset.pattern.permute.xlu0 0
    %1937 = vperm.xlu0 %1936, %v1897
    %v1938 = vpop.permute.xlu0 %1937
    %1939 = vset.pattern.permute.xlu0 0
    %1940 = vperm.xlu0 %1939, %v1898
    %v1941 = vpop.permute.xlu0 %1940
    %1942 = vset.pattern.permute.xlu0 0
    %1943 = vperm.xlu0 %1942, %v1899
    %v1944 = vpop.permute.xlu0 %1943
    %1945 = vset.pattern.permute.xlu0 0
    %1946 = vperm.xlu0 %1945, %v1900
    %v1947 = vpop.permute.xlu0 %1946
    %1948 = vset.pattern.permute.xlu0 0
    %1949 = vperm.xlu0 %1948, %v1901
    %v1950 = vpop.permute.xlu0 %1949
    %1951 = vset.pattern.permute.xlu0 0
    %1952 = vperm.xlu0 %1951, %v1902
    %v1953 = vpop.permute.xlu0 %1952
    %1954 = vset.pattern.permute.xlu0 0
    %1955 = vperm.xlu0 %1954, %v1903
    %v1956 = vpop.permute.xlu0 %1955
    %1957 = vset.pattern.permute.xlu0 0
    %1958 = vperm.xlu0 %1957, %v1904
    %v1959 = vpop.permute.xlu0 %1958
    %1960 = vset.pattern.permute.xlu0 0
    %1961 = vperm.xlu0 %1960, %v1905
    %v1962 = vpop.permute.xlu0 %1961
    %1963 = vset.pattern.permute.xlu0 0
    %1964 = vperm.xlu0 %1963, %v1906
    %v1965 = vpop.permute.xlu0 %1964
    %1966 = vset.pattern.permute.xlu0 0
    %1967 = vperm.xlu0 %1966, %v1907
    %v1968 = vpop.permute.xlu0 %1967
    %1969 = vset.pattern.permute.xlu0 0
    %1970 = vperm.xlu0 %1969, %v1908
    %v1971 = vpop.permute.xlu0 %1970
    %1972 = vset.pattern.permute.xlu0 0
    %1973 = vperm.xlu0 %1972, %v1909
    %v1974 = vpop.permute.xlu0 %1973
    %vm1975 = vcmp.eq.s32.totalorder %v1929, %v93
    %vm1976 = vcmp.eq.s32.totalorder %v1929, %v94
    %vm1977 = vcmp.eq.s32.totalorder %v1929, %v95
    %vm1978 = vcmp.eq.s32.totalorder %v1929, %v96
    %vm1979 = vcmp.eq.s32.totalorder %v1932, %v93
    %vm1980 = vcmp.eq.s32.totalorder %v1932, %v94
    %vm1981 = vcmp.eq.s32.totalorder %v1932, %v95
    %vm1982 = vcmp.eq.s32.totalorder %v1932, %v96
    %vm1983 = vcmp.eq.s32.totalorder %v1935, %v93
    %vm1984 = vcmp.eq.s32.totalorder %v1935, %v94
    %vm1985 = vcmp.eq.s32.totalorder %v1935, %v95
    %vm1986 = vcmp.eq.s32.totalorder %v1935, %v96
    %vm1987 = vcmp.eq.s32.totalorder %v1938, %v93
    %vm1988 = vcmp.eq.s32.totalorder %v1938, %v94
    %vm1989 = vcmp.eq.s32.totalorder %v1938, %v95
    %vm1990 = vcmp.eq.s32.totalorder %v1938, %v96
    %vm1991 = vcmp.eq.s32.totalorder %v1941, %v93
    %vm1992 = vcmp.eq.s32.totalorder %v1941, %v94
    %vm1993 = vcmp.eq.s32.totalorder %v1941, %v95
    %vm1994 = vcmp.eq.s32.totalorder %v1941, %v96
    %vm1995 = vcmp.eq.s32.totalorder %v1944, %v93
    %vm1996 = vcmp.eq.s32.totalorder %v1944, %v94
    %vm1997 = vcmp.eq.s32.totalorder %v1944, %v95
    %vm1998 = vcmp.eq.s32.totalorder %v1944, %v96
    %vm1999 = vcmp.eq.s32.totalorder %v1947, %v93
    %vm2000 = vcmp.eq.s32.totalorder %v1947, %v94
    %vm2001 = vcmp.eq.s32.totalorder %v1947, %v95
    %vm2002 = vcmp.eq.s32.totalorder %v1947, %v96
    %vm2003 = vcmp.eq.s32.totalorder %v1950, %v93
    %vm2004 = vcmp.eq.s32.totalorder %v1950, %v94
    %vm2005 = vcmp.eq.s32.totalorder %v1950, %v95
    %vm2006 = vcmp.eq.s32.totalorder %v1950, %v96
    %vm2007 = vcmp.eq.s32.totalorder %v1953, %v93
    %vm2008 = vcmp.eq.s32.totalorder %v1953, %v94
    %vm2009 = vcmp.eq.s32.totalorder %v1953, %v95
    %vm2010 = vcmp.eq.s32.totalorder %v1953, %v96
    %vm2011 = vcmp.eq.s32.totalorder %v1956, %v93
    %vm2012 = vcmp.eq.s32.totalorder %v1956, %v94
    %vm2013 = vcmp.eq.s32.totalorder %v1956, %v95
    %vm2014 = vcmp.eq.s32.totalorder %v1956, %v96
    %vm2015 = vcmp.eq.s32.totalorder %v1959, %v93
    %vm2016 = vcmp.eq.s32.totalorder %v1959, %v94
    %vm2017 = vcmp.eq.s32.totalorder %v1959, %v95
    %vm2018 = vcmp.eq.s32.totalorder %v1959, %v96
    %vm2019 = vcmp.eq.s32.totalorder %v1962, %v93
    %vm2020 = vcmp.eq.s32.totalorder %v1962, %v94
    %vm2021 = vcmp.eq.s32.totalorder %v1962, %v95
    %vm2022 = vcmp.eq.s32.totalorder %v1962, %v96
    %vm2023 = vcmp.eq.s32.totalorder %v1965, %v93
    %vm2024 = vcmp.eq.s32.totalorder %v1965, %v94
    %vm2025 = vcmp.eq.s32.totalorder %v1965, %v95
    %vm2026 = vcmp.eq.s32.totalorder %v1965, %v96
    %vm2027 = vcmp.eq.s32.totalorder %v1968, %v93
    %vm2028 = vcmp.eq.s32.totalorder %v1968, %v94
    %vm2029 = vcmp.eq.s32.totalorder %v1968, %v95
    %vm2030 = vcmp.eq.s32.totalorder %v1968, %v96
    %vm2031 = vcmp.eq.s32.totalorder %v1971, %v93
    %vm2032 = vcmp.eq.s32.totalorder %v1971, %v94
    %vm2033 = vcmp.eq.s32.totalorder %v1971, %v95
    %vm2034 = vcmp.eq.s32.totalorder %v1971, %v96
    %vm2035 = vcmp.eq.s32.totalorder %v1974, %v93
    %vm2036 = vcmp.eq.s32.totalorder %v1974, %v94
    %vm2037 = vcmp.eq.s32.totalorder %v1974, %v95
    %vm2038 = vcmp.eq.s32.totalorder %v1974, %v96
    %v2039 = vsel %vm1975, 1.0, 0.0
    %v2040 = vsel %vm1976, 1.0, 0.0
    %v2041 = vsel %vm1977, 1.0, 0.0
    %v2042 = vsel %vm1978, 1.0, 0.0
    %v2043 = vsel %vm1979, 1.0, 0.0
    %v2044 = vsel %vm1980, 1.0, 0.0
    %v2045 = vsel %vm1981, 1.0, 0.0
    %v2046 = vsel %vm1982, 1.0, 0.0
    %v2047 = vsel %vm1983, 1.0, 0.0
    %v2048 = vsel %vm1984, 1.0, 0.0
    %v2049 = vsel %vm1985, 1.0, 0.0
    %v2050 = vsel %vm1986, 1.0, 0.0
    %v2051 = vsel %vm1987, 1.0, 0.0
    %v2052 = vsel %vm1988, 1.0, 0.0
    %v2053 = vsel %vm1989, 1.0, 0.0
    %v2054 = vsel %vm1990, 1.0, 0.0
    %v2055 = vsel %vm1991, 1.0, 0.0
    %v2056 = vsel %vm1992, 1.0, 0.0
    %v2057 = vsel %vm1993, 1.0, 0.0
    %v2058 = vsel %vm1994, 1.0, 0.0
    %v2059 = vsel %vm1995, 1.0, 0.0
    %v2060 = vsel %vm1996, 1.0, 0.0
    %v2061 = vsel %vm1997, 1.0, 0.0
    %v2062 = vsel %vm1998, 1.0, 0.0
    %v2063 = vsel %vm1999, 1.0, 0.0
    %v2064 = vsel %vm2000, 1.0, 0.0
    %v2065 = vsel %vm2001, 1.0, 0.0
    %v2066 = vsel %vm2002, 1.0, 0.0
    %v2067 = vsel %vm2003, 1.0, 0.0
    %v2068 = vsel %vm2004, 1.0, 0.0
    %v2069 = vsel %vm2005, 1.0, 0.0
    %v2070 = vsel %vm2006, 1.0, 0.0
    %v2071 = vsel %vm2007, 1.0, 0.0
    %v2072 = vsel %vm2008, 1.0, 0.0
    %v2073 = vsel %vm2009, 1.0, 0.0
    %v2074 = vsel %vm2010, 1.0, 0.0
    %v2075 = vsel %vm2011, 1.0, 0.0
    %v2076 = vsel %vm2012, 1.0, 0.0
    %v2077 = vsel %vm2013, 1.0, 0.0
    %v2078 = vsel %vm2014, 1.0, 0.0
    %v2079 = vsel %vm2015, 1.0, 0.0
    %v2080 = vsel %vm2016, 1.0, 0.0
    %v2081 = vsel %vm2017, 1.0, 0.0
    %v2082 = vsel %vm2018, 1.0, 0.0
    %v2083 = vsel %vm2019, 1.0, 0.0
    %v2084 = vsel %vm2020, 1.0, 0.0
    %v2085 = vsel %vm2021, 1.0, 0.0
    %v2086 = vsel %vm2022, 1.0, 0.0
    %v2087 = vsel %vm2023, 1.0, 0.0
    %v2088 = vsel %vm2024, 1.0, 0.0
    %v2089 = vsel %vm2025, 1.0, 0.0
    %v2090 = vsel %vm2026, 1.0, 0.0
    %v2091 = vsel %vm2027, 1.0, 0.0
    %v2092 = vsel %vm2028, 1.0, 0.0
    %v2093 = vsel %vm2029, 1.0, 0.0
    %v2094 = vsel %vm2030, 1.0, 0.0
    %v2095 = vsel %vm2031, 1.0, 0.0
    %v2096 = vsel %vm2032, 1.0, 0.0
    %v2097 = vsel %vm2033, 1.0, 0.0
    %v2098 = vsel %vm2034, 1.0, 0.0
    %v2099 = vsel %vm2035, 1.0, 0.0
    %v2100 = vsel %vm2036, 1.0, 0.0
    %v2101 = vsel %vm2037, 1.0, 0.0
    %v2102 = vsel %vm2038, 1.0, 0.0
    %v2103 = vpack.c.bf16 %v2043, %v2039
    %v2104 = vpack.c.bf16 %v2044, %v2040
    %v2105 = vpack.c.bf16 %v2045, %v2041
    %v2106 = vpack.c.bf16 %v2046, %v2042
    %v2107 = vpack.c.bf16 %v2051, %v2047
    %v2108 = vpack.c.bf16 %v2052, %v2048
    %v2109 = vpack.c.bf16 %v2053, %v2049
    %v2110 = vpack.c.bf16 %v2054, %v2050
    %v2111 = vpack.c.bf16 %v2059, %v2055
    %v2112 = vpack.c.bf16 %v2060, %v2056
    %v2113 = vpack.c.bf16 %v2061, %v2057
    %v2114 = vpack.c.bf16 %v2062, %v2058
    %v2115 = vpack.c.bf16 %v2067, %v2063
    %v2116 = vpack.c.bf16 %v2068, %v2064
    %v2117 = vpack.c.bf16 %v2069, %v2065
    %v2118 = vpack.c.bf16 %v2070, %v2066
    %v2119 = vpack.c.bf16 %v2075, %v2071
    %v2120 = vpack.c.bf16 %v2076, %v2072
    %v2121 = vpack.c.bf16 %v2077, %v2073
    %v2122 = vpack.c.bf16 %v2078, %v2074
    %v2123 = vpack.c.bf16 %v2083, %v2079
    %v2124 = vpack.c.bf16 %v2084, %v2080
    %v2125 = vpack.c.bf16 %v2085, %v2081
    %v2126 = vpack.c.bf16 %v2086, %v2082
    %v2127 = vpack.c.bf16 %v2091, %v2087
    %v2128 = vpack.c.bf16 %v2092, %v2088
    %v2129 = vpack.c.bf16 %v2093, %v2089
    %v2130 = vpack.c.bf16 %v2094, %v2090
    %v2131 = vpack.c.bf16 %v2099, %v2095
    %v2132 = vpack.c.bf16 %v2100, %v2096
    %v2133 = vpack.c.bf16 %v2101, %v2097
    %v2134 = vpack.c.bf16 %v2102, %v2098
    %2135 = vmatprep.subr.bf16.mxu0 0
    %2136 = vmatpush1.bf16.msra.mxu0 %v472
    %2137 = vmatprep.subr.bf16.mxu0 0
    %2138 = vmatpush1.bf16.msra.mxu0 %v471
    %2139 = vmatprep.subr.bf16.mxu0 0
    %2140 = vmatpush1.bf16.msra.mxu0 %v470
    %2141 = vmatprep.subr.bf16.mxu0 0
    %2142 = vmatpush1.bf16.msra.mxu0 %v469
    %2143 = vmatprep.subr.bf16.mxu0 0
    %2144 = vmatpush1.bf16.msra.mxu0 %v468
    %2145 = vmatprep.subr.bf16.mxu0 0
    %2146 = vmatpush1.bf16.msra.mxu0 %v467
    %2147 = vmatprep.subr.bf16.mxu0 0
    %2148 = vmatpush1.bf16.msra.mxu0 %v466
    %2149 = vmatprep.subr.bf16.mxu0 0
    %2150 = vmatpush1.bf16.msra.mxu0 %v465
    %2151 = vmatprep.subr.bf16.mxu0 0
    %2152 = vmatpush2.bf16.msra.mxu0 %v480
    %2153 = vmatprep.subr.bf16.mxu0 0
    %2154 = vmatpush2.bf16.msra.mxu0 %v479
    %2155 = vmatprep.subr.bf16.mxu0 0
    %2156 = vmatpush2.bf16.msra.mxu0 %v478
    %2157 = vmatprep.subr.bf16.mxu0 0
    %2158 = vmatpush2.bf16.msra.mxu0 %v477
    %2159 = vmatprep.subr.bf16.mxu0 0
    %2160 = vmatpush2.bf16.msra.mxu0 %v476
    %2161 = vmatprep.subr.bf16.mxu0 0
    %2162 = vmatpush2.bf16.msra.mxu0 %v475
    %2163 = vmatprep.subr.bf16.mxu0 0
    %2164 = vmatpush2.bf16.msra.mxu0 %v474
    %2165 = vmatprep.subr.bf16.mxu0 0
    %2166 = vmatpush2.bf16.msra.mxu0 %v473
    %2167 = vmatprep.mubr.bf16.mxu0 %v2104
    %2168 = vmatmul.mubr.bf16.gmra.mxu0 %v2103
    %v2169 = vpop.f32.mrf.mxu0
    %v2170 = vadd.f32 0.0, %v2169
    %v2171 = vpop.f32.mrf.mxu0
    %v2172 = vpop.f32.mrf.mxu0
    %v2173 = vadd.f32 0.0, %v2172
    %v2174 = vpop.f32.mrf.mxu0
    %2175 = vmatprep.mubr.bf16.mxu0 %v2108
    %2176 = vmatmul.mubr.bf16.gmra.mxu0 %v2107
    %v2177 = vpop.f32.mrf.mxu0
    %v2178 = vadd.f32 0.0, %v2177
    %v2179 = vpop.f32.mrf.mxu0
    %v2180 = vpop.f32.mrf.mxu0
    %v2181 = vadd.f32 0.0, %v2180
    %v2182 = vpop.f32.mrf.mxu0
    %2183 = vmatprep.mubr.bf16.mxu0 %v2112
    %2184 = vmatmul.mubr.bf16.gmra.mxu0 %v2111
    %v2185 = vpop.f32.mrf.mxu0
    %v2186 = vadd.f32 0.0, %v2185
    %v2187 = vpop.f32.mrf.mxu0
    %v2188 = vpop.f32.mrf.mxu0
    %v2189 = vadd.f32 0.0, %v2188
    %v2190 = vpop.f32.mrf.mxu0
    %2191 = vmatprep.mubr.bf16.mxu0 %v2116
    %2192 = vmatmul.mubr.bf16.gmra.mxu0 %v2115
    %v2193 = vpop.f32.mrf.mxu0
    %v2194 = vadd.f32 0.0, %v2193
    %v2195 = vpop.f32.mrf.mxu0
    %v2196 = vpop.f32.mrf.mxu0
    %v2197 = vadd.f32 0.0, %v2196
    %v2198 = vpop.f32.mrf.mxu0
    %2199 = vmatprep.mubr.bf16.mxu0 %v2120
    %2200 = vmatmul.mubr.bf16.gmra.mxu0 %v2119
    %v2201 = vpop.f32.mrf.mxu0
    %v2202 = vadd.f32 0.0, %v2201
    %v2203 = vpop.f32.mrf.mxu0
    %v2204 = vpop.f32.mrf.mxu0
    %v2205 = vadd.f32 0.0, %v2204
    %v2206 = vpop.f32.mrf.mxu0
    %2207 = vmatprep.mubr.bf16.mxu0 %v2124
    %2208 = vmatmul.mubr.bf16.gmra.mxu0 %v2123
    %v2209 = vpop.f32.mrf.mxu0
    %v2210 = vadd.f32 0.0, %v2209
    %v2211 = vpop.f32.mrf.mxu0
    %v2212 = vpop.f32.mrf.mxu0
    %v2213 = vadd.f32 0.0, %v2212
    %v2214 = vpop.f32.mrf.mxu0
    %2215 = vmatprep.mubr.bf16.mxu0 %v2128
    %2216 = vmatmul.mubr.bf16.gmra.mxu0 %v2127
    %v2217 = vpop.f32.mrf.mxu0
    %v2218 = vadd.f32 0.0, %v2217
    %v2219 = vpop.f32.mrf.mxu0
    %v2220 = vpop.f32.mrf.mxu0
    %v2221 = vadd.f32 0.0, %v2220
    %v2222 = vpop.f32.mrf.mxu0
    %2223 = vmatprep.mubr.bf16.mxu0 %v2132
    %2224 = vmatmul.mubr.bf16.gmra.mxu0 %v2131
    %v2225 = vpop.f32.mrf.mxu0
    %v2226 = vadd.f32 0.0, %v2225
    %v2227 = vpop.f32.mrf.mxu0
    %v2228 = vpop.f32.mrf.mxu0
    %v2229 = vadd.f32 0.0, %v2228
    %v2230 = vpop.f32.mrf.mxu0
    %2231 = vdwg.mxu0
    %2232 = vmatprep.subr.bf16.mxu0 0
    %2233 = vmatpush1.bf16.msra.mxu0 %v488
    %2234 = vmatprep.subr.bf16.mxu0 0
    %2235 = vmatpush1.bf16.msra.mxu0 %v487
    %2236 = vmatprep.subr.bf16.mxu0 0
    %2237 = vmatpush1.bf16.msra.mxu0 %v486
    %2238 = vmatprep.subr.bf16.mxu0 0
    %2239 = vmatpush1.bf16.msra.mxu0 %v485
    %2240 = vmatprep.subr.bf16.mxu0 0
    %2241 = vmatpush1.bf16.msra.mxu0 %v484
    %2242 = vmatprep.subr.bf16.mxu0 0
    %2243 = vmatpush1.bf16.msra.mxu0 %v483
    %2244 = vmatprep.subr.bf16.mxu0 0
    %2245 = vmatpush1.bf16.msra.mxu0 %v482
    %2246 = vmatprep.subr.bf16.mxu0 0
    %2247 = vmatpush1.bf16.msra.mxu0 %v481
    %2248 = vmatprep.subr.bf16.mxu0 0
    %2249 = vmatpush2.bf16.msra.mxu0 %v496
    %2250 = vmatprep.subr.bf16.mxu0 0
    %2251 = vmatpush2.bf16.msra.mxu0 %v495
    %2252 = vmatprep.subr.bf16.mxu0 0
    %2253 = vmatpush2.bf16.msra.mxu0 %v494
    %2254 = vmatprep.subr.bf16.mxu0 0
    %2255 = vmatpush2.bf16.msra.mxu0 %v493
    %2256 = vmatprep.subr.bf16.mxu0 0
    %2257 = vmatpush2.bf16.msra.mxu0 %v492
    %2258 = vmatprep.subr.bf16.mxu0 0
    %2259 = vmatpush2.bf16.msra.mxu0 %v491
    %2260 = vmatprep.subr.bf16.mxu0 0
    %2261 = vmatpush2.bf16.msra.mxu0 %v490
    %2262 = vmatprep.subr.bf16.mxu0 0
    %2263 = vmatpush2.bf16.msra.mxu0 %v489
    %2264 = vmatprep.mubr.bf16.mxu0 %v2106
    %2265 = vmatmul.mubr.bf16.gmra.mxu0 %v2105
    %v2266 = vpop.f32.mrf.mxu0
    %v2267 = vadd.f32 %v2170, %v2266
    %v2268 = vpop.f32.mrf.mxu0
    %v2269 = vpop.f32.mrf.mxu0
    %v2270 = vadd.f32 %v2173, %v2269
    %v2271 = vpop.f32.mrf.mxu0
    %2272 = vmatprep.mubr.bf16.mxu0 %v2110
    %2273 = vmatmul.mubr.bf16.gmra.mxu0 %v2109
    %v2274 = vpop.f32.mrf.mxu0
    %v2275 = vadd.f32 %v2178, %v2274
    %v2276 = vpop.f32.mrf.mxu0
    %v2277 = vpop.f32.mrf.mxu0
    %v2278 = vadd.f32 %v2181, %v2277
    %v2279 = vpop.f32.mrf.mxu0
    %2280 = vmatprep.mubr.bf16.mxu0 %v2114
    %2281 = vmatmul.mubr.bf16.gmra.mxu0 %v2113
    %v2282 = vpop.f32.mrf.mxu0
    %v2283 = vadd.f32 %v2186, %v2282
    %v2284 = vpop.f32.mrf.mxu0
    %v2285 = vpop.f32.mrf.mxu0
    %v2286 = vadd.f32 %v2189, %v2285
    %v2287 = vpop.f32.mrf.mxu0
    %2288 = vmatprep.mubr.bf16.mxu0 %v2118
    %2289 = vmatmul.mubr.bf16.gmra.mxu0 %v2117
    %v2290 = vpop.f32.mrf.mxu0
    %v2291 = vadd.f32 %v2194, %v2290
    %v2292 = vpop.f32.mrf.mxu0
    %v2293 = vpop.f32.mrf.mxu0
    %v2294 = vadd.f32 %v2197, %v2293
    %v2295 = vpop.f32.mrf.mxu0
    %2296 = vmatprep.mubr.bf16.mxu0 %v2122
    %2297 = vmatmul.mubr.bf16.gmra.mxu0 %v2121
    %v2298 = vpop.f32.mrf.mxu0
    %v2299 = vadd.f32 %v2202, %v2298
    %v2300 = vpop.f32.mrf.mxu0
    %v2301 = vpop.f32.mrf.mxu0
    %v2302 = vadd.f32 %v2205, %v2301
    %v2303 = vpop.f32.mrf.mxu0
    %2304 = vmatprep.mubr.bf16.mxu0 %v2126
    %2305 = vmatmul.mubr.bf16.gmra.mxu0 %v2125
    %v2306 = vpop.f32.mrf.mxu0
    %v2307 = vadd.f32 %v2210, %v2306
    %v2308 = vpop.f32.mrf.mxu0
    %v2309 = vpop.f32.mrf.mxu0
    %v2310 = vadd.f32 %v2213, %v2309
    %v2311 = vpop.f32.mrf.mxu0
    %2312 = vmatprep.mubr.bf16.mxu0 %v2130
    %2313 = vmatmul.mubr.bf16.gmra.mxu0 %v2129
    %v2314 = vpop.f32.mrf.mxu0
    %v2315 = vadd.f32 %v2218, %v2314
    %v2316 = vpop.f32.mrf.mxu0
    %v2317 = vpop.f32.mrf.mxu0
    %v2318 = vadd.f32 %v2221, %v2317
    %v2319 = vpop.f32.mrf.mxu0
    %2320 = vmatprep.mubr.bf16.mxu0 %v2134
    %2321 = vmatmul.mubr.bf16.gmra.mxu0 %v2133
    %v2322 = vpop.f32.mrf.mxu0
    %v2323 = vadd.f32 %v2226, %v2322
    %v2324 = vpop.f32.mrf.mxu0
    %v2325 = vpop.f32.mrf.mxu0
    %v2326 = vadd.f32 %v2229, %v2325
    %v2327 = vpop.f32.mrf.mxu0
    %2328 = vdwg.mxu0
    %2329 = vadd.xlane.f32.xlu0 %v2267
    %v2330 = vpop.xlane.xlu0 %2329
    %2331 = vadd.xlane.f32.xlu0 %v2270
    %v2332 = vpop.xlane.xlu0 %2331
    %2333 = vadd.xlane.f32.xlu0 %v2275
    %v2334 = vpop.xlane.xlu0 %2333
    %2335 = vadd.xlane.f32.xlu0 %v2278
    %v2336 = vpop.xlane.xlu0 %2335
    %2337 = vadd.xlane.f32.xlu0 %v2283
    %v2338 = vpop.xlane.xlu0 %2337
    %2339 = vadd.xlane.f32.xlu0 %v2286
    %v2340 = vpop.xlane.xlu0 %2339
    %2341 = vadd.xlane.f32.xlu0 %v2291
    %v2342 = vpop.xlane.xlu0 %2341
    %2343 = vadd.xlane.f32.xlu0 %v2294
    %v2344 = vpop.xlane.xlu0 %2343
    %2345 = vadd.xlane.f32.xlu0 %v2299
    %v2346 = vpop.xlane.xlu0 %2345
    %2347 = vadd.xlane.f32.xlu0 %v2302
    %v2348 = vpop.xlane.xlu0 %2347
    %2349 = vadd.xlane.f32.xlu0 %v2307
    %v2350 = vpop.xlane.xlu0 %2349
    %2351 = vadd.xlane.f32.xlu0 %v2310
    %v2352 = vpop.xlane.xlu0 %2351
    %2353 = vadd.xlane.f32.xlu0 %v2315
    %v2354 = vpop.xlane.xlu0 %2353
    %2355 = vadd.xlane.f32.xlu0 %v2318
    %v2356 = vpop.xlane.xlu0 %2355
    %2357 = vadd.xlane.f32.xlu0 %v2323
    %v2358 = vpop.xlane.xlu0 %2357
    %2359 = vadd.xlane.f32.xlu0 %v2326
    %v2360 = vpop.xlane.xlu0 %2359
    %v2361 = vmul.f32 %v2330, %v755
    %v2362 = vmul.f32 %v2332, %v755
    %v2363 = vmul.f32 %v2334, %v755
    %v2364 = vmul.f32 %v2336, %v755
    %v2365 = vmul.f32 %v2338, %v755
    %v2366 = vmul.f32 %v2340, %v755
    %v2367 = vmul.f32 %v2342, %v755
    %v2368 = vmul.f32 %v2344, %v755
    %v2369 = vmul.f32 %v2346, %v755
    %v2370 = vmul.f32 %v2348, %v755
    %v2371 = vmul.f32 %v2350, %v755
    %v2372 = vmul.f32 %v2352, %v755
    %v2373 = vmul.f32 %v2354, %v755
    %v2374 = vmul.f32 %v2356, %v755
    %v2375 = vmul.f32 %v2358, %v755
    %v2376 = vmul.f32 %v2360, %v755
    %v2377 = vsub.f32 %v2267, %v2361
    %v2378 = vsub.f32 %v2270, %v2362
    %v2379 = vsub.f32 %v2275, %v2363
    %v2380 = vsub.f32 %v2278, %v2364
    %v2381 = vsub.f32 %v2283, %v2365
    %v2382 = vsub.f32 %v2286, %v2366
    %v2383 = vsub.f32 %v2291, %v2367
    %v2384 = vsub.f32 %v2294, %v2368
    %v2385 = vsub.f32 %v2299, %v2369
    %v2386 = vsub.f32 %v2302, %v2370
    %v2387 = vsub.f32 %v2307, %v2371
    %v2388 = vsub.f32 %v2310, %v2372
    %v2389 = vsub.f32 %v2315, %v2373
    %v2390 = vsub.f32 %v2318, %v2374
    %v2391 = vsub.f32 %v2323, %v2375
    %v2392 = vsub.f32 %v2326, %v2376
    %v2393 = vmul.f32 %v2377, %v2377
    %v2394 = vmul.f32 %v2378, %v2378
    %v2395 = vmul.f32 %v2379, %v2379
    %v2396 = vmul.f32 %v2380, %v2380
    %v2397 = vmul.f32 %v2381, %v2381
    %v2398 = vmul.f32 %v2382, %v2382
    %v2399 = vmul.f32 %v2383, %v2383
    %v2400 = vmul.f32 %v2384, %v2384
    %v2401 = vmul.f32 %v2385, %v2385
    %v2402 = vmul.f32 %v2386, %v2386
    %v2403 = vmul.f32 %v2387, %v2387
    %v2404 = vmul.f32 %v2388, %v2388
    %v2405 = vmul.f32 %v2389, %v2389
    %v2406 = vmul.f32 %v2390, %v2390
    %v2407 = vmul.f32 %v2391, %v2391
    %v2408 = vmul.f32 %v2392, %v2392
    %2409 = vadd.xlane.f32.xlu0 %v2393
    %v2410 = vpop.xlane.xlu0 %2409
    %2411 = vadd.xlane.f32.xlu0 %v2394
    %v2412 = vpop.xlane.xlu0 %2411
    %2413 = vadd.xlane.f32.xlu0 %v2395
    %v2414 = vpop.xlane.xlu0 %2413
    %2415 = vadd.xlane.f32.xlu0 %v2396
    %v2416 = vpop.xlane.xlu0 %2415
    %2417 = vadd.xlane.f32.xlu0 %v2397
    %v2418 = vpop.xlane.xlu0 %2417
    %2419 = vadd.xlane.f32.xlu0 %v2398
    %v2420 = vpop.xlane.xlu0 %2419
    %2421 = vadd.xlane.f32.xlu0 %v2399
    %v2422 = vpop.xlane.xlu0 %2421
    %2423 = vadd.xlane.f32.xlu0 %v2400
    %v2424 = vpop.xlane.xlu0 %2423
    %2425 = vadd.xlane.f32.xlu0 %v2401
    %v2426 = vpop.xlane.xlu0 %2425
    %2427 = vadd.xlane.f32.xlu0 %v2402
    %v2428 = vpop.xlane.xlu0 %2427
    %2429 = vadd.xlane.f32.xlu0 %v2403
    %v2430 = vpop.xlane.xlu0 %2429
    %2431 = vadd.xlane.f32.xlu0 %v2404
    %v2432 = vpop.xlane.xlu0 %2431
    %2433 = vadd.xlane.f32.xlu0 %v2405
    %v2434 = vpop.xlane.xlu0 %2433
    %2435 = vadd.xlane.f32.xlu0 %v2406
    %v2436 = vpop.xlane.xlu0 %2435
    %2437 = vadd.xlane.f32.xlu0 %v2407
    %v2438 = vpop.xlane.xlu0 %2437
    %2439 = vadd.xlane.f32.xlu0 %v2408
    %v2440 = vpop.xlane.xlu0 %2439
    %v2441 = vmul.f32 %v2410, %v755
    %v2442 = vmul.f32 %v2412, %v755
    %v2443 = vmul.f32 %v2414, %v755
    %v2444 = vmul.f32 %v2416, %v755
    %v2445 = vmul.f32 %v2418, %v755
    %v2446 = vmul.f32 %v2420, %v755
    %v2447 = vmul.f32 %v2422, %v755
    %v2448 = vmul.f32 %v2424, %v755
    %v2449 = vmul.f32 %v2426, %v755
    %v2450 = vmul.f32 %v2428, %v755
    %v2451 = vmul.f32 %v2430, %v755
    %v2452 = vmul.f32 %v2432, %v755
    %v2453 = vmul.f32 %v2434, %v755
    %v2454 = vmul.f32 %v2436, %v755
    %v2455 = vmul.f32 %v2438, %v755
    %v2456 = vmul.f32 %v2440, %v755
    %v2457 = vadd.f32 %v2441, 1e-05
    %v2458 = vadd.f32 %v2442, 1e-05
    %v2459 = vadd.f32 %v2443, 1e-05
    %v2460 = vadd.f32 %v2444, 1e-05
    %v2461 = vadd.f32 %v2445, 1e-05
    %v2462 = vadd.f32 %v2446, 1e-05
    %v2463 = vadd.f32 %v2447, 1e-05
    %v2464 = vadd.f32 %v2448, 1e-05
    %v2465 = vadd.f32 %v2449, 1e-05
    %v2466 = vadd.f32 %v2450, 1e-05
    %v2467 = vadd.f32 %v2451, 1e-05
    %v2468 = vadd.f32 %v2452, 1e-05
    %v2469 = vadd.f32 %v2453, 1e-05
    %v2470 = vadd.f32 %v2454, 1e-05
    %v2471 = vadd.f32 %v2455, 1e-05
    %v2472 = vadd.f32 %v2456, 1e-05
    %v2473 = vrsqrt.pop %v2457
    %v2474 = vrsqrt.pop %v2458
    %v2475 = vrsqrt.pop %v2459
    %v2476 = vrsqrt.pop %v2460
    %v2477 = vrsqrt.pop %v2461
    %v2478 = vrsqrt.pop %v2462
    %v2479 = vrsqrt.pop %v2463
    %v2480 = vrsqrt.pop %v2464
    %v2481 = vrsqrt.pop %v2465
    %v2482 = vrsqrt.pop %v2466
    %v2483 = vrsqrt.pop %v2467
    %v2484 = vrsqrt.pop %v2468
    %v2485 = vrsqrt.pop %v2469
    %v2486 = vrsqrt.pop %v2470
    %v2487 = vrsqrt.pop %v2471
    %v2488 = vrsqrt.pop %v2472
    %v2489 = vmul.f32 %v2377, %v2473
    %v2490 = vmul.f32 %v2378, %v2474
    %v2491 = vmul.f32 %v2379, %v2475
    %v2492 = vmul.f32 %v2380, %v2476
    %v2493 = vmul.f32 %v2381, %v2477
    %v2494 = vmul.f32 %v2382, %v2478
    %v2495 = vmul.f32 %v2383, %v2479
    %v2496 = vmul.f32 %v2384, %v2480
    %v2497 = vmul.f32 %v2385, %v2481
    %v2498 = vmul.f32 %v2386, %v2482
    %v2499 = vmul.f32 %v2387, %v2483
    %v2500 = vmul.f32 %v2388, %v2484
    %v2501 = vmul.f32 %v2389, %v2485
    %v2502 = vmul.f32 %v2390, %v2486
    %v2503 = vmul.f32 %v2391, %v2487
    %v2504 = vmul.f32 %v2392, %v2488
    %v2505 = vmul.f32 %v2489, %v903
    %v2506 = vmul.f32 %v2490, %v903
    %v2507 = vmul.f32 %v2491, %v903
    %v2508 = vmul.f32 %v2492, %v903
    %v2509 = vmul.f32 %v2493, %v903
    %v2510 = vmul.f32 %v2494, %v903
    %v2511 = vmul.f32 %v2495, %v903
    %v2512 = vmul.f32 %v2496, %v903
    %v2513 = vmul.f32 %v2497, %v903
    %v2514 = vmul.f32 %v2498, %v903
    %v2515 = vmul.f32 %v2499, %v903
    %v2516 = vmul.f32 %v2500, %v903
    %v2517 = vmul.f32 %v2501, %v903
    %v2518 = vmul.f32 %v2502, %v903
    %v2519 = vmul.f32 %v2503, %v903
    %v2520 = vmul.f32 %v2504, %v903
    %v2521 = vadd.f32 %v2505, %v923
    %v2522 = vadd.f32 %v2506, %v923
    %v2523 = vadd.f32 %v2507, %v923
    %v2524 = vadd.f32 %v2508, %v923
    %v2525 = vadd.f32 %v2509, %v923
    %v2526 = vadd.f32 %v2510, %v923
    %v2527 = vadd.f32 %v2511, %v923
    %v2528 = vadd.f32 %v2512, %v923
    %v2529 = vadd.f32 %v2513, %v923
    %v2530 = vadd.f32 %v2514, %v923
    %v2531 = vadd.f32 %v2515, %v923
    %v2532 = vadd.f32 %v2516, %v923
    %v2533 = vadd.f32 %v2517, %v923
    %v2534 = vadd.f32 %v2518, %v923
    %v2535 = vadd.f32 %v2519, %v923
    %v2536 = vadd.f32 %v2520, %v923
    %2538 = vset.pattern.permute.xlu0 0
    %2539 = vperm.xlu0 %2538, %v1911
    %v2540 = vpop.permute.xlu0 %2539
    %2543 = vset.pattern.permute.xlu0 0
    %2544 = vperm.xlu0 %2543, %v1912
    %v2545 = vpop.permute.xlu0 %2544
    %2548 = vset.pattern.permute.xlu0 0
    %2549 = vperm.xlu0 %2548, %v1913
    %v2550 = vpop.permute.xlu0 %2549
    %2553 = vset.pattern.permute.xlu0 0
    %2554 = vperm.xlu0 %2553, %v1914
    %v2555 = vpop.permute.xlu0 %2554
    %2558 = vset.pattern.permute.xlu0 0
    %2559 = vperm.xlu0 %2558, %v1915
    %v2560 = vpop.permute.xlu0 %2559
    %2563 = vset.pattern.permute.xlu0 0
    %2564 = vperm.xlu0 %2563, %v1916
    %v2565 = vpop.permute.xlu0 %2564
    %2568 = vset.pattern.permute.xlu0 0
    %2569 = vperm.xlu0 %2568, %v1917
    %v2570 = vpop.permute.xlu0 %2569
    %2573 = vset.pattern.permute.xlu0 0
    %2574 = vperm.xlu0 %2573, %v1918
    %v2575 = vpop.permute.xlu0 %2574
    %2578 = vset.pattern.permute.xlu0 0
    %2579 = vperm.xlu0 %2578, %v1919
    %v2580 = vpop.permute.xlu0 %2579
    %2583 = vset.pattern.permute.xlu0 0
    %2584 = vperm.xlu0 %2583, %v1920
    %v2585 = vpop.permute.xlu0 %2584
    %2588 = vset.pattern.permute.xlu0 0
    %2589 = vperm.xlu0 %2588, %v1921
    %v2590 = vpop.permute.xlu0 %2589
    %2593 = vset.pattern.permute.xlu0 0
    %2594 = vperm.xlu0 %2593, %v1922
    %v2595 = vpop.permute.xlu0 %2594
    %2598 = vset.pattern.permute.xlu0 0
    %2599 = vperm.xlu0 %2598, %v1923
    %v2600 = vpop.permute.xlu0 %2599
    %2603 = vset.pattern.permute.xlu0 0
    %2604 = vperm.xlu0 %2603, %v1924
    %v2605 = vpop.permute.xlu0 %2604
    %2608 = vset.pattern.permute.xlu0 0
    %2609 = vperm.xlu0 %2608, %v1925
    %v2610 = vpop.permute.xlu0 %2609
    %2613 = vset.pattern.permute.xlu0 0
    %2614 = vperm.xlu0 %2613, %v1926
    %v2615 = vpop.permute.xlu0 %2614
    %v2617 = vmul.f32 %v2521, %v2540
    %v2618 = vmul.f32 %v2522, %v2545
    %v2619 = vmul.f32 %v2523, %v2550
    %v2620 = vmul.f32 %v2524, %v2555
    %v2621 = vmul.f32 %v2525, %v2560
    %v2622 = vmul.f32 %v2526, %v2565
    %v2623 = vmul.f32 %v2527, %v2570
    %v2624 = vmul.f32 %v2528, %v2575
    %v2625 = vmul.f32 %v2529, %v2580
    %v2626 = vmul.f32 %v2530, %v2585
    %v2627 = vmul.f32 %v2531, %v2590
    %v2628 = vmul.f32 %v2532, %v2595
    %v2629 = vmul.f32 %v2533, %v2600
    %v2630 = vmul.f32 %v2534, %v2605
    %v2631 = vmul.f32 %v2535, %v2610
    %v2632 = vmul.f32 %v2536, %v2615
    %v2633 = vadd.f32 %v2617, %v2618
    %v2634 = vadd.f32 %v2633, %v2619
    %v2635 = vadd.f32 %v2634, %v2620
    %v2636 = vadd.f32 %v2635, %v2621
    %v2637 = vadd.f32 %v2636, %v2622
    %v2638 = vadd.f32 %v2637, %v2623
    %v2639 = vadd.f32 %v2638, %v2624
    %v2640 = vadd.f32 %v2639, %v2625
    %v2641 = vadd.f32 %v2640, %v2626
    %v2642 = vadd.f32 %v2641, %v2627
    %v2643 = vadd.f32 %v2642, %v2628
    %v2644 = vadd.f32 %v2643, %v2629
    %v2645 = vadd.f32 %v2644, %v2630
    %v2646 = vadd.f32 %v2645, %v2631
    %v2647 = vadd.f32 %v2646, %v2632
    %v2648 = vrot.slane %v2647, 4
    %v2649 = vadd.f32 %v2647, %v2648
    %v2650 = vrot.slane %v2649, 2
    %v2651 = vadd.f32 %v2649, %v2650
    %v2652 = vrot.slane %v2651, 1
    %v2653 = vadd.f32 %v2651, %v2652
    %v2654 = vsel %vm1057, %v1911, 0.0
    %v2655 = vsel %vm1057, %v1912, 0.0
    %v2656 = vadd.f32 %v2654, %v2655
    %v2657 = vsel %vm1057, %v1913, 0.0
    %v2658 = vadd.f32 %v2656, %v2657
    %v2659 = vsel %vm1057, %v1914, 0.0
    %v2660 = vadd.f32 %v2658, %v2659
    %v2661 = vsel %vm1057, %v1915, 0.0
    %v2662 = vadd.f32 %v2660, %v2661
    %v2663 = vsel %vm1057, %v1916, 0.0
    %v2664 = vadd.f32 %v2662, %v2663
    %v2665 = vsel %vm1057, %v1917, 0.0
    %v2666 = vadd.f32 %v2664, %v2665
    %v2667 = vsel %vm1057, %v1918, 0.0
    %v2668 = vadd.f32 %v2666, %v2667
    %v2669 = vsel %vm1057, %v1919, 0.0
    %v2670 = vadd.f32 %v2668, %v2669
    %v2671 = vsel %vm1057, %v1920, 0.0
    %v2672 = vadd.f32 %v2670, %v2671
    %v2673 = vsel %vm1057, %v1921, 0.0
    %v2674 = vadd.f32 %v2672, %v2673
    %v2675 = vsel %vm1057, %v1922, 0.0
    %v2676 = vadd.f32 %v2674, %v2675
    %v2677 = vsel %vm1057, %v1923, 0.0
    %v2678 = vadd.f32 %v2676, %v2677
    %v2679 = vsel %vm1057, %v1924, 0.0
    %v2680 = vadd.f32 %v2678, %v2679
    %v2681 = vsel %vm1057, %v1925, 0.0
    %v2682 = vadd.f32 %v2680, %v2681
    %v2683 = vsel %vm1057, %v1926, 0.0
    %v2684 = vadd.f32 %v2682, %v2683
    %v2685 = vrot.slane %v2684, 4
    %v2686 = vadd.f32 %v2684, %v2685
    %v2687 = vrot.slane %v2686, 2
    %v2688 = vadd.f32 %v2686, %v2687
    %v2689 = vrot.slane %v2688, 1
    %v2690 = vadd.f32 %v2688, %v2689
    %s2691 = scalar_lea.vmem %s0, 384
    %v2692 = vld [vmem:[%s2691] sm:$0xff]
    %v2693 = vld [vmem:[%s2691 + $0x8] sm:$0xff]
    %v2694 = vld [vmem:[%s2691 + $0x10] sm:$0xff]
    %v2695 = vld [vmem:[%s2691 + $0x18] sm:$0xff]
    %v2696 = vld [vmem:[%s2691 + $0x20] sm:$0xff]
    %v2697 = vld [vmem:[%s2691 + $0x28] sm:$0xff]
    %v2698 = vld [vmem:[%s2691 + $0x30] sm:$0xff]
    %v2699 = vld [vmem:[%s2691 + $0x38] sm:$0xff]
    %v2700 = vld [vmem:[%s2691 + $0x40] sm:$0xff]
    %v2701 = vld [vmem:[%s2691 + $0x48] sm:$0xff]
    %v2702 = vld [vmem:[%s2691 + $0x50] sm:$0xff]
    %v2703 = vld [vmem:[%s2691 + $0x58] sm:$0xff]
    %v2704 = vld [vmem:[%s2691 + $0x60] sm:$0xff]
    %v2705 = vld [vmem:[%s2691 + $0x68] sm:$0xff]
    %v2706 = vld [vmem:[%s2691 + $0x70] sm:$0xff]
    %v2707 = vld [vmem:[%s2691 + $0x78] sm:$0xff]
    %s2708 = scalar_lea.vmem %s1, 384
    %v2709 = vld [vmem:[%s2708] sm:$0xff]
    %v2710 = vld [vmem:[%s2708 + $0x8] sm:$0xff]
    %v2711 = vld [vmem:[%s2708 + $0x10] sm:$0xff]
    %v2712 = vld [vmem:[%s2708 + $0x18] sm:$0xff]
    %v2713 = vld [vmem:[%s2708 + $0x20] sm:$0xff]
    %v2714 = vld [vmem:[%s2708 + $0x28] sm:$0xff]
    %v2715 = vld [vmem:[%s2708 + $0x30] sm:$0xff]
    %v2716 = vld [vmem:[%s2708 + $0x38] sm:$0xff]
    %v2717 = vld [vmem:[%s2708 + $0x40] sm:$0xff]
    %v2718 = vld [vmem:[%s2708 + $0x48] sm:$0xff]
    %v2719 = vld [vmem:[%s2708 + $0x50] sm:$0xff]
    %v2720 = vld [vmem:[%s2708 + $0x58] sm:$0xff]
    %v2721 = vld [vmem:[%s2708 + $0x60] sm:$0xff]
    %v2722 = vld [vmem:[%s2708 + $0x68] sm:$0xff]
    %v2723 = vld [vmem:[%s2708 + $0x70] sm:$0xff]
    %v2724 = vld [vmem:[%s2708 + $0x78] sm:$0xff]
    %2725 = vset.pattern.permute.xlu0 0
    %2726 = vperm.xlu0 %2725, %v2692
    %v2727 = vpop.permute.xlu0 %2726
    %2728 = vset.pattern.permute.xlu0 0
    %2729 = vperm.xlu0 %2728, %v2693
    %v2730 = vpop.permute.xlu0 %2729
    %2731 = vset.pattern.permute.xlu0 0
    %2732 = vperm.xlu0 %2731, %v2694
    %v2733 = vpop.permute.xlu0 %2732
    %2734 = vset.pattern.permute.xlu0 0
    %2735 = vperm.xlu0 %2734, %v2695
    %v2736 = vpop.permute.xlu0 %2735
    %2737 = vset.pattern.permute.xlu0 0
    %2738 = vperm.xlu0 %2737, %v2696
    %v2739 = vpop.permute.xlu0 %2738
    %2740 = vset.pattern.permute.xlu0 0
    %2741 = vperm.xlu0 %2740, %v2697
    %v2742 = vpop.permute.xlu0 %2741
    %2743 = vset.pattern.permute.xlu0 0
    %2744 = vperm.xlu0 %2743, %v2698
    %v2745 = vpop.permute.xlu0 %2744
    %2746 = vset.pattern.permute.xlu0 0
    %2747 = vperm.xlu0 %2746, %v2699
    %v2748 = vpop.permute.xlu0 %2747
    %2749 = vset.pattern.permute.xlu0 0
    %2750 = vperm.xlu0 %2749, %v2700
    %v2751 = vpop.permute.xlu0 %2750
    %2752 = vset.pattern.permute.xlu0 0
    %2753 = vperm.xlu0 %2752, %v2701
    %v2754 = vpop.permute.xlu0 %2753
    %2755 = vset.pattern.permute.xlu0 0
    %2756 = vperm.xlu0 %2755, %v2702
    %v2757 = vpop.permute.xlu0 %2756
    %2758 = vset.pattern.permute.xlu0 0
    %2759 = vperm.xlu0 %2758, %v2703
    %v2760 = vpop.permute.xlu0 %2759
    %2761 = vset.pattern.permute.xlu0 0
    %2762 = vperm.xlu0 %2761, %v2704
    %v2763 = vpop.permute.xlu0 %2762
    %2764 = vset.pattern.permute.xlu0 0
    %2765 = vperm.xlu0 %2764, %v2705
    %v2766 = vpop.permute.xlu0 %2765
    %2767 = vset.pattern.permute.xlu0 0
    %2768 = vperm.xlu0 %2767, %v2706
    %v2769 = vpop.permute.xlu0 %2768
    %2770 = vset.pattern.permute.xlu0 0
    %2771 = vperm.xlu0 %2770, %v2707
    %v2772 = vpop.permute.xlu0 %2771
    %vm2773 = vcmp.eq.s32.totalorder %v2727, %v93
    %vm2774 = vcmp.eq.s32.totalorder %v2727, %v94
    %vm2775 = vcmp.eq.s32.totalorder %v2727, %v95
    %vm2776 = vcmp.eq.s32.totalorder %v2727, %v96
    %vm2777 = vcmp.eq.s32.totalorder %v2730, %v93
    %vm2778 = vcmp.eq.s32.totalorder %v2730, %v94
    %vm2779 = vcmp.eq.s32.totalorder %v2730, %v95
    %vm2780 = vcmp.eq.s32.totalorder %v2730, %v96
    %vm2781 = vcmp.eq.s32.totalorder %v2733, %v93
    %vm2782 = vcmp.eq.s32.totalorder %v2733, %v94
    %vm2783 = vcmp.eq.s32.totalorder %v2733, %v95
    %vm2784 = vcmp.eq.s32.totalorder %v2733, %v96
    %vm2785 = vcmp.eq.s32.totalorder %v2736, %v93
    %vm2786 = vcmp.eq.s32.totalorder %v2736, %v94
    %vm2787 = vcmp.eq.s32.totalorder %v2736, %v95
    %vm2788 = vcmp.eq.s32.totalorder %v2736, %v96
    %vm2789 = vcmp.eq.s32.totalorder %v2739, %v93
    %vm2790 = vcmp.eq.s32.totalorder %v2739, %v94
    %vm2791 = vcmp.eq.s32.totalorder %v2739, %v95
    %vm2792 = vcmp.eq.s32.totalorder %v2739, %v96
    %vm2793 = vcmp.eq.s32.totalorder %v2742, %v93
    %vm2794 = vcmp.eq.s32.totalorder %v2742, %v94
    %vm2795 = vcmp.eq.s32.totalorder %v2742, %v95
    %vm2796 = vcmp.eq.s32.totalorder %v2742, %v96
    %vm2797 = vcmp.eq.s32.totalorder %v2745, %v93
    %vm2798 = vcmp.eq.s32.totalorder %v2745, %v94
    %vm2799 = vcmp.eq.s32.totalorder %v2745, %v95
    %vm2800 = vcmp.eq.s32.totalorder %v2745, %v96
    %vm2801 = vcmp.eq.s32.totalorder %v2748, %v93
    %vm2802 = vcmp.eq.s32.totalorder %v2748, %v94
    %vm2803 = vcmp.eq.s32.totalorder %v2748, %v95
    %vm2804 = vcmp.eq.s32.totalorder %v2748, %v96
    %vm2805 = vcmp.eq.s32.totalorder %v2751, %v93
    %vm2806 = vcmp.eq.s32.totalorder %v2751, %v94
    %vm2807 = vcmp.eq.s32.totalorder %v2751, %v95
    %vm2808 = vcmp.eq.s32.totalorder %v2751, %v96
    %vm2809 = vcmp.eq.s32.totalorder %v2754, %v93
    %vm2810 = vcmp.eq.s32.totalorder %v2754, %v94
    %vm2811 = vcmp.eq.s32.totalorder %v2754, %v95
    %vm2812 = vcmp.eq.s32.totalorder %v2754, %v96
    %vm2813 = vcmp.eq.s32.totalorder %v2757, %v93
    %vm2814 = vcmp.eq.s32.totalorder %v2757, %v94
    %vm2815 = vcmp.eq.s32.totalorder %v2757, %v95
    %vm2816 = vcmp.eq.s32.totalorder %v2757, %v96
    %vm2817 = vcmp.eq.s32.totalorder %v2760, %v93
    %vm2818 = vcmp.eq.s32.totalorder %v2760, %v94
    %vm2819 = vcmp.eq.s32.totalorder %v2760, %v95
    %vm2820 = vcmp.eq.s32.totalorder %v2760, %v96
    %vm2821 = vcmp.eq.s32.totalorder %v2763, %v93
    %vm2822 = vcmp.eq.s32.totalorder %v2763, %v94
    %vm2823 = vcmp.eq.s32.totalorder %v2763, %v95
    %vm2824 = vcmp.eq.s32.totalorder %v2763, %v96
    %vm2825 = vcmp.eq.s32.totalorder %v2766, %v93
    %vm2826 = vcmp.eq.s32.totalorder %v2766, %v94
    %vm2827 = vcmp.eq.s32.totalorder %v2766, %v95
    %vm2828 = vcmp.eq.s32.totalorder %v2766, %v96
    %vm2829 = vcmp.eq.s32.totalorder %v2769, %v93
    %vm2830 = vcmp.eq.s32.totalorder %v2769, %v94
    %vm2831 = vcmp.eq.s32.totalorder %v2769, %v95
    %vm2832 = vcmp.eq.s32.totalorder %v2769, %v96
    %vm2833 = vcmp.eq.s32.totalorder %v2772, %v93
    %vm2834 = vcmp.eq.s32.totalorder %v2772, %v94
    %vm2835 = vcmp.eq.s32.totalorder %v2772, %v95
    %vm2836 = vcmp.eq.s32.totalorder %v2772, %v96
    %v2837 = vsel %vm2773, 1.0, 0.0
    %v2838 = vsel %vm2774, 1.0, 0.0
    %v2839 = vsel %vm2775, 1.0, 0.0
    %v2840 = vsel %vm2776, 1.0, 0.0
    %v2841 = vsel %vm2777, 1.0, 0.0
    %v2842 = vsel %vm2778, 1.0, 0.0
    %v2843 = vsel %vm2779, 1.0, 0.0
    %v2844 = vsel %vm2780, 1.0, 0.0
    %v2845 = vsel %vm2781, 1.0, 0.0
    %v2846 = vsel %vm2782, 1.0, 0.0
    %v2847 = vsel %vm2783, 1.0, 0.0
    %v2848 = vsel %vm2784, 1.0, 0.0
    %v2849 = vsel %vm2785, 1.0, 0.0
    %v2850 = vsel %vm2786, 1.0, 0.0
    %v2851 = vsel %vm2787, 1.0, 0.0
    %v2852 = vsel %vm2788, 1.0, 0.0
    %v2853 = vsel %vm2789, 1.0, 0.0
    %v2854 = vsel %vm2790, 1.0, 0.0
    %v2855 = vsel %vm2791, 1.0, 0.0
    %v2856 = vsel %vm2792, 1.0, 0.0
    %v2857 = vsel %vm2793, 1.0, 0.0
    %v2858 = vsel %vm2794, 1.0, 0.0
    %v2859 = vsel %vm2795, 1.0, 0.0
    %v2860 = vsel %vm2796, 1.0, 0.0
    %v2861 = vsel %vm2797, 1.0, 0.0
    %v2862 = vsel %vm2798, 1.0, 0.0
    %v2863 = vsel %vm2799, 1.0, 0.0
    %v2864 = vsel %vm2800, 1.0, 0.0
    %v2865 = vsel %vm2801, 1.0, 0.0
    %v2866 = vsel %vm2802, 1.0, 0.0
    %v2867 = vsel %vm2803, 1.0, 0.0
    %v2868 = vsel %vm2804, 1.0, 0.0
    %v2869 = vsel %vm2805, 1.0, 0.0
    %v2870 = vsel %vm2806, 1.0, 0.0
    %v2871 = vsel %vm2807, 1.0, 0.0
    %v2872 = vsel %vm2808, 1.0, 0.0
    %v2873 = vsel %vm2809, 1.0, 0.0
    %v2874 = vsel %vm2810, 1.0, 0.0
    %v2875 = vsel %vm2811, 1.0, 0.0
    %v2876 = vsel %vm2812, 1.0, 0.0
    %v2877 = vsel %vm2813, 1.0, 0.0
    %v2878 = vsel %vm2814, 1.0, 0.0
    %v2879 = vsel %vm2815, 1.0, 0.0
    %v2880 = vsel %vm2816, 1.0, 0.0
    %v2881 = vsel %vm2817, 1.0, 0.0
    %v2882 = vsel %vm2818, 1.0, 0.0
    %v2883 = vsel %vm2819, 1.0, 0.0
    %v2884 = vsel %vm2820, 1.0, 0.0
    %v2885 = vsel %vm2821, 1.0, 0.0
    %v2886 = vsel %vm2822, 1.0, 0.0
    %v2887 = vsel %vm2823, 1.0, 0.0
    %v2888 = vsel %vm2824, 1.0, 0.0
    %v2889 = vsel %vm2825, 1.0, 0.0
    %v2890 = vsel %vm2826, 1.0, 0.0
    %v2891 = vsel %vm2827, 1.0, 0.0
    %v2892 = vsel %vm2828, 1.0, 0.0
    %v2893 = vsel %vm2829, 1.0, 0.0
    %v2894 = vsel %vm2830, 1.0, 0.0
    %v2895 = vsel %vm2831, 1.0, 0.0
    %v2896 = vsel %vm2832, 1.0, 0.0
    %v2897 = vsel %vm2833, 1.0, 0.0
    %v2898 = vsel %vm2834, 1.0, 0.0
    %v2899 = vsel %vm2835, 1.0, 0.0
    %v2900 = vsel %vm2836, 1.0, 0.0
    %v2901 = vpack.c.bf16 %v2841, %v2837
    %v2902 = vpack.c.bf16 %v2842, %v2838
    %v2903 = vpack.c.bf16 %v2843, %v2839
    %v2904 = vpack.c.bf16 %v2844, %v2840
    %v2905 = vpack.c.bf16 %v2849, %v2845
    %v2906 = vpack.c.bf16 %v2850, %v2846
    %v2907 = vpack.c.bf16 %v2851, %v2847
    %v2908 = vpack.c.bf16 %v2852, %v2848
    %v2909 = vpack.c.bf16 %v2857, %v2853
    %v2910 = vpack.c.bf16 %v2858, %v2854
    %v2911 = vpack.c.bf16 %v2859, %v2855
    %v2912 = vpack.c.bf16 %v2860, %v2856
    %v2913 = vpack.c.bf16 %v2865, %v2861
    %v2914 = vpack.c.bf16 %v2866, %v2862
    %v2915 = vpack.c.bf16 %v2867, %v2863
    %v2916 = vpack.c.bf16 %v2868, %v2864
    %v2917 = vpack.c.bf16 %v2873, %v2869
    %v2918 = vpack.c.bf16 %v2874, %v2870
    %v2919 = vpack.c.bf16 %v2875, %v2871
    %v2920 = vpack.c.bf16 %v2876, %v2872
    %v2921 = vpack.c.bf16 %v2881, %v2877
    %v2922 = vpack.c.bf16 %v2882, %v2878
    %v2923 = vpack.c.bf16 %v2883, %v2879
    %v2924 = vpack.c.bf16 %v2884, %v2880
    %v2925 = vpack.c.bf16 %v2889, %v2885
    %v2926 = vpack.c.bf16 %v2890, %v2886
    %v2927 = vpack.c.bf16 %v2891, %v2887
    %v2928 = vpack.c.bf16 %v2892, %v2888
    %v2929 = vpack.c.bf16 %v2897, %v2893
    %v2930 = vpack.c.bf16 %v2898, %v2894
    %v2931 = vpack.c.bf16 %v2899, %v2895
    %v2932 = vpack.c.bf16 %v2900, %v2896
    %2933 = vmatprep.subr.bf16.mxu0 0
    %2934 = vmatpush1.bf16.msra.mxu0 %v472
    %2935 = vmatprep.subr.bf16.mxu0 0
    %2936 = vmatpush1.bf16.msra.mxu0 %v471
    %2937 = vmatprep.subr.bf16.mxu0 0
    %2938 = vmatpush1.bf16.msra.mxu0 %v470
    %2939 = vmatprep.subr.bf16.mxu0 0
    %2940 = vmatpush1.bf16.msra.mxu0 %v469
    %2941 = vmatprep.subr.bf16.mxu0 0
    %2942 = vmatpush1.bf16.msra.mxu0 %v468
    %2943 = vmatprep.subr.bf16.mxu0 0
    %2944 = vmatpush1.bf16.msra.mxu0 %v467
    %2945 = vmatprep.subr.bf16.mxu0 0
    %2946 = vmatpush1.bf16.msra.mxu0 %v466
    %2947 = vmatprep.subr.bf16.mxu0 0
    %2948 = vmatpush1.bf16.msra.mxu0 %v465
    %2949 = vmatprep.subr.bf16.mxu0 0
    %2950 = vmatpush2.bf16.msra.mxu0 %v480
    %2951 = vmatprep.subr.bf16.mxu0 0
    %2952 = vmatpush2.bf16.msra.mxu0 %v479
    %2953 = vmatprep.subr.bf16.mxu0 0
    %2954 = vmatpush2.bf16.msra.mxu0 %v478
    %2955 = vmatprep.subr.bf16.mxu0 0
    %2956 = vmatpush2.bf16.msra.mxu0 %v477
    %2957 = vmatprep.subr.bf16.mxu0 0
    %2958 = vmatpush2.bf16.msra.mxu0 %v476
    %2959 = vmatprep.subr.bf16.mxu0 0
    %2960 = vmatpush2.bf16.msra.mxu0 %v475
    %2961 = vmatprep.subr.bf16.mxu0 0
    %2962 = vmatpush2.bf16.msra.mxu0 %v474
    %2963 = vmatprep.subr.bf16.mxu0 0
    %2964 = vmatpush2.bf16.msra.mxu0 %v473
    %2965 = vmatprep.mubr.bf16.mxu0 %v2902
    %2966 = vmatmul.mubr.bf16.gmra.mxu0 %v2901
    %v2967 = vpop.f32.mrf.mxu0
    %v2968 = vadd.f32 0.0, %v2967
    %v2969 = vpop.f32.mrf.mxu0
    %v2970 = vpop.f32.mrf.mxu0
    %v2971 = vadd.f32 0.0, %v2970
    %v2972 = vpop.f32.mrf.mxu0
    %2973 = vmatprep.mubr.bf16.mxu0 %v2906
    %2974 = vmatmul.mubr.bf16.gmra.mxu0 %v2905
    %v2975 = vpop.f32.mrf.mxu0
    %v2976 = vadd.f32 0.0, %v2975
    %v2977 = vpop.f32.mrf.mxu0
    %v2978 = vpop.f32.mrf.mxu0
    %v2979 = vadd.f32 0.0, %v2978
    %v2980 = vpop.f32.mrf.mxu0
    %2981 = vmatprep.mubr.bf16.mxu0 %v2910
    %2982 = vmatmul.mubr.bf16.gmra.mxu0 %v2909
    %v2983 = vpop.f32.mrf.mxu0
    %v2984 = vadd.f32 0.0, %v2983
    %v2985 = vpop.f32.mrf.mxu0
    %v2986 = vpop.f32.mrf.mxu0
    %v2987 = vadd.f32 0.0, %v2986
    %v2988 = vpop.f32.mrf.mxu0
    %2989 = vmatprep.mubr.bf16.mxu0 %v2914
    %2990 = vmatmul.mubr.bf16.gmra.mxu0 %v2913
    %v2991 = vpop.f32.mrf.mxu0
    %v2992 = vadd.f32 0.0, %v2991
    %v2993 = vpop.f32.mrf.mxu0
    %v2994 = vpop.f32.mrf.mxu0
    %v2995 = vadd.f32 0.0, %v2994
    %v2996 = vpop.f32.mrf.mxu0
    %2997 = vmatprep.mubr.bf16.mxu0 %v2918
    %2998 = vmatmul.mubr.bf16.gmra.mxu0 %v2917
    %v2999 = vpop.f32.mrf.mxu0
    %v3000 = vadd.f32 0.0, %v2999
    %v3001 = vpop.f32.mrf.mxu0
    %v3002 = vpop.f32.mrf.mxu0
    %v3003 = vadd.f32 0.0, %v3002
    %v3004 = vpop.f32.mrf.mxu0
    %3005 = vmatprep.mubr.bf16.mxu0 %v2922
    %3006 = vmatmul.mubr.bf16.gmra.mxu0 %v2921
    %v3007 = vpop.f32.mrf.mxu0
    %v3008 = vadd.f32 0.0, %v3007
    %v3009 = vpop.f32.mrf.mxu0
    %v3010 = vpop.f32.mrf.mxu0
    %v3011 = vadd.f32 0.0, %v3010
    %v3012 = vpop.f32.mrf.mxu0
    %3013 = vmatprep.mubr.bf16.mxu0 %v2926
    %3014 = vmatmul.mubr.bf16.gmra.mxu0 %v2925
    %v3015 = vpop.f32.mrf.mxu0
    %v3016 = vadd.f32 0.0, %v3015
    %v3017 = vpop.f32.mrf.mxu0
    %v3018 = vpop.f32.mrf.mxu0
    %v3019 = vadd.f32 0.0, %v3018
    %v3020 = vpop.f32.mrf.mxu0
    %3021 = vmatprep.mubr.bf16.mxu0 %v2930
    %3022 = vmatmul.mubr.bf16.gmra.mxu0 %v2929
    %v3023 = vpop.f32.mrf.mxu0
    %v3024 = vadd.f32 0.0, %v3023
    %v3025 = vpop.f32.mrf.mxu0
    %v3026 = vpop.f32.mrf.mxu0
    %v3027 = vadd.f32 0.0, %v3026
    %v3028 = vpop.f32.mrf.mxu0
    %3029 = vdwg.mxu0
    %3030 = vmatprep.subr.bf16.mxu0 0
    %3031 = vmatpush1.bf16.msra.mxu0 %v488
    %3032 = vmatprep.subr.bf16.mxu0 0
    %3033 = vmatpush1.bf16.msra.mxu0 %v487
    %3034 = vmatprep.subr.bf16.mxu0 0
    %3035 = vmatpush1.bf16.msra.mxu0 %v486
    %3036 = vmatprep.subr.bf16.mxu0 0
    %3037 = vmatpush1.bf16.msra.mxu0 %v485
    %3038 = vmatprep.subr.bf16.mxu0 0
    %3039 = vmatpush1.bf16.msra.mxu0 %v484
    %3040 = vmatprep.subr.bf16.mxu0 0
    %3041 = vmatpush1.bf16.msra.mxu0 %v483
    %3042 = vmatprep.subr.bf16.mxu0 0
    %3043 = vmatpush1.bf16.msra.mxu0 %v482
    %3044 = vmatprep.subr.bf16.mxu0 0
    %3045 = vmatpush1.bf16.msra.mxu0 %v481
    %3046 = vmatprep.subr.bf16.mxu0 0
    %3047 = vmatpush2.bf16.msra.mxu0 %v496
    %3048 = vmatprep.subr.bf16.mxu0 0
    %3049 = vmatpush2.bf16.msra.mxu0 %v495
    %3050 = vmatprep.subr.bf16.mxu0 0
    %3051 = vmatpush2.bf16.msra.mxu0 %v494
    %3052 = vmatprep.subr.bf16.mxu0 0
    %3053 = vmatpush2.bf16.msra.mxu0 %v493
    %3054 = vmatprep.subr.bf16.mxu0 0
    %3055 = vmatpush2.bf16.msra.mxu0 %v492
    %3056 = vmatprep.subr.bf16.mxu0 0
    %3057 = vmatpush2.bf16.msra.mxu0 %v491
    %3058 = vmatprep.subr.bf16.mxu0 0
    %3059 = vmatpush2.bf16.msra.mxu0 %v490
    %3060 = vmatprep.subr.bf16.mxu0 0
    %3061 = vmatpush2.bf16.msra.mxu0 %v489
    %3062 = vmatprep.mubr.bf16.mxu0 %v2904
    %3063 = vmatmul.mubr.bf16.gmra.mxu0 %v2903
    %v3064 = vpop.f32.mrf.mxu0
    %v3065 = vadd.f32 %v2968, %v3064
    %v3066 = vpop.f32.mrf.mxu0
    %v3067 = vpop.f32.mrf.mxu0
    %v3068 = vadd.f32 %v2971, %v3067
    %v3069 = vpop.f32.mrf.mxu0
    %3070 = vmatprep.mubr.bf16.mxu0 %v2908
    %3071 = vmatmul.mubr.bf16.gmra.mxu0 %v2907
    %v3072 = vpop.f32.mrf.mxu0
    %v3073 = vadd.f32 %v2976, %v3072
    %v3074 = vpop.f32.mrf.mxu0
    %v3075 = vpop.f32.mrf.mxu0
    %v3076 = vadd.f32 %v2979, %v3075
    %v3077 = vpop.f32.mrf.mxu0
    %3078 = vmatprep.mubr.bf16.mxu0 %v2912
    %3079 = vmatmul.mubr.bf16.gmra.mxu0 %v2911
    %v3080 = vpop.f32.mrf.mxu0
    %v3081 = vadd.f32 %v2984, %v3080
    %v3082 = vpop.f32.mrf.mxu0
    %v3083 = vpop.f32.mrf.mxu0
    %v3084 = vadd.f32 %v2987, %v3083
    %v3085 = vpop.f32.mrf.mxu0
    %3086 = vmatprep.mubr.bf16.mxu0 %v2916
    %3087 = vmatmul.mubr.bf16.gmra.mxu0 %v2915
    %v3088 = vpop.f32.mrf.mxu0
    %v3089 = vadd.f32 %v2992, %v3088
    %v3090 = vpop.f32.mrf.mxu0
    %v3091 = vpop.f32.mrf.mxu0
    %v3092 = vadd.f32 %v2995, %v3091
    %v3093 = vpop.f32.mrf.mxu0
    %3094 = vmatprep.mubr.bf16.mxu0 %v2920
    %3095 = vmatmul.mubr.bf16.gmra.mxu0 %v2919
    %v3096 = vpop.f32.mrf.mxu0
    %v3097 = vadd.f32 %v3000, %v3096
    %v3098 = vpop.f32.mrf.mxu0
    %v3099 = vpop.f32.mrf.mxu0
    %v3100 = vadd.f32 %v3003, %v3099
    %v3101 = vpop.f32.mrf.mxu0
    %3102 = vmatprep.mubr.bf16.mxu0 %v2924
    %3103 = vmatmul.mubr.bf16.gmra.mxu0 %v2923
    %v3104 = vpop.f32.mrf.mxu0
    %v3105 = vadd.f32 %v3008, %v3104
    %v3106 = vpop.f32.mrf.mxu0
    %v3107 = vpop.f32.mrf.mxu0
    %v3108 = vadd.f32 %v3011, %v3107
    %v3109 = vpop.f32.mrf.mxu0
    %3110 = vmatprep.mubr.bf16.mxu0 %v2928
    %3111 = vmatmul.mubr.bf16.gmra.mxu0 %v2927
    %v3112 = vpop.f32.mrf.mxu0
    %v3113 = vadd.f32 %v3016, %v3112
    %v3114 = vpop.f32.mrf.mxu0
    %v3115 = vpop.f32.mrf.mxu0
    %v3116 = vadd.f32 %v3019, %v3115
    %v3117 = vpop.f32.mrf.mxu0
    %3118 = vmatprep.mubr.bf16.mxu0 %v2932
    %3119 = vmatmul.mubr.bf16.gmra.mxu0 %v2931
    %v3120 = vpop.f32.mrf.mxu0
    %v3121 = vadd.f32 %v3024, %v3120
    %v3122 = vpop.f32.mrf.mxu0
    %v3123 = vpop.f32.mrf.mxu0
    %v3124 = vadd.f32 %v3027, %v3123
    %v3125 = vpop.f32.mrf.mxu0
    %3126 = vdwg.mxu0
    %3127 = vadd.xlane.f32.xlu0 %v3065
    %v3128 = vpop.xlane.xlu0 %3127
    %3129 = vadd.xlane.f32.xlu0 %v3068
    %v3130 = vpop.xlane.xlu0 %3129
    %3131 = vadd.xlane.f32.xlu0 %v3073
    %v3132 = vpop.xlane.xlu0 %3131
    %3133 = vadd.xlane.f32.xlu0 %v3076
    %v3134 = vpop.xlane.xlu0 %3133
    %3135 = vadd.xlane.f32.xlu0 %v3081
    %v3136 = vpop.xlane.xlu0 %3135
    %3137 = vadd.xlane.f32.xlu0 %v3084
    %v3138 = vpop.xlane.xlu0 %3137
    %3139 = vadd.xlane.f32.xlu0 %v3089
    %v3140 = vpop.xlane.xlu0 %3139
    %3141 = vadd.xlane.f32.xlu0 %v3092
    %v3142 = vpop.xlane.xlu0 %3141
    %3143 = vadd.xlane.f32.xlu0 %v3097
    %v3144 = vpop.xlane.xlu0 %3143
    %3145 = vadd.xlane.f32.xlu0 %v3100
    %v3146 = vpop.xlane.xlu0 %3145
    %3147 = vadd.xlane.f32.xlu0 %v3105
    %v3148 = vpop.xlane.xlu0 %3147
    %3149 = vadd.xlane.f32.xlu0 %v3108
    %v3150 = vpop.xlane.xlu0 %3149
    %3151 = vadd.xlane.f32.xlu0 %v3113
    %v3152 = vpop.xlane.xlu0 %3151
    %3153 = vadd.xlane.f32.xlu0 %v3116
    %v3154 = vpop.xlane.xlu0 %3153
    %3155 = vadd.xlane.f32.xlu0 %v3121
    %v3156 = vpop.xlane.xlu0 %3155
    %3157 = vadd.xlane.f32.xlu0 %v3124
    %v3158 = vpop.xlane.xlu0 %3157
    %v3159 = vmul.f32 %v3128, %v755
    %v3160 = vmul.f32 %v3130, %v755
    %v3161 = vmul.f32 %v3132, %v755
    %v3162 = vmul.f32 %v3134, %v755
    %v3163 = vmul.f32 %v3136, %v755
    %v3164 = vmul.f32 %v3138, %v755
    %v3165 = vmul.f32 %v3140, %v755
    %v3166 = vmul.f32 %v3142, %v755
    %v3167 = vmul.f32 %v3144, %v755
    %v3168 = vmul.f32 %v3146, %v755
    %v3169 = vmul.f32 %v3148, %v755
    %v3170 = vmul.f32 %v3150, %v755
    %v3171 = vmul.f32 %v3152, %v755
    %v3172 = vmul.f32 %v3154, %v755
    %v3173 = vmul.f32 %v3156, %v755
    %v3174 = vmul.f32 %v3158, %v755
    %v3175 = vsub.f32 %v3065, %v3159
    %v3176 = vsub.f32 %v3068, %v3160
    %v3177 = vsub.f32 %v3073, %v3161
    %v3178 = vsub.f32 %v3076, %v3162
    %v3179 = vsub.f32 %v3081, %v3163
    %v3180 = vsub.f32 %v3084, %v3164
    %v3181 = vsub.f32 %v3089, %v3165
    %v3182 = vsub.f32 %v3092, %v3166
    %v3183 = vsub.f32 %v3097, %v3167
    %v3184 = vsub.f32 %v3100, %v3168
    %v3185 = vsub.f32 %v3105, %v3169
    %v3186 = vsub.f32 %v3108, %v3170
    %v3187 = vsub.f32 %v3113, %v3171
    %v3188 = vsub.f32 %v3116, %v3172
    %v3189 = vsub.f32 %v3121, %v3173
    %v3190 = vsub.f32 %v3124, %v3174
    %v3191 = vmul.f32 %v3175, %v3175
    %v3192 = vmul.f32 %v3176, %v3176
    %v3193 = vmul.f32 %v3177, %v3177
    %v3194 = vmul.f32 %v3178, %v3178
    %v3195 = vmul.f32 %v3179, %v3179
    %v3196 = vmul.f32 %v3180, %v3180
    %v3197 = vmul.f32 %v3181, %v3181
    %v3198 = vmul.f32 %v3182, %v3182
    %v3199 = vmul.f32 %v3183, %v3183
    %v3200 = vmul.f32 %v3184, %v3184
    %v3201 = vmul.f32 %v3185, %v3185
    %v3202 = vmul.f32 %v3186, %v3186
    %v3203 = vmul.f32 %v3187, %v3187
    %v3204 = vmul.f32 %v3188, %v3188
    %v3205 = vmul.f32 %v3189, %v3189
    %v3206 = vmul.f32 %v3190, %v3190
    %3207 = vadd.xlane.f32.xlu0 %v3191
    %v3208 = vpop.xlane.xlu0 %3207
    %3209 = vadd.xlane.f32.xlu0 %v3192
    %v3210 = vpop.xlane.xlu0 %3209
    %3211 = vadd.xlane.f32.xlu0 %v3193
    %v3212 = vpop.xlane.xlu0 %3211
    %3213 = vadd.xlane.f32.xlu0 %v3194
    %v3214 = vpop.xlane.xlu0 %3213
    %3215 = vadd.xlane.f32.xlu0 %v3195
    %v3216 = vpop.xlane.xlu0 %3215
    %3217 = vadd.xlane.f32.xlu0 %v3196
    %v3218 = vpop.xlane.xlu0 %3217
    %3219 = vadd.xlane.f32.xlu0 %v3197
    %v3220 = vpop.xlane.xlu0 %3219
    %3221 = vadd.xlane.f32.xlu0 %v3198
    %v3222 = vpop.xlane.xlu0 %3221
    %3223 = vadd.xlane.f32.xlu0 %v3199
    %v3224 = vpop.xlane.xlu0 %3223
    %3225 = vadd.xlane.f32.xlu0 %v3200
    %v3226 = vpop.xlane.xlu0 %3225
    %3227 = vadd.xlane.f32.xlu0 %v3201
    %v3228 = vpop.xlane.xlu0 %3227
    %3229 = vadd.xlane.f32.xlu0 %v3202
    %v3230 = vpop.xlane.xlu0 %3229
    %3231 = vadd.xlane.f32.xlu0 %v3203
    %v3232 = vpop.xlane.xlu0 %3231
    %3233 = vadd.xlane.f32.xlu0 %v3204
    %v3234 = vpop.xlane.xlu0 %3233
    %3235 = vadd.xlane.f32.xlu0 %v3205
    %v3236 = vpop.xlane.xlu0 %3235
    %3237 = vadd.xlane.f32.xlu0 %v3206
    %v3238 = vpop.xlane.xlu0 %3237
    %v3239 = vmul.f32 %v3208, %v755
    %v3240 = vmul.f32 %v3210, %v755
    %v3241 = vmul.f32 %v3212, %v755
    %v3242 = vmul.f32 %v3214, %v755
    %v3243 = vmul.f32 %v3216, %v755
    %v3244 = vmul.f32 %v3218, %v755
    %v3245 = vmul.f32 %v3220, %v755
    %v3246 = vmul.f32 %v3222, %v755
    %v3247 = vmul.f32 %v3224, %v755
    %v3248 = vmul.f32 %v3226, %v755
    %v3249 = vmul.f32 %v3228, %v755
    %v3250 = vmul.f32 %v3230, %v755
    %v3251 = vmul.f32 %v3232, %v755
    %v3252 = vmul.f32 %v3234, %v755
    %v3253 = vmul.f32 %v3236, %v755
    %v3254 = vmul.f32 %v3238, %v755
    %v3255 = vadd.f32 %v3239, 1e-05
    %v3256 = vadd.f32 %v3240, 1e-05
    %v3257 = vadd.f32 %v3241, 1e-05
    %v3258 = vadd.f32 %v3242, 1e-05
    %v3259 = vadd.f32 %v3243, 1e-05
    %v3260 = vadd.f32 %v3244, 1e-05
    %v3261 = vadd.f32 %v3245, 1e-05
    %v3262 = vadd.f32 %v3246, 1e-05
    %v3263 = vadd.f32 %v3247, 1e-05
    %v3264 = vadd.f32 %v3248, 1e-05
    %v3265 = vadd.f32 %v3249, 1e-05
    %v3266 = vadd.f32 %v3250, 1e-05
    %v3267 = vadd.f32 %v3251, 1e-05
    %v3268 = vadd.f32 %v3252, 1e-05
    %v3269 = vadd.f32 %v3253, 1e-05
    %v3270 = vadd.f32 %v3254, 1e-05
    %v3271 = vrsqrt.pop %v3255
    %v3272 = vrsqrt.pop %v3256
    %v3273 = vrsqrt.pop %v3257
    %v3274 = vrsqrt.pop %v3258
    %v3275 = vrsqrt.pop %v3259
    %v3276 = vrsqrt.pop %v3260
    %v3277 = vrsqrt.pop %v3261
    %v3278 = vrsqrt.pop %v3262
    %v3279 = vrsqrt.pop %v3263
    %v3280 = vrsqrt.pop %v3264
    %v3281 = vrsqrt.pop %v3265
    %v3282 = vrsqrt.pop %v3266
    %v3283 = vrsqrt.pop %v3267
    %v3284 = vrsqrt.pop %v3268
    %v3285 = vrsqrt.pop %v3269
    %v3286 = vrsqrt.pop %v3270
    %v3287 = vmul.f32 %v3175, %v3271
    %v3288 = vmul.f32 %v3176, %v3272
    %v3289 = vmul.f32 %v3177, %v3273
    %v3290 = vmul.f32 %v3178, %v3274
    %v3291 = vmul.f32 %v3179, %v3275
    %v3292 = vmul.f32 %v3180, %v3276
    %v3293 = vmul.f32 %v3181, %v3277
    %v3294 = vmul.f32 %v3182, %v3278
    %v3295 = vmul.f32 %v3183, %v3279
    %v3296 = vmul.f32 %v3184, %v3280
    %v3297 = vmul.f32 %v3185, %v3281
    %v3298 = vmul.f32 %v3186, %v3282
    %v3299 = vmul.f32 %v3187, %v3283
    %v3300 = vmul.f32 %v3188, %v3284
    %v3301 = vmul.f32 %v3189, %v3285
    %v3302 = vmul.f32 %v3190, %v3286
    %v3303 = vmul.f32 %v3287, %v903
    %v3304 = vmul.f32 %v3288, %v903
    %v3305 = vmul.f32 %v3289, %v903
    %v3306 = vmul.f32 %v3290, %v903
    %v3307 = vmul.f32 %v3291, %v903
    %v3308 = vmul.f32 %v3292, %v903
    %v3309 = vmul.f32 %v3293, %v903
    %v3310 = vmul.f32 %v3294, %v903
    %v3311 = vmul.f32 %v3295, %v903
    %v3312 = vmul.f32 %v3296, %v903
    %v3313 = vmul.f32 %v3297, %v903
    %v3314 = vmul.f32 %v3298, %v903
    %v3315 = vmul.f32 %v3299, %v903
    %v3316 = vmul.f32 %v3300, %v903
    %v3317 = vmul.f32 %v3301, %v903
    %v3318 = vmul.f32 %v3302, %v903
    %v3319 = vadd.f32 %v3303, %v923
    %v3320 = vadd.f32 %v3304, %v923
    %v3321 = vadd.f32 %v3305, %v923
    %v3322 = vadd.f32 %v3306, %v923
    %v3323 = vadd.f32 %v3307, %v923
    %v3324 = vadd.f32 %v3308, %v923
    %v3325 = vadd.f32 %v3309, %v923
    %v3326 = vadd.f32 %v3310, %v923
    %v3327 = vadd.f32 %v3311, %v923
    %v3328 = vadd.f32 %v3312, %v923
    %v3329 = vadd.f32 %v3313, %v923
    %v3330 = vadd.f32 %v3314, %v923
    %v3331 = vadd.f32 %v3315, %v923
    %v3332 = vadd.f32 %v3316, %v923
    %v3333 = vadd.f32 %v3317, %v923
    %v3334 = vadd.f32 %v3318, %v923
    %3336 = vset.pattern.permute.xlu0 0
    %3337 = vperm.xlu0 %3336, %v2709
    %v3338 = vpop.permute.xlu0 %3337
    %3341 = vset.pattern.permute.xlu0 0
    %3342 = vperm.xlu0 %3341, %v2710
    %v3343 = vpop.permute.xlu0 %3342
    %3346 = vset.pattern.permute.xlu0 0
    %3347 = vperm.xlu0 %3346, %v2711
    %v3348 = vpop.permute.xlu0 %3347
    %3351 = vset.pattern.permute.xlu0 0
    %3352 = vperm.xlu0 %3351, %v2712
    %v3353 = vpop.permute.xlu0 %3352
    %3356 = vset.pattern.permute.xlu0 0
    %3357 = vperm.xlu0 %3356, %v2713
    %v3358 = vpop.permute.xlu0 %3357
    %3361 = vset.pattern.permute.xlu0 0
    %3362 = vperm.xlu0 %3361, %v2714
    %v3363 = vpop.permute.xlu0 %3362
    %3366 = vset.pattern.permute.xlu0 0
    %3367 = vperm.xlu0 %3366, %v2715
    %v3368 = vpop.permute.xlu0 %3367
    %3371 = vset.pattern.permute.xlu0 0
    %3372 = vperm.xlu0 %3371, %v2716
    %v3373 = vpop.permute.xlu0 %3372
    %3376 = vset.pattern.permute.xlu0 0
    %3377 = vperm.xlu0 %3376, %v2717
    %v3378 = vpop.permute.xlu0 %3377
    %3381 = vset.pattern.permute.xlu0 0
    %3382 = vperm.xlu0 %3381, %v2718
    %v3383 = vpop.permute.xlu0 %3382
    %3386 = vset.pattern.permute.xlu0 0
    %3387 = vperm.xlu0 %3386, %v2719
    %v3388 = vpop.permute.xlu0 %3387
    %3391 = vset.pattern.permute.xlu0 0
    %3392 = vperm.xlu0 %3391, %v2720
    %v3393 = vpop.permute.xlu0 %3392
    %3396 = vset.pattern.permute.xlu0 0
    %3397 = vperm.xlu0 %3396, %v2721
    %v3398 = vpop.permute.xlu0 %3397
    %3401 = vset.pattern.permute.xlu0 0
    %3402 = vperm.xlu0 %3401, %v2722
    %v3403 = vpop.permute.xlu0 %3402
    %3406 = vset.pattern.permute.xlu0 0
    %3407 = vperm.xlu0 %3406, %v2723
    %v3408 = vpop.permute.xlu0 %3407
    %3411 = vset.pattern.permute.xlu0 0
    %3412 = vperm.xlu0 %3411, %v2724
    %v3413 = vpop.permute.xlu0 %3412
    %v3415 = vmul.f32 %v3319, %v3338
    %v3416 = vmul.f32 %v3320, %v3343
    %v3417 = vmul.f32 %v3321, %v3348
    %v3418 = vmul.f32 %v3322, %v3353
    %v3419 = vmul.f32 %v3323, %v3358
    %v3420 = vmul.f32 %v3324, %v3363
    %v3421 = vmul.f32 %v3325, %v3368
    %v3422 = vmul.f32 %v3326, %v3373
    %v3423 = vmul.f32 %v3327, %v3378
    %v3424 = vmul.f32 %v3328, %v3383
    %v3425 = vmul.f32 %v3329, %v3388
    %v3426 = vmul.f32 %v3330, %v3393
    %v3427 = vmul.f32 %v3331, %v3398
    %v3428 = vmul.f32 %v3332, %v3403
    %v3429 = vmul.f32 %v3333, %v3408
    %v3430 = vmul.f32 %v3334, %v3413
    %v3431 = vadd.f32 %v3415, %v3416
    %v3432 = vadd.f32 %v3431, %v3417
    %v3433 = vadd.f32 %v3432, %v3418
    %v3434 = vadd.f32 %v3433, %v3419
    %v3435 = vadd.f32 %v3434, %v3420
    %v3436 = vadd.f32 %v3435, %v3421
    %v3437 = vadd.f32 %v3436, %v3422
    %v3438 = vadd.f32 %v3437, %v3423
    %v3439 = vadd.f32 %v3438, %v3424
    %v3440 = vadd.f32 %v3439, %v3425
    %v3441 = vadd.f32 %v3440, %v3426
    %v3442 = vadd.f32 %v3441, %v3427
    %v3443 = vadd.f32 %v3442, %v3428
    %v3444 = vadd.f32 %v3443, %v3429
    %v3445 = vadd.f32 %v3444, %v3430
    %v3446 = vrot.slane %v3445, 4
    %v3447 = vadd.f32 %v3445, %v3446
    %v3448 = vrot.slane %v3447, 2
    %v3449 = vadd.f32 %v3447, %v3448
    %v3450 = vrot.slane %v3449, 1
    %v3451 = vadd.f32 %v3449, %v3450
    %v3452 = vsel %vm1057, %v2709, 0.0
    %v3453 = vsel %vm1057, %v2710, 0.0
    %v3454 = vadd.f32 %v3452, %v3453
    %v3455 = vsel %vm1057, %v2711, 0.0
    %v3456 = vadd.f32 %v3454, %v3455
    %v3457 = vsel %vm1057, %v2712, 0.0
    %v3458 = vadd.f32 %v3456, %v3457
    %v3459 = vsel %vm1057, %v2713, 0.0
    %v3460 = vadd.f32 %v3458, %v3459
    %v3461 = vsel %vm1057, %v2714, 0.0
    %v3462 = vadd.f32 %v3460, %v3461
    %v3463 = vsel %vm1057, %v2715, 0.0
    %v3464 = vadd.f32 %v3462, %v3463
    %v3465 = vsel %vm1057, %v2716, 0.0
    %v3466 = vadd.f32 %v3464, %v3465
    %v3467 = vsel %vm1057, %v2717, 0.0
    %v3468 = vadd.f32 %v3466, %v3467
    %v3469 = vsel %vm1057, %v2718, 0.0
    %v3470 = vadd.f32 %v3468, %v3469
    %v3471 = vsel %vm1057, %v2719, 0.0
    %v3472 = vadd.f32 %v3470, %v3471
    %v3473 = vsel %vm1057, %v2720, 0.0
    %v3474 = vadd.f32 %v3472, %v3473
    %v3475 = vsel %vm1057, %v2721, 0.0
    %v3476 = vadd.f32 %v3474, %v3475
    %v3477 = vsel %vm1057, %v2722, 0.0
    %v3478 = vadd.f32 %v3476, %v3477
    %v3479 = vsel %vm1057, %v2723, 0.0
    %v3480 = vadd.f32 %v3478, %v3479
    %v3481 = vsel %vm1057, %v2724, 0.0
    %v3482 = vadd.f32 %v3480, %v3481
    %v3483 = vrot.slane %v3482, 4
    %v3484 = vadd.f32 %v3482, %v3483
    %v3485 = vrot.slane %v3484, 2
    %v3486 = vadd.f32 %v3484, %v3485
    %v3487 = vrot.slane %v3486, 1
    %v3488 = vadd.f32 %v3486, %v3487
    %v3489 = vld [vmem:[#allocation2] sm:$0xf]
    %vm3490 = vcmask 1040384
    %v3491 = vsel %vm3490, %v1056, %v1855
    %vm3492 = vcmask 1041408
    %v3493 = vsel %vm3492, %v3491, %v2653
    %vm3494 = vcmask 1042432
    %v3495 = vsel %vm3494, %v3493, %v3451
    %v3496 = vadd.f32 %v3489, %v3495
    %3497 = vst [vmem:[#allocation2] sm:$0xf] %v3496
    %v3498 = vld [vmem:[#allocation3] sm:$0xf]
    %v3499 = vsel %vm3490, %v1094, %v1892
    %v3500 = vsel %vm3492, %v3499, %v2690
    %v3501 = vsel %vm3494, %v3500, %v3488
    %v3502 = vadd.f32 %v3498, %v3501
    %vm3503 = vcmask 3072
    %3504 = vst.msk [vmem:[#allocation3] sm:$0xf] %vm3503, %v3502
    // Predicated region
    $region22: #{tpu_custom_call.1} parent=1 // pred_check
      %p3505 = pneg %p19
    $region23: #{tpu_custom_call.1} parent=1 // pred_check_branch
      %3507 = sbr.rel (%p3505) target = $region25
    $region24: #{tpu_custom_call.1} parent=1 // pred_region
      %v3508 = vld [vmem:[#allocation2] sm:$0xf]
      %v3509 = vld [vmem:[#allocation3] sm:$0xf]
      %v3510 = vmax.f32 %v3509, 1e-09
      %3512 = vset.pattern.permute.xlu0 0
      %3513 = vperm.xlu0 %3512, %v3510
      %v3514 = vpop.permute.xlu0 %3513
      %v3516 = vrcp.pop %v3514
      %v3517 = vmul.f32 %v3508, %v3516
      %v3518 = vmul.f32 %v3517, %v3517
      %vm3519 = vcmask 1043456
      %v3520 = vsel %vm3519, %v3518, 0.0
      %3521 = vadd.xlane.f32.xlu0 %v3520
      %v3522 = vpop.xlane.xlu0 %3521
      %v3523 = vrsqrt.pop %v3522
      %v3524 = vmul.f32 %v3522, %v3523
      %vm3525 = vcmp.eq.f32.partialorder %v3522, inf
      %v3526 = vsel %vm3525, %v3522, %v3524
      %vm3527 = vcmp.eq.f32.partialorder %v3522, 0.0
      %v3528 = vand.u32 %v3522, 2147483648
      %v3529 = vsel %vm3527, %v3528, %v3526
      %v3530 = vmax.f32 %v3529, 1e-12
      %v3531 = vrcp.pop %v3530
      %v3532 = vmul.f32 %v3517, %v3531
      %3533 = vst [vmem:[#allocation4] sm:$0xf] %v3532
    $region25: #{tpu_custom_call.1} parent=1 // pred_fallthru
      _
    // Predicated region
    $region26: #{tpu_custom_call.1} parent=1 // pred_check
      _
    $region27: #{tpu_custom_call.1} parent=1 // pred_check_branch
      %3535 = sbr.rel (0) target = $region29
    $region28: #{tpu_custom_call.1} parent=1 // pred_region
      %s3537 = ssub.s32 64, 64
      %3538 = vsyncadd [#allocation5], %s3537
      %s3540 = sshll.u32 [#allocation4], 4
      %s3541 = int_to_ptr.vmem [resolvable:$true] %s3540
      %3543 = dma.vmem_to_hbm [thread:$0]  %s3541, 64, %s4, [#allocation5]
    $region29: #{tpu_custom_call.1} parent=1 // pred_fallthru
      _
    // Predicated region
    $region30: #{tpu_custom_call.1} parent=1 // pred_check
      _
    $region31: #{tpu_custom_call.1} parent=1 // pred_check_branch
      %3545 = sbr.rel (0) target = $region33
    $region32: #{tpu_custom_call.1} parent=1 // pred_region
      %3546 = dma.done [#allocation5], 64
    $region33: #{tpu_custom_call.1} parent=1 // pred_fallthru
      _
    %3547 = vsyncpa [#allocation5], 1

</llo_original>
